<compile_context>
chip_gen: v5e
topology: v5e:2x2
jax: 0.10.0
libtpu: 0.0.40
codegen_flags: <defaults>
</compile_context>

<pallas_src>
import functools
import math

import jax
import jax.numpy as jnp
from jax.experimental import pallas as pl
from jax.experimental.pallas import tpu as pltpu


# ------------------------------ small helpers ------------------------------

def _rep_spec(shape):
    """BlockSpec for a weight that is replicated across the (1-D) grid."""
    rank = len(shape)
    return pl.BlockSpec(shape, lambda i, _r=rank: (0,) * _r)


def _ln(x, g, b, eps):
    mu = jnp.mean(x, axis=-1, keepdims=True)
    var = jnp.mean(jnp.square(x - mu), axis=-1, keepdims=True)
    return (x - mu) * jax.lax.rsqrt(var + eps) * g + b


# ------------------------------ fused TCN kernel ----------------------------

def _tcn_fused_kernel(*refs, k, dilations, T):
    nlvl = len(dilations)
    x_ref, lw_ref, lb_ref = refs[0], refs[1], refs[2]
    conv_refs = refs[3:3 + 2 * nlvl]
    o_ref = refs[3 + 2 * nlvl]

    x = x_ref[...].astype(jnp.float32)                         # (n, T, Sin)
    h = jnp.einsum('nts,sd->ntd', x, lw_ref[...],
                   preferred_element_type=jnp.float32) + lb_ref[...]

    for li, dil in enumerate(dilations):
        wf = conv_refs[2 * li][...]                            # (k*D, D)
        bb = conv_refs[2 * li + 1][...]                        # (1, D)
        pad = (k - 1) * dil
        zeros = jnp.zeros((h.shape[0], pad, h.shape[2]), jnp.float32)
        hp = jnp.concatenate([zeros, h], axis=1)               # causal left pad
        # im2col: one (n*T, k*D) @ (k*D, D) matmul instead of k tiny matmuls
        cols = jnp.concatenate([hp[:, j * dil:j * dil + T, :] for j in range(k)],
                               axis=-1)                        # (n, T, k*D)
        y = jnp.einsum('ntc,cd->ntd', cols, wf,
                       preferred_element_type=jnp.float32) + bb
        y = jnp.maximum(y, 0.0)                                # conv + ReLU
        h = jnp.maximum(y + h, 0.0)                            # residual + ReLU

    o_ref[...] = h.astype(o_ref.dtype)


def tcn_forward_fused(x, p):
    """TemporalConvNet: Linear + dilated causal conv blocks, one pallas_call.
    x: (Nb, T, Sin) -> (Nb, T, D)."""
    Nb, T, Sin = x.shape
    D = p['lin_w'].shape[1]
    k = p['blocks'][0]['w'].shape[0]
    dilations = tuple(2 ** i for i in range(len(p['blocks'])))

    gs = 2 if Nb % 2 == 0 else 1       # parallel row split (v7x's 2nd TC)
    nb = Nb // gs

    conv_args, conv_specs = [], []
    for blk in p['blocks']:
        wf = blk['w'].reshape(k * D, D)
        bb = blk['b'].reshape(1, D)
        conv_args += [wf, bb]
        conv_specs += [_rep_spec((k * D, D)), _rep_spec((1, D))]

    return pl.pallas_call(
        functools.partial(_tcn_fused_kernel, k=k, dilations=dilations, T=T),
        out_shape=jax.ShapeDtypeStruct((Nb, T, D), jnp.float32),
        grid=(gs,),
        in_specs=[pl.BlockSpec((nb, T, Sin), lambda i: (i, 0, 0)),
                  _rep_spec((Sin, D)), _rep_spec((1, D))] + conv_specs,
        out_specs=pl.BlockSpec((nb, T, D), lambda i: (i, 0, 0)),
        compiler_params=pltpu.CompilerParams(dimension_semantics=("parallel",)),
    )(x, p['lin_w'], p['lin_b'].reshape(1, D), *conv_args)


# --------------------- fused transformer-decoder-layer ----------------------

def _decoder_fused_kernel(mem_ref, wsa_ref, bsa_ref, g1_ref, bl1_ref,
                          wq_ref, bq_ref, wkv_ref, bkv_ref, wo_ref, bo_ref,
                          g2_ref, bl2_ref, w1_ref, bf1_ref, w2_ref, bf2_ref,
                          g3_ref, bl3_ref, o_ref, *, scale, eps):
    mem = mem_ref[...].astype(jnp.float32)                     # (n, S, D)
    n, S, D = mem.shape
    tgt = mem[:, S - 1, :]                                     # (n, D) == src[-1]

    # length-1 self-attention folded into one affine map (exact)
    sa = jnp.dot(tgt, wsa_ref[...], preferred_element_type=jnp.float32) + bsa_ref[...]
    x1 = _ln(tgt + sa, g1_ref[...], bl1_ref[...], eps)

    # cross-attention, nhead = 1, fused K/V projection
    q = jnp.dot(x1, wq_ref[...], preferred_element_type=jnp.float32) + bq_ref[...]
    kv = jnp.einsum('nsd,de->nse', mem, wkv_ref[...],
                    preferred_element_type=jnp.float32) + bkv_ref[...]   # (n, S, 2D)
    kk = kv[:, :, :D]
    vv = kv[:, :, D:]
    s = jnp.einsum('nud,nsd->nus', q[:, None, :], kk,
                   preferred_element_type=jnp.float32) * scale           # (n, 1, S)
    s = s - jnp.max(s, axis=-1, keepdims=True)
    prob = jnp.exp(s)
    prob = prob / jnp.sum(prob, axis=-1, keepdims=True)
    ctx = jnp.einsum('nus,nsd->nud', prob, vv,
                     preferred_element_type=jnp.float32)[:, 0, :]        # (n, D)
    ca = jnp.dot(ctx, wo_ref[...], preferred_element_type=jnp.float32) + bo_ref[...]
    x2 = _ln(x1 + ca, g2_ref[...], bl2_ref[...], eps)

    # feed-forward (ReLU), post-norm
    h = jnp.maximum(jnp.dot(x2, w1_ref[...], preferred_element_type=jnp.float32)
                    + bf1_ref[...], 0.0)
    f = jnp.dot(h, w2_ref[...], preferred_element_type=jnp.float32) + bf2_ref[...]
    x3 = _ln(x2 + f, g3_ref[...], bl3_ref[...], eps)

    o_ref[...] = x3[:, None, :].astype(o_ref.dtype)


def decoder_layer_fused(mem, p):
    """Fused post-norm decoder layer.  mem: (N, S, D); tgt = mem[:, -1]."""
    N, S, D = mem.shape
    F = p['ff_w1'].shape[1]
    scale = 1.0 / math.sqrt(D)

    # fold the two affine self-attn matmuls into one (softmax over one key == 1)
    w_sa = p['sa_wv'] @ p['sa_wo']
    b_sa = p['sa_bv'] @ p['sa_wo'] + p['sa_bo']
    ca = p['ca']
    wkv = jnp.concatenate([ca['wk'], ca['wv']], axis=1)        # (D, 2D)
    bkv = jnp.concatenate([ca['bk'], ca['bv']]).reshape(1, 1, 2 * D)

    gs = 2 if N % 2 == 0 else 1
    nb = N // gs

    args = [mem,
            w_sa, b_sa.reshape(1, D),
            p['ln1_g'].reshape(1, D), p['ln1_b'].reshape(1, D),
            ca['wq'], ca['bq'].reshape(1, D),
            wkv, bkv,
            ca['wo'], ca['bo'].reshape(1, D),
            p['ln2_g'].reshape(1, D), p['ln2_b'].reshape(1, D),
            p['ff_w1'], p['ff_b1'].reshape(1, F),
            p['ff_w2'], p['ff_b2'].reshape(1, D),
            p['ln3_g'].reshape(1, D), p['ln3_b'].reshape(1, D)]
    in_specs = ([pl.BlockSpec((nb, S, D), lambda i: (i, 0, 0))]
                + [_rep_spec(a.shape) for a in args[1:]])

    out = pl.pallas_call(
        functools.partial(_decoder_fused_kernel, scale=scale, eps=1e-5),
        out_shape=jax.ShapeDtypeStruct((N, 1, D), jnp.float32),
        grid=(gs,),
        in_specs=in_specs,
        out_specs=pl.BlockSpec((nb, 1, D), lambda i: (i, 0, 0)),
        compiler_params=pltpu.CompilerParams(dimension_semantics=("parallel",)),
    )(*args)
    return out.reshape(N, D)


# ------------------------------ fused head kernel ---------------------------

def _head_kernel(xl_ref, day_ref, wk_ref, win_ref, bin_ref, wout_ref, bout_ref, o_ref):
    local = (jnp.dot(xl_ref[...].astype(jnp.float32), win_ref[...],
                     preferred_element_type=jnp.float32) + bin_ref[...])
    cat = jnp.concatenate([local, day_ref[...].astype(jnp.float32),
                           wk_ref[...].astype(jnp.float32)], axis=-1)
    o_ref[...] = (jnp.dot(cat, wout_ref[...], preferred_element_type=jnp.float32)
                  + bout_ref[...]).astype(o_ref.dtype)


def head_fused(x_last, day_state, week_state, params):
    M, Sin = x_last.shape
    D = params['linear_in_w'].shape[1]
    return pl.pallas_call(
        _head_kernel,
        out_shape=jax.ShapeDtypeStruct((M, D), jnp.float32),
        grid=(1,),
        in_specs=[_rep_spec((M, Sin)), _rep_spec((M, D)), _rep_spec((M, D)),
                  _rep_spec((Sin, D)), _rep_spec((1, D)),
                  _rep_spec((3 * D, D)), _rep_spec((1, D))],
        out_specs=_rep_spec((M, D)),
    )(x_last, day_state, week_state,
      params['linear_in_w'], params['linear_in_b'].reshape(1, D),
      params['linear_out_w'], params['linear_out_b'].reshape(1, D))


# ------------------------------- full forward -------------------------------

def hrl_encoder_forward(x, params):
    """x: (batch, building, time, state) -> (batch, building, output_size)."""
    B, BLD, T, SIN = x.shape
    TL = 12
    assert T % TL == 0
    C = T // TL
    D = params['linear_in_w'].shape[1]
    Nb = B * BLD

    # 1) TCN over the time axis (one fused kernel)
    hour_states = tcn_forward_fused(x.reshape(Nb, T, SIN), params['tcn'])   # (Nb,T,D)

    # 2) Hour2Day: the reference stack/split/transpose reduces to a pure reshape
    #    in (row, seq, feat) layout: mem1[(b,bld,c), tl] = hour_states[b,bld,c*TL+tl]
    mem1 = hour_states.reshape(Nb * C, TL, D)
    day_all = decoder_layer_fused(mem1, params['hour2day'])                 # (Nb*C,D)

    day_states = day_all.reshape(Nb, C, D)
    day_state = day_states[:, -1, :]                                        # (Nb,D)

    # 3) Day2Week: mem2[(b,bld), c] = daily state  -> again just a reshape
    week_state = decoder_layer_fused(day_states, params['day2week'])        # (Nb,D)

    # 4) head: linear_in(x[:,:,-1]) + concat + linear_out, fused
    x_last = x[:, :, -1, :].reshape(Nb, SIN)
    out = head_fused(x_last, day_state, week_state, params)                 # (Nb,D)
    return out.reshape(B, BLD, D)


# ------------------------- deterministic parameters -------------------------

def _make_key_iter(key, n=128):
    return iter(jax.random.split(key, n))


def _dense(keys, fan_in, fan_out):
    kw, kb = next(keys), next(keys)
    s = 1.0 / math.sqrt(fan_in)
    w = jax.random.uniform(kw, (fan_in, fan_out), jnp.float32, -s, s)
    b = jax.random.uniform(kb, (fan_out,), jnp.float32, -s, s)
    return w, b


def _init_decoder(keys, D, F):
    sa_wv, sa_bv = _dense(keys, D, D)
    sa_wo, sa_bo = _dense(keys, D, D)
    ca = {}
    for name in ('q', 'k', 'v', 'o'):
        w, b = _dense(keys, D, D)
        ca['w' + name], ca['b' + name] = w, b
    ff_w1, ff_b1 = _dense(keys, D, F)
    ff_w2, ff_b2 = _dense(keys, F, D)
    return dict(sa_wv=sa_wv, sa_bv=sa_bv, sa_wo=sa_wo, sa_bo=sa_bo, ca=ca,
                ff_w1=ff_w1, ff_b1=ff_b1, ff_w2=ff_w2, ff_b2=ff_b2,
                ln1_g=jnp.ones((D,), jnp.float32), ln1_b=jnp.zeros((D,), jnp.float32),
                ln2_g=jnp.ones((D,), jnp.float32), ln2_b=jnp.zeros((D,), jnp.float32),
                ln3_g=jnp.ones((D,), jnp.float32), ln3_b=jnp.zeros((D,), jnp.float32))


def init_params(key, input_size, output_size, *, num_levels=2, kernel_size=3, ffn_dim=64):
    D = output_size
    keys = _make_key_iter(key)
    lin_in_w, lin_in_b = _dense(keys, input_size, D)
    lin_out_w, lin_out_b = _dense(keys, 3 * D, D)
    tcn_lin_w, tcn_lin_b = _dense(keys, input_size, D)
    blocks = []
    for _lvl in range(num_levels):
        kw, kb = next(keys), next(keys)
        s = 1.0 / math.sqrt(D * kernel_size)
        blocks.append(dict(
            w=jax.random.uniform(kw, (kernel_size, D, D), jnp.float32, -s, s),
            b=jax.random.uniform(kb, (D,), jnp.float32, -s, s)))
    return dict(
        linear_in_w=lin_in_w, linear_in_b=lin_in_b,
        linear_out_w=lin_out_w, linear_out_b=lin_out_b,
        tcn=dict(lin_w=tcn_lin_w, lin_b=tcn_lin_b, blocks=blocks),
        hour2day=_init_decoder(keys, D, ffn_dim),
        day2week=_init_decoder(keys, D, ffn_dim))


# ----------------------------------- main -----------------------------------

if __name__ == "__main__":
    B, BLD, T, SIN, D = 2, 3, 24, 8, 32   # time=24 (divisible by 12 -> 2 "days")
    key = jax.random.PRNGKey(0)
    kx, kp = jax.random.split(key)
    x = jax.random.normal(kx, (B, BLD, T, SIN), dtype=jnp.float32)
    params = init_params(kp, SIN, D)

    fwd = jax.jit(hrl_encoder_forward)
    out = jax.block_until_ready(fwd(x, params))
    assert out.shape == (B, BLD, D), out.shape
    assert bool(jnp.all(jnp.isfinite(out)))
    print("KERNEL_OK")
</pallas_src>

<mosaic_0001>
module attributes {stable_mosaic.version = 11 : i64} {
  func.func @_tcn_fused_kernel(%arg0: i32, %arg1: memref<3x24x8xf32, #tpu.memory_space<vmem>>, %arg2: memref<8x32xf32, #tpu.memory_space<vmem>>, %arg3: memref<1x32xf32, #tpu.memory_space<vmem>>, %arg4: memref<96x32xf32, #tpu.memory_space<vmem>>, %arg5: memref<1x32xf32, #tpu.memory_space<vmem>>, %arg6: memref<96x32xf32, #tpu.memory_space<vmem>>, %arg7: memref<1x32xf32, #tpu.memory_space<vmem>>, %arg8: memref<3x24x32xf32, #tpu.memory_space<vmem>>) attributes {dimension_semantics = [#tpu.dimension_semantics<parallel>], iteration_bounds = array<i64: 2>, scalar_prefetch = 0 : i64, scratch_operands = 0 : i64, tpu.core_type = #tpu.core_type<tc>, window_params = [{transform_indices = @transform_0, window_bounds = array<i64: 3, 24, 8>}, {pipeline_mode = #tpu.pipeline_mode<synchronous>, transform_indices = @transform_1, window_bounds = array<i64: 8, 32>}, {pipeline_mode = #tpu.pipeline_mode<synchronous>, transform_indices = @transform_2, window_bounds = array<i64: 1, 32>}, {pipeline_mode = #tpu.pipeline_mode<synchronous>, transform_indices = @transform_3, window_bounds = array<i64: 96, 32>}, {pipeline_mode = #tpu.pipeline_mode<synchronous>, transform_indices = @transform_4, window_bounds = array<i64: 1, 32>}, {pipeline_mode = #tpu.pipeline_mode<synchronous>, transform_indices = @transform_5, window_bounds = array<i64: 96, 32>}, {pipeline_mode = #tpu.pipeline_mode<synchronous>, transform_indices = @transform_6, window_bounds = array<i64: 1, 32>}, {transform_indices = @transform_7, window_bounds = array<i64: 3, 24, 32>}]} {
    %c0 = arith.constant 0 : index
    %c0_0 = arith.constant 0 : index
    %c0_1 = arith.constant 0 : index
    %0 = vector.load %arg1[%c0, %c0_0, %c0_1] : memref<3x24x8xf32, #tpu.memory_space<vmem>>, vector<3x24x8xf32>
    %c0_2 = arith.constant 0 : index
    %c0_3 = arith.constant 0 : index
    %1 = vector.load %arg2[%c0_2, %c0_3] : memref<8x32xf32, #tpu.memory_space<vmem>>, vector<8x32xf32>
    "tpu.trace_start"() <{level = 10 : i32, message = "nts,sd->ntd"}> : () -> ()
    %cst = arith.constant dense<0.000000e+00> : vector<3x24x32xf32>
    %2 = tpu.matmul %0, %1, %cst {dimension_numbers = #tpu.dot_dimension_numbers<[2], [0], [0, 1], [1], [0, 0, 0, 1, 1, 1], [], []>} : vector<3x24x8xf32>, vector<8x32xf32>, vector<3x24x32xf32> -> vector<3x24x32xf32>
    "tpu.trace_stop"() : () -> ()
    %c0_4 = arith.constant 0 : index
    %c0_5 = arith.constant 0 : index
    %3 = vector.load %arg3[%c0_4, %c0_5] : memref<1x32xf32, #tpu.memory_space<vmem>>, vector<1x32xf32>
    %4 = vector.shape_cast %3 : vector<1x32xf32> to vector<1x1x32xf32>
    %5 = vector.broadcast %4 : vector<1x1x32xf32> to vector<3x24x32xf32>
    %6 = arith.addf %2, %5 : vector<3x24x32xf32>
    %c0_6 = arith.constant 0 : index
    %c0_7 = arith.constant 0 : index
    %7 = vector.load %arg4[%c0_6, %c0_7] : memref<96x32xf32, #tpu.memory_space<vmem>>, vector<96x32xf32>
    %c0_8 = arith.constant 0 : index
    %c0_9 = arith.constant 0 : index
    %8 = vector.load %arg5[%c0_8, %c0_9] : memref<1x32xf32, #tpu.memory_space<vmem>>, vector<1x32xf32>
    %cst_10 = arith.constant 0.000000e+00 : f32
    %9 = vector.broadcast %cst_10 : f32 to vector<3x2x32xf32>
    %10 = tpu.concatenate %9, %6 in 1 : vector<3x2x32xf32>, vector<3x24x32xf32> -> vector<3x26x32xf32>
    %11 = vector.extract_strided_slice %10 {offsets = [0, 0, 0], sizes = [3, 24, 32], strides = [1, 1, 1]} : vector<3x26x32xf32> to vector<3x24x32xf32>
    %12 = vector.extract_strided_slice %10 {offsets = [0, 1, 0], sizes = [3, 24, 32], strides = [1, 1, 1]} : vector<3x26x32xf32> to vector<3x24x32xf32>
    %13 = vector.extract_strided_slice %10 {offsets = [0, 2, 0], sizes = [3, 24, 32], strides = [1, 1, 1]} : vector<3x26x32xf32> to vector<3x24x32xf32>
    %14 = tpu.concatenate %11, %12, %13 in 2 : vector<3x24x32xf32>, vector<3x24x32xf32>, vector<3x24x32xf32> -> vector<3x24x96xf32>
    "tpu.trace_start"() <{level = 10 : i32, message = "ntc,cd->ntd"}> : () -> ()
    %cst_11 = arith.constant dense<0.000000e+00> : vector<3x24x32xf32>
    %15 = tpu.matmul %14, %7, %cst_11 {dimension_numbers = #tpu.dot_dimension_numbers<[2], [0], [0, 1], [1], [0, 0, 0, 1, 1, 1], [], []>} : vector<3x24x96xf32>, vector<96x32xf32>, vector<3x24x32xf32> -> vector<3x24x32xf32>
    "tpu.trace_stop"() : () -> ()
    %16 = vector.shape_cast %8 : vector<1x32xf32> to vector<1x1x32xf32>
    %17 = vector.broadcast %16 : vector<1x1x32xf32> to vector<3x24x32xf32>
    %18 = arith.addf %15, %17 : vector<3x24x32xf32>
    %cst_12 = arith.constant 0.000000e+00 : f32
    %19 = vector.broadcast %cst_12 : f32 to vector<3x24x32xf32>
    %20 = arith.maximumf %18, %19 : vector<3x24x32xf32>
    %21 = arith.addf %20, %6 : vector<3x24x32xf32>
    %cst_13 = arith.constant 0.000000e+00 : f32
    %22 = vector.broadcast %cst_13 : f32 to vector<3x24x32xf32>
    %23 = arith.maximumf %21, %22 : vector<3x24x32xf32>
    %c0_14 = arith.constant 0 : index
    %c0_15 = arith.constant 0 : index
    %24 = vector.load %arg6[%c0_14, %c0_15] : memref<96x32xf32, #tpu.memory_space<vmem>>, vector<96x32xf32>
    %c0_16 = arith.constant 0 : index
    %c0_17 = arith.constant 0 : index
    %25 = vector.load %arg7[%c0_16, %c0_17] : memref<1x32xf32, #tpu.memory_space<vmem>>, vector<1x32xf32>
    %cst_18 = arith.constant 0.000000e+00 : f32
    %26 = vector.broadcast %cst_18 : f32 to vector<3x4x32xf32>
    %27 = tpu.concatenate %26, %23 in 1 : vector<3x4x32xf32>, vector<3x24x32xf32> -> vector<3x28x32xf32>
    %28 = vector.extract_strided_slice %27 {offsets = [0, 0, 0], sizes = [3, 24, 32], strides = [1, 1, 1]} : vector<3x28x32xf32> to vector<3x24x32xf32>
    %29 = vector.extract_strided_slice %27 {offsets = [0, 2, 0], sizes = [3, 24, 32], strides = [1, 1, 1]} : vector<3x28x32xf32> to vector<3x24x32xf32>
    %30 = vector.extract_strided_slice %27 {offsets = [0, 4, 0], sizes = [3, 24, 32], strides = [1, 1, 1]} : vector<3x28x32xf32> to vector<3x24x32xf32>
    %31 = tpu.concatenate %28, %29, %30 in 2 : vector<3x24x32xf32>, vector<3x24x32xf32>, vector<3x24x32xf32> -> vector<3x24x96xf32>
    "tpu.trace_start"() <{level = 10 : i32, message = "ntc,cd->ntd"}> : () -> ()
    %cst_19 = arith.constant dense<0.000000e+00> : vector<3x24x32xf32>
    %32 = tpu.matmul %31, %24, %cst_19 {dimension_numbers = #tpu.dot_dimension_numbers<[2], [0], [0, 1], [1], [0, 0, 0, 1, 1, 1], [], []>} : vector<3x24x96xf32>, vector<96x32xf32>, vector<3x24x32xf32> -> vector<3x24x32xf32>
    "tpu.trace_stop"() : () -> ()
    %33 = vector.shape_cast %25 : vector<1x32xf32> to vector<1x1x32xf32>
    %34 = vector.broadcast %33 : vector<1x1x32xf32> to vector<3x24x32xf32>
    %35 = arith.addf %32, %34 : vector<3x24x32xf32>
    %cst_20 = arith.constant 0.000000e+00 : f32
    %36 = vector.broadcast %cst_20 : f32 to vector<3x24x32xf32>
    %37 = arith.maximumf %35, %36 : vector<3x24x32xf32>
    %38 = arith.addf %37, %23 : vector<3x24x32xf32>
    %cst_21 = arith.constant 0.000000e+00 : f32
    %39 = vector.broadcast %cst_21 : f32 to vector<3x24x32xf32>
    %40 = arith.maximumf %38, %39 : vector<3x24x32xf32>
    %c0_22 = arith.constant 0 : index
    %c0_23 = arith.constant 0 : index
    %c0_24 = arith.constant 0 : index
    %41 = vector.load %arg8[%c0_22, %c0_23, %c0_24] : memref<3x24x32xf32, #tpu.memory_space<vmem>>, vector<3x24x32xf32>
    tpu.vector_store %arg8[%c0_22, %c0_23, %c0_24], %40 {strides = array<i32>} : memref<3x24x32xf32, #tpu.memory_space<vmem>>, vector<3x24x32xf32>,
    return
  }
  func.func @transform_0(%arg0: i32) -> (i32, i32, i32) {
    %c0_i32 = arith.constant 0 : i32
    %c0_i32_0 = arith.constant 0 : i32
    %c0_i32_1 = arith.constant 0 : i32
    return %arg0, %c0_i32, %c0_i32_0 : i32, i32, i32
  }
  func.func @transform_1(%arg0: i32) -> (i32, i32) {
    %c0_i32 = arith.constant 0 : i32
    %c0_i32_0 = arith.constant 0 : i32
    %c0_i32_1 = arith.constant 0 : i32
    return %c0_i32, %c0_i32_0 : i32, i32
  }
  func.func @transform_2(%arg0: i32) -> (i32, i32) {
    %c0_i32 = arith.constant 0 : i32
    %c0_i32_0 = arith.constant 0 : i32
    %c0_i32_1 = arith.constant 0 : i32
    return %c0_i32, %c0_i32_0 : i32, i32
  }
  func.func @transform_3(%arg0: i32) -> (i32, i32) {
    %c0_i32 = arith.constant 0 : i32
    %c0_i32_0 = arith.constant 0 : i32
    %c0_i32_1 = arith.constant 0 : i32
    return %c0_i32, %c0_i32_0 : i32, i32
  }
  func.func @transform_4(%arg0: i32) -> (i32, i32) {
    %c0_i32 = arith.constant 0 : i32
    %c0_i32_0 = arith.constant 0 : i32
    %c0_i32_1 = arith.constant 0 : i32
    return %c0_i32, %c0_i32_0 : i32, i32
  }
  func.func @transform_5(%arg0: i32) -> (i32, i32) {
    %c0_i32 = arith.constant 0 : i32
    %c0_i32_0 = arith.constant 0 : i32
    %c0_i32_1 = arith.constant 0 : i32
    return %c0_i32, %c0_i32_0 : i32, i32
  }
  func.func @transform_6(%arg0: i32) -> (i32, i32) {
    %c0_i32 = arith.constant 0 : i32
    %c0_i32_0 = arith.constant 0 : i32
    %c0_i32_1 = arith.constant 0 : i32
    return %c0_i32, %c0_i32_0 : i32, i32
  }
  func.func @transform_7(%arg0: i32) -> (i32, i32, i32) {
    %c0_i32 = arith.constant 0 : i32
    %c0_i32_0 = arith.constant 0 : i32
    %c0_i32_1 = arith.constant 0 : i32
    return %arg0, %c0_i32, %c0_i32_0 : i32, i32, i32
  }
}

module attributes {stable_mosaic.version = 11 : i64} {
  func.func @_decoder_fused_kernel(%arg0: i32, %arg1: memref<3x2x32xf32, #tpu.memory_space<vmem>>, %arg2: memref<32x32xf32, #tpu.memory_space<vmem>>, %arg3: memref<1x32xf32, #tpu.memory_space<vmem>>, %arg4: memref<1x32xf32, #tpu.memory_space<vmem>>, %arg5: memref<1x32xf32, #tpu.memory_space<vmem>>, %arg6: memref<32x32xf32, #tpu.memory_space<vmem>>, %arg7: memref<1x32xf32, #tpu.memory_space<vmem>>, %arg8: memref<32x64xf32, #tpu.memory_space<vmem>>, %arg9: memref<1x1x64xf32, #tpu.memory_space<vmem>>, %arg10: memref<32x32xf32, #tpu.memory_space<vmem>>, %arg11: memref<1x32xf32, #tpu.memory_space<vmem>>, %arg12: memref<1x32xf32, #tpu.memory_space<vmem>>, %arg13: memref<1x32xf32, #tpu.memory_space<vmem>>, %arg14: memref<32x64xf32, #tpu.memory_space<vmem>>, %arg15: memref<1x64xf32, #tpu.memory_space<vmem>>, %arg16: memref<64x32xf32, #tpu.memory_space<vmem>>, %arg17: memref<1x32xf32, #tpu.memory_space<vmem>>, %arg18: memref<1x32xf32, #tpu.memory_space<vmem>>, %arg19: memref<1x32xf32, #tpu.memory_space<vmem>>, %arg20: memref<3x1x32xf32, #tpu.memory_space<vmem>>) attributes {dimension_semantics = [#tpu.dimension_semantics<parallel>], iteration_bounds = array<i64: 2>, scalar_prefetch = 0 : i64, scratch_operands = 0 : i64, tpu.core_type = #tpu.core_type<tc>, window_params = [{transform_indices = @transform_0, window_bounds = array<i64: 3, 2, 32>}, {pipeline_mode = #tpu.pipeline_mode<synchronous>, transform_indices = @transform_1, window_bounds = array<i64: 32, 32>}, {pipeline_mode = #tpu.pipeline_mode<synchronous>, transform_indices = @transform_2, window_bounds = array<i64: 1, 32>}, {pipeline_mode = #tpu.pipeline_mode<synchronous>, transform_indices = @transform_3, window_bounds = array<i64: 1, 32>}, {pipeline_mode = #tpu.pipeline_mode<synchronous>, transform_indices = @transform_4, window_bounds = array<i64: 1, 32>}, {pipeline_mode = #tpu.pipeline_mode<synchronous>, transform_indices = @transform_5, window_bounds = array<i64: 32, 32>}, {pipeline_mode = #tpu.pipeline_mode<synchronous>, transform_indices = @transform_6, window_bounds = array<i64: 1, 32>}, {pipeline_mode = #tpu.pipeline_mode<synchronous>, transform_indices = @transform_7, window_bounds = array<i64: 32, 64>}, {pipeline_mode = #tpu.pipeline_mode<synchronous>, transform_indices = @transform_8, window_bounds = array<i64: 1, 1, 64>}, {pipeline_mode = #tpu.pipeline_mode<synchronous>, transform_indices = @transform_9, window_bounds = array<i64: 32, 32>}, {pipeline_mode = #tpu.pipeline_mode<synchronous>, transform_indices = @transform_10, window_bounds = array<i64: 1, 32>}, {pipeline_mode = #tpu.pipeline_mode<synchronous>, transform_indices = @transform_11, window_bounds = array<i64: 1, 32>}, {pipeline_mode = #tpu.pipeline_mode<synchronous>, transform_indices = @transform_12, window_bounds = array<i64: 1, 32>}, {pipeline_mode = #tpu.pipeline_mode<synchronous>, transform_indices = @transform_13, window_bounds = array<i64: 32, 64>}, {pipeline_mode = #tpu.pipeline_mode<synchronous>, transform_indices = @transform_14, window_bounds = array<i64: 1, 64>}, {pipeline_mode = #tpu.pipeline_mode<synchronous>, transform_indices = @transform_15, window_bounds = array<i64: 64, 32>}, {pipeline_mode = #tpu.pipeline_mode<synchronous>, transform_indices = @transform_16, window_bounds = array<i64: 1, 32>}, {pipeline_mode = #tpu.pipeline_mode<synchronous>, transform_indices = @transform_17, window_bounds = array<i64: 1, 32>}, {pipeline_mode = #tpu.pipeline_mode<synchronous>, transform_indices = @transform_18, window_bounds = array<i64: 1, 32>}, {transform_indices = @transform_19, window_bounds = array<i64: 3, 1, 32>}]} {
    %c0 = arith.constant 0 : index
    %c0_0 = arith.constant 0 : index
    %c0_1 = arith.constant 0 : index
    %0 = vector.load %arg1[%c0, %c0_0, %c0_1] : memref<3x2x32xf32, #tpu.memory_space<vmem>>, vector<3x2x32xf32>
    %1 = vector.extract_strided_slice %0 {offsets = [0, 1, 0], sizes = [3, 1, 32], strides = [1, 1, 1]} : vector<3x2x32xf32> to vector<3x1x32xf32>
    %2 = vector.shape_cast %1 : vector<3x1x32xf32> to vector<3x32xf32>
    %c0_2 = arith.constant 0 : index
    %c0_3 = arith.constant 0 : index
    %3 = vector.load %arg2[%c0_2, %c0_3] : memref<32x32xf32, #tpu.memory_space<vmem>>, vector<32x32xf32>
    %cst = arith.constant dense<0.000000e+00> : vector<3x32xf32>
    %4 = tpu.matmul %2, %3, %cst {dimension_numbers = #tpu.dot_dimension_numbers<[1], [0], [0], [1], [0, 0, 1, 1], [], []>} : vector<3x32xf32>, vector<32x32xf32>, vector<3x32xf32> -> vector<3x32xf32>
    %c0_4 = arith.constant 0 : index
    %c0_5 = arith.constant 0 : index
    %5 = vector.load %arg3[%c0_4, %c0_5] : memref<1x32xf32, #tpu.memory_space<vmem>>, vector<1x32xf32>
    %6 = vector.broadcast %5 : vector<1x32xf32> to vector<3x32xf32>
    %7 = arith.addf %4, %6 : vector<3x32xf32>
    %8 = arith.addf %2, %7 : vector<3x32xf32>
    %c0_6 = arith.constant 0 : index
    %c0_7 = arith.constant 0 : index
    %9 = vector.load %arg4[%c0_6, %c0_7] : memref<1x32xf32, #tpu.memory_space<vmem>>, vector<1x32xf32>
    %c0_8 = arith.constant 0 : index
    %c0_9 = arith.constant 0 : index
    %10 = vector.load %arg5[%c0_8, %c0_9] : memref<1x32xf32, #tpu.memory_space<vmem>>, vector<1x32xf32>
    %cst_10 = arith.constant dense<0.000000e+00> : vector<3xf32>
    %11 = vector.multi_reduction <add>, %8, %cst_10 [1] : vector<3x32xf32> to vector<3xf32>
    %12 = vector.shape_cast %11 : vector<3xf32> to vector<3x1xf32>
    %cst_11 = arith.constant 3.200000e+01 : f32
    %13 = vector.broadcast %cst_11 : f32 to vector<3x1xf32>
    %14 = arith.divf %12, %13 : vector<3x1xf32>
    %15 = vector.broadcast %14 : vector<3x1xf32> to vector<3x32xf32>
    %16 = arith.subf %8, %15 : vector<3x32xf32>
    %17 = arith.mulf %16, %16 : vector<3x32xf32>
    %cst_12 = arith.constant dense<0.000000e+00> : vector<3xf32>
    %18 = vector.multi_reduction <add>, %17, %cst_12 [1] : vector<3x32xf32> to vector<3xf32>
    %19 = vector.shape_cast %18 : vector<3xf32> to vector<3x1xf32>
    %cst_13 = arith.constant 3.200000e+01 : f32
    %20 = vector.broadcast %cst_13 : f32 to vector<3x1xf32>
    %21 = arith.divf %19, %20 : vector<3x1xf32>
    %22 = vector.broadcast %14 : vector<3x1xf32> to vector<3x32xf32>
    %23 = arith.subf %8, %22 : vector<3x32xf32>
    %cst_14 = arith.constant 9.99999974E-6 : f32
    %24 = vector.broadcast %cst_14 : f32 to vector<3x1xf32>
    %25 = arith.addf %21, %24 : vector<3x1xf32>
    %26 = math.rsqrt %25 : vector<3x1xf32>
    %27 = vector.broadcast %26 : vector<3x1xf32> to vector<3x32xf32>
    %28 = arith.mulf %23, %27 : vector<3x32xf32>
    %29 = vector.broadcast %9 : vector<1x32xf32> to vector<3x32xf32>
    %30 = arith.mulf %28, %29 : vector<3x32xf32>
    %31 = vector.broadcast %10 : vector<1x32xf32> to vector<3x32xf32>
    %32 = arith.addf %30, %31 : vector<3x32xf32>
    %c0_15 = arith.constant 0 : index
    %c0_16 = arith.constant 0 : index
    %33 = vector.load %arg6[%c0_15, %c0_16] : memref<32x32xf32, #tpu.memory_space<vmem>>, vector<32x32xf32>
    %cst_17 = arith.constant dense<0.000000e+00> : vector<3x32xf32>
    %34 = tpu.matmul %32, %33, %cst_17 {dimension_numbers = #tpu.dot_dimension_numbers<[1], [0], [0], [1], [0, 0, 1, 1], [], []>} : vector<3x32xf32>, vector<32x32xf32>, vector<3x32xf32> -> vector<3x32xf32>
    %c0_18 = arith.constant 0 : index
    %c0_19 = arith.constant 0 : index
    %35 = vector.load %arg7[%c0_18, %c0_19] : memref<1x32xf32, #tpu.memory_space<vmem>>, vector<1x32xf32>
    %36 = vector.broadcast %35 : vector<1x32xf32> to vector<3x32xf32>
    %37 = arith.addf %34, %36 : vector<3x32xf32>
    %c0_20 = arith.constant 0 : index
    %c0_21 = arith.constant 0 : index
    %38 = vector.load %arg8[%c0_20, %c0_21] : memref<32x64xf32, #tpu.memory_space<vmem>>, vector<32x64xf32>
    "tpu.trace_start"() <{level = 10 : i32, message = "nsd,de->nse"}> : () -> ()
    %cst_22 = arith.constant dense<0.000000e+00> : vector<3x2x64xf32>
    %39 = tpu.matmul %0, %38, %cst_22 {dimension_numbers = #tpu.dot_dimension_numbers<[2], [0], [0, 1], [1], [0, 0, 0, 1, 1, 1], [], []>} : vector<3x2x32xf32>, vector<32x64xf32>, vector<3x2x64xf32> -> vector<3x2x64xf32>
    "tpu.trace_stop"() : () -> ()
    %c0_23 = arith.constant 0 : index
    %c0_24 = arith.constant 0 : index
    %c0_25 = arith.constant 0 : index
    %40 = vector.load %arg9[%c0_23, %c0_24, %c0_25] : memref<1x1x64xf32, #tpu.memory_space<vmem>>, vector<1x1x64xf32>
    %41 = vector.broadcast %40 : vector<1x1x64xf32> to vector<3x2x64xf32>
    %42 = arith.addf %39, %41 : vector<3x2x64xf32>
    %43 = vector.extract_strided_slice %42 {offsets = [0, 0, 0], sizes = [3, 2, 32], strides = [1, 1, 1]} : vector<3x2x64xf32> to vector<3x2x32xf32>
    %44 = vector.extract_strided_slice %42 {offsets = [0, 0, 32], sizes = [3, 2, 32], strides = [1, 1, 1]} : vector<3x2x64xf32> to vector<3x2x32xf32>
    %45 = vector.shape_cast %37 : vector<3x32xf32> to vector<3x1x32xf32>
    "tpu.trace_start"() <{level = 10 : i32, message = "nud,nsd->nus"}> : () -> ()
    %cst_26 = arith.constant dense<0.000000e+00> : vector<3x1x2xf32>
    %46 = tpu.matmul %45, %43, %cst_26 {dimension_numbers = #tpu.dot_dimension_numbers<[2], [2], [1], [1], [0, 0, 0, 1, 1, 1], [0], [0]>} : vector<3x1x32xf32>, vector<3x2x32xf32>, vector<3x1x2xf32> -> vector<3x1x2xf32>
    "tpu.trace_stop"() : () -> ()
    %cst_27 = arith.constant 0.176776692 : f32
    %47 = vector.broadcast %cst_27 : f32 to vector<3x1x2xf32>
    %48 = arith.mulf %46, %47 : vector<3x1x2xf32>
    %cst_28 = arith.constant dense<0xFF800000> : vector<3x1xf32>
    %49 = vector.multi_reduction <maximumf>, %48, %cst_28 [2] : vector<3x1x2xf32> to vector<3x1xf32>
    %50 = vector.shape_cast %49 : vector<3x1xf32> to vector<3x1x1xf32>
    %51 = vector.broadcast %50 : vector<3x1x1xf32> to vector<3x1x2xf32>
    %52 = arith.subf %48, %51 : vector<3x1x2xf32>
    %53 = math.exp %52 : vector<3x1x2xf32>
    %cst_29 = arith.constant dense<0.000000e+00> : vector<3x1xf32>
    %54 = vector.multi_reduction <add>, %53, %cst_29 [2] : vector<3x1x2xf32> to vector<3x1xf32>
    %55 = vector.shape_cast %54 : vector<3x1xf32> to vector<3x1x1xf32>
    %56 = vector.broadcast %55 : vector<3x1x1xf32> to vector<3x1x2xf32>
    %57 = arith.divf %53, %56 : vector<3x1x2xf32>
    "tpu.trace_start"() <{level = 10 : i32, message = "nus,nsd->nud"}> : () -> ()
    %cst_30 = arith.constant dense<0.000000e+00> : vector<3x1x32xf32>
    %58 = tpu.matmul %57, %44, %cst_30 {dimension_numbers = #tpu.dot_dimension_numbers<[2], [1], [1], [2], [0, 0, 0, 1, 1, 2], [0], [0]>} : vector<3x1x2xf32>, vector<3x2x32xf32>, vector<3x1x32xf32> -> vector<3x1x32xf32>
    "tpu.trace_stop"() : () -> ()
    %59 = vector.shape_cast %58 : vector<3x1x32xf32> to vector<3x32xf32>
    %c0_31 = arith.constant 0 : index
    %c0_32 = arith.constant 0 : index
    %60 = vector.load %arg10[%c0_31, %c0_32] : memref<32x32xf32, #tpu.memory_space<vmem>>, vector<32x32xf32>
    %cst_33 = arith.constant dense<0.000000e+00> : vector<3x32xf32>
    %61 = tpu.matmul %59, %60, %cst_33 {dimension_numbers = #tpu.dot_dimension_numbers<[1], [0], [0], [1], [0, 0, 1, 1], [], []>} : vector<3x32xf32>, vector<32x32xf32>, vector<3x32xf32> -> vector<3x32xf32>
    %c0_34 = arith.constant 0 : index
    %c0_35 = arith.constant 0 : index
    %62 = vector.load %arg11[%c0_34, %c0_35] : memref<1x32xf32, #tpu.memory_space<vmem>>, vector<1x32xf32>
    %63 = vector.broadcast %62 : vector<1x32xf32> to vector<3x32xf32>
    %64 = arith.addf %61, %63 : vector<3x32xf32>
    %65 = arith.addf %32, %64 : vector<3x32xf32>
    %c0_36 = arith.constant 0 : index
    %c0_37 = arith.constant 0 : index
    %66 = vector.load %arg12[%c0_36, %c0_37] : memref<1x32xf32, #tpu.memory_space<vmem>>, vector<1x32xf32>
    %c0_38 = arith.constant 0 : index
    %c0_39 = arith.constant 0 : index
    %67 = vector.load %arg13[%c0_38, %c0_39] : memref<1x32xf32, #tpu.memory_space<vmem>>, vector<1x32xf32>
    %cst_40 = arith.constant dense<0.000000e+00> : vector<3xf32>
    %68 = vector.multi_reduction <add>, %65, %cst_40 [1] : vector<3x32xf32> to vector<3xf32>
    %69 = vector.shape_cast %68 : vector<3xf32> to vector<3x1xf32>
    %cst_41 = arith.constant 3.200000e+01 : f32
    %70 = vector.broadcast %cst_41 : f32 to vector<3x1xf32>
    %71 = arith.divf %69, %70 : vector<3x1xf32>
    %72 = vector.broadcast %71 : vector<3x1xf32> to vector<3x32xf32>
    %73 = arith.subf %65, %72 : vector<3x32xf32>
    %74 = arith.mulf %73, %73 : vector<3x32xf32>
    %cst_42 = arith.constant dense<0.000000e+00> : vector<3xf32>
    %75 = vector.multi_reduction <add>, %74, %cst_42 [1] : vector<3x32xf32> to vector<3xf32>
    %76 = vector.shape_cast %75 : vector<3xf32> to vector<3x1xf32>
    %cst_43 = arith.constant 3.200000e+01 : f32
    %77 = vector.broadcast %cst_43 : f32 to vector<3x1xf32>
    %78 = arith.divf %76, %77 : vector<3x1xf32>
    %79 = vector.broadcast %71 : vector<3x1xf32> to vector<3x32xf32>
    %80 = arith.subf %65, %79 : vector<3x32xf32>
    %cst_44 = arith.constant 9.99999974E-6 : f32
    %81 = vector.broadcast %cst_44 : f32 to vector<3x1xf32>
    %82 = arith.addf %78, %81 : vector<3x1xf32>
    %83 = math.rsqrt %82 : vector<3x1xf32>
    %84 = vector.broadcast %83 : vector<3x1xf32> to vector<3x32xf32>
    %85 = arith.mulf %80, %84 : vector<3x32xf32>
    %86 = vector.broadcast %66 : vector<1x32xf32> to vector<3x32xf32>
    %87 = arith.mulf %85, %86 : vector<3x32xf32>
    %88 = vector.broadcast %67 : vector<1x32xf32> to vector<3x32xf32>
    %89 = arith.addf %87, %88 : vector<3x32xf32>
    %c0_45 = arith.constant 0 : index
    %c0_46 = arith.constant 0 : index
    %90 = vector.load %arg14[%c0_45, %c0_46] : memref<32x64xf32, #tpu.memory_space<vmem>>, vector<32x64xf32>
    %cst_47 = arith.constant dense<0.000000e+00> : vector<3x64xf32>
    %91 = tpu.matmul %89, %90, %cst_47 {dimension_numbers = #tpu.dot_dimension_numbers<[1], [0], [0], [1], [0, 0, 1, 1], [], []>} : vector<3x32xf32>, vector<32x64xf32>, vector<3x64xf32> -> vector<3x64xf32>
    %c0_48 = arith.constant 0 : index
    %c0_49 = arith.constant 0 : index
    %92 = vector.load %arg15[%c0_48, %c0_49] : memref<1x64xf32, #tpu.memory_space<vmem>>, vector<1x64xf32>
    %93 = vector.broadcast %92 : vector<1x64xf32> to vector<3x64xf32>
    %94 = arith.addf %91, %93 : vector<3x64xf32>
    %cst_50 = arith.constant 0.000000e+00 : f32
    %95 = vector.broadcast %cst_50 : f32 to vector<3x64xf32>
    %96 = arith.maximumf %94, %95 : vector<3x64xf32>
    %c0_51 = arith.constant 0 : index
    %c0_52 = arith.constant 0 : index
    %97 = vector.load %arg16[%c0_51, %c0_52] : memref<64x32xf32, #tpu.memory_space<vmem>>, vector<64x32xf32>
    %cst_53 = arith.constant dense<0.000000e+00> : vector<3x32xf32>
    %98 = tpu.matmul %96, %97, %cst_53 {dimension_numbers = #tpu.dot_dimension_numbers<[1], [0], [0], [1], [0, 0, 1, 1], [], []>} : vector<3x64xf32>, vector<64x32xf32>, vector<3x32xf32> -> vector<3x32xf32>
    %c0_54 = arith.constant 0 : index
    %c0_55 = arith.constant 0 : index
    %99 = vector.load %arg17[%c0_54, %c0_55] : memref<1x32xf32, #tpu.memory_space<vmem>>, vector<1x32xf32>
    %100 = vector.broadcast %99 : vector<1x32xf32> to vector<3x32xf32>
    %101 = arith.addf %98, %100 : vector<3x32xf32>
    %102 = arith.addf %89, %101 : vector<3x32xf32>
    %c0_56 = arith.constant 0 : index
    %c0_57 = arith.constant 0 : index
    %103 = vector.load %arg18[%c0_56, %c0_57] : memref<1x32xf32, #tpu.memory_space<vmem>>, vector<1x32xf32>
    %c0_58 = arith.constant 0 : index
    %c0_59 = arith.constant 0 : index
    %104 = vector.load %arg19[%c0_58, %c0_59] : memref<1x32xf32, #tpu.memory_space<vmem>>, vector<1x32xf32>
    %cst_60 = arith.constant dense<0.000000e+00> : vector<3xf32>
    %105 = vector.multi_reduction <add>, %102, %cst_60 [1] : vector<3x32xf32> to vector<3xf32>
    %106 = vector.shape_cast %105 : vector<3xf32> to vector<3x1xf32>
    %cst_61 = arith.constant 3.200000e+01 : f32
    %107 = vector.broadcast %cst_61 : f32 to vector<3x1xf32>
    %108 = arith.divf %106, %107 : vector<3x1xf32>
    %109 = vector.broadcast %108 : vector<3x1xf32> to vector<3x32xf32>
    %110 = arith.subf %102, %109 : vector<3x32xf32>
    %111 = arith.mulf %110, %110 : vector<3x32xf32>
    %cst_62 = arith.constant dense<0.000000e+00> : vector<3xf32>
    %112 = vector.multi_reduction <add>, %111, %cst_62 [1] : vector<3x32xf32> to vector<3xf32>
    %113 = vector.shape_cast %112 : vector<3xf32> to vector<3x1xf32>
    %cst_63 = arith.constant 3.200000e+01 : f32
    %114 = vector.broadcast %cst_63 : f32 to vector<3x1xf32>
    %115 = arith.divf %113, %114 : vector<3x1xf32>
    %116 = vector.broadcast %108 : vector<3x1xf32> to vector<3x32xf32>
    %117 = arith.subf %102, %116 : vector<3x32xf32>
    %cst_64 = arith.constant 9.99999974E-6 : f32
    %118 = vector.broadcast %cst_64 : f32 to vector<3x1xf32>
    %119 = arith.addf %115, %118 : vector<3x1xf32>
    %120 = math.rsqrt %119 : vector<3x1xf32>
    %121 = vector.broadcast %120 : vector<3x1xf32> to vector<3x32xf32>
    %122 = arith.mulf %117, %121 : vector<3x32xf32>
    %123 = vector.broadcast %103 : vector<1x32xf32> to vector<3x32xf32>
    %124 = arith.mulf %122, %123 : vector<3x32xf32>
    %125 = vector.broadcast %104 : vector<1x32xf32> to vector<3x32xf32>
    %126 = arith.addf %124, %125 : vector<3x32xf32>
    %127 = vector.shape_cast %126 : vector<3x32xf32> to vector<3x1x32xf32>
    %c0_65 = arith.constant 0 : index
    %c0_66 = arith.constant 0 : index
    %c0_67 = arith.constant 0 : index
    %128 = vector.load %arg20[%c0_65, %c0_66, %c0_67] : memref<3x1x32xf32, #tpu.memory_space<vmem>>, vector<3x1x32xf32>
    tpu.vector_store %arg20[%c0_65, %c0_66, %c0_67], %127 {strides = array<i32>} : memref<3x1x32xf32, #tpu.memory_space<vmem>>, vector<3x1x32xf32>,
    return
  }
  func.func @transform_0(%arg0: i32) -> (i32, i32, i32) {
    %c0_i32 = arith.constant 0 : i32
    %c0_i32_0 = arith.constant 0 : i32
    %c0_i32_1 = arith.constant 0 : i32
    return %arg0, %c0_i32, %c0_i32_0 : i32, i32, i32
  }
  func.func @transform_1(%arg0: i32) -> (i32, i32) {
    %c0_i32 = arith.constant 0 : i32
    %c0_i32_0 = arith.constant 0 : i32
    %c0_i32_1 = arith.constant 0 : i32
    return %c0_i32, %c0_i32_0 : i32, i32
  }
  func.func @transform_2(%arg0: i32) -> (i32, i32) {
    %c0_i32 = arith.constant 0 : i32
    %c0_i32_0 = arith.constant 0 : i32
    %c0_i32_1 = arith.constant 0 : i32
    return %c0_i32, %c0_i32_0 : i32, i32
  }
  func.func @transform_3(%arg0: i32) -> (i32, i32) {
    %c0_i32 = arith.constant 0 : i32
    %c0_i32_0 = arith.constant 0 : i32
    %c0_i32_1 = arith.constant 0 : i32
    return %c0_i32, %c0_i32_0 : i32, i32
  }
  func.func @transform_4(%arg0: i32) -> (i32, i32) {
    %c0_i32 = arith.constant 0 : i32
    %c0_i32_0 = arith.constant 0 : i32
    %c0_i32_1 = arith.constant 0 : i32
    return %c0_i32, %c0_i32_0 : i32, i32
  }
  func.func @transform_5(%arg0: i32) -> (i32, i32) {
    %c0_i32 = arith.constant 0 : i32
    %c0_i32_0 = arith.constant 0 : i32
    %c0_i32_1 = arith.constant 0 : i32
    return %c0_i32, %c0_i32_0 : i32, i32
  }
  func.func @transform_6(%arg0: i32) -> (i32, i32) {
    %c0_i32 = arith.constant 0 : i32
    %c0_i32_0 = arith.constant 0 : i32
    %c0_i32_1 = arith.constant 0 : i32
    return %c0_i32, %c0_i32_0 : i32, i32
  }
  func.func @transform_7(%arg0: i32) -> (i32, i32) {
    %c0_i32 = arith.constant 0 : i32
    %c0_i32_0 = arith.constant 0 : i32
    %c0_i32_1 = arith.constant 0 : i32
    return %c0_i32, %c0_i32_0 : i32, i32
  }
  func.func @transform_8(%arg0: i32) -> (i32, i32, i32) {
    %c0_i32 = arith.constant 0 : i32
    %c0_i32_0 = arith.constant 0 : i32
    %c0_i32_1 = arith.constant 0 : i32
    %c0_i32_2 = arith.constant 0 : i32
    return %c0_i32, %c0_i32_0, %c0_i32_1 : i32, i32, i32
  }
  func.func @transform_9(%arg0: i32) -> (i32, i32) {
    %c0_i32 = arith.constant 0 : i32
    %c0_i32_0 = arith.constant 0 : i32
    %c0_i32_1 = arith.constant 0 : i32
    return %c0_i32, %c0_i32_0 : i32, i32
  }
  func.func @transform_10(%arg0: i32) -> (i32, i32) {
    %c0_i32 = arith.constant 0 : i32
    %c0_i32_0 = arith.constant 0 : i32
    %c0_i32_1 = arith.constant 0 : i32
    return %c0_i32, %c0_i32_0 : i32, i32
  }
  func.func @transform_11(%arg0: i32) -> (i32, i32) {
    %c0_i32 = arith.constant 0 : i32
    %c0_i32_0 = arith.constant 0 : i32
    %c0_i32_1 = arith.constant 0 : i32
    return %c0_i32, %c0_i32_0 : i32, i32
  }
  func.func @transform_12(%arg0: i32) -> (i32, i32) {
    %c0_i32 = arith.constant 0 : i32
    %c0_i32_0 = arith.constant 0 : i32
    %c0_i32_1 = arith.constant 0 : i32
    return %c0_i32, %c0_i32_0 : i32, i32
  }
  func.func @transform_13(%arg0: i32) -> (i32, i32) {
    %c0_i32 = arith.constant 0 : i32
    %c0_i32_0 = arith.constant 0 : i32
    %c0_i32_1 = arith.constant 0 : i32
    return %c0_i32, %c0_i32_0 : i32, i32
  }
  func.func @transform_14(%arg0: i32) -> (i32, i32) {
    %c0_i32 = arith.constant 0 : i32
    %c0_i32_0 = arith.constant 0 : i32
    %c0_i32_1 = arith.constant 0 : i32
    return %c0_i32, %c0_i32_0 : i32, i32
  }
  func.func @transform_15(%arg0: i32) -> (i32, i32) {
    %c0_i32 = arith.constant 0 : i32
    %c0_i32_0 = arith.constant 0 : i32
    %c0_i32_1 = arith.constant 0 : i32
    return %c0_i32, %c0_i32_0 : i32, i32
  }
  func.func @transform_16(%arg0: i32) -> (i32, i32) {
    %c0_i32 = arith.constant 0 : i32
    %c0_i32_0 = arith.constant 0 : i32
    %c0_i32_1 = arith.constant 0 : i32
    return %c0_i32, %c0_i32_0 : i32, i32
  }
  func.func @transform_17(%arg0: i32) -> (i32, i32) {
    %c0_i32 = arith.constant 0 : i32
    %c0_i32_0 = arith.constant 0 : i32
    %c0_i32_1 = arith.constant 0 : i32
    return %c0_i32, %c0_i32_0 : i32, i32
  }
  func.func @transform_18(%arg0: i32) -> (i32, i32) {
    %c0_i32 = arith.constant 0 : i32
    %c0_i32_0 = arith.constant 0 : i32
    %c0_i32_1 = arith.constant 0 : i32
    return %c0_i32, %c0_i32_0 : i32, i32
  }
  func.func @transform_19(%arg0: i32) -> (i32, i32, i32) {
    %c0_i32 = arith.constant 0 : i32
    %c0_i32_0 = arith.constant 0 : i32
    %c0_i32_1 = arith.constant 0 : i32
    return %arg0, %c0_i32, %c0_i32_0 : i32, i32, i32
  }
}

module attributes {stable_mosaic.version = 11 : i64} {
  func.func @_decoder_fused_kernel(%arg0: i32, %arg1: memref<6x12x32xf32, #tpu.memory_space<vmem>>, %arg2: memref<32x32xf32, #tpu.memory_space<vmem>>, %arg3: memref<1x32xf32, #tpu.memory_space<vmem>>, %arg4: memref<1x32xf32, #tpu.memory_space<vmem>>, %arg5: memref<1x32xf32, #tpu.memory_space<vmem>>, %arg6: memref<32x32xf32, #tpu.memory_space<vmem>>, %arg7: memref<1x32xf32, #tpu.memory_space<vmem>>, %arg8: memref<32x64xf32, #tpu.memory_space<vmem>>, %arg9: memref<1x1x64xf32, #tpu.memory_space<vmem>>, %arg10: memref<32x32xf32, #tpu.memory_space<vmem>>, %arg11: memref<1x32xf32, #tpu.memory_space<vmem>>, %arg12: memref<1x32xf32, #tpu.memory_space<vmem>>, %arg13: memref<1x32xf32, #tpu.memory_space<vmem>>, %arg14: memref<32x64xf32, #tpu.memory_space<vmem>>, %arg15: memref<1x64xf32, #tpu.memory_space<vmem>>, %arg16: memref<64x32xf32, #tpu.memory_space<vmem>>, %arg17: memref<1x32xf32, #tpu.memory_space<vmem>>, %arg18: memref<1x32xf32, #tpu.memory_space<vmem>>, %arg19: memref<1x32xf32, #tpu.memory_space<vmem>>, %arg20: memref<6x1x32xf32, #tpu.memory_space<vmem>>) attributes {dimension_semantics = [#tpu.dimension_semantics<parallel>], iteration_bounds = array<i64: 2>, scalar_prefetch = 0 : i64, scratch_operands = 0 : i64, tpu.core_type = #tpu.core_type<tc>, window_params = [{transform_indices = @transform_0, window_bounds = array<i64: 6, 12, 32>}, {pipeline_mode = #tpu.pipeline_mode<synchronous>, transform_indices = @transform_1, window_bounds = array<i64: 32, 32>}, {pipeline_mode = #tpu.pipeline_mode<synchronous>, transform_indices = @transform_2, window_bounds = array<i64: 1, 32>}, {pipeline_mode = #tpu.pipeline_mode<synchronous>, transform_indices = @transform_3, window_bounds = array<i64: 1, 32>}, {pipeline_mode = #tpu.pipeline_mode<synchronous>, transform_indices = @transform_4, window_bounds = array<i64: 1, 32>}, {pipeline_mode = #tpu.pipeline_mode<synchronous>, transform_indices = @transform_5, window_bounds = array<i64: 32, 32>}, {pipeline_mode = #tpu.pipeline_mode<synchronous>, transform_indices = @transform_6, window_bounds = array<i64: 1, 32>}, {pipeline_mode = #tpu.pipeline_mode<synchronous>, transform_indices = @transform_7, window_bounds = array<i64: 32, 64>}, {pipeline_mode = #tpu.pipeline_mode<synchronous>, transform_indices = @transform_8, window_bounds = array<i64: 1, 1, 64>}, {pipeline_mode = #tpu.pipeline_mode<synchronous>, transform_indices = @transform_9, window_bounds = array<i64: 32, 32>}, {pipeline_mode = #tpu.pipeline_mode<synchronous>, transform_indices = @transform_10, window_bounds = array<i64: 1, 32>}, {pipeline_mode = #tpu.pipeline_mode<synchronous>, transform_indices = @transform_11, window_bounds = array<i64: 1, 32>}, {pipeline_mode = #tpu.pipeline_mode<synchronous>, transform_indices = @transform_12, window_bounds = array<i64: 1, 32>}, {pipeline_mode = #tpu.pipeline_mode<synchronous>, transform_indices = @transform_13, window_bounds = array<i64: 32, 64>}, {pipeline_mode = #tpu.pipeline_mode<synchronous>, transform_indices = @transform_14, window_bounds = array<i64: 1, 64>}, {pipeline_mode = #tpu.pipeline_mode<synchronous>, transform_indices = @transform_15, window_bounds = array<i64: 64, 32>}, {pipeline_mode = #tpu.pipeline_mode<synchronous>, transform_indices = @transform_16, window_bounds = array<i64: 1, 32>}, {pipeline_mode = #tpu.pipeline_mode<synchronous>, transform_indices = @transform_17, window_bounds = array<i64: 1, 32>}, {pipeline_mode = #tpu.pipeline_mode<synchronous>, transform_indices = @transform_18, window_bounds = array<i64: 1, 32>}, {transform_indices = @transform_19, window_bounds = array<i64: 6, 1, 32>}]} {
    %c0 = arith.constant 0 : index
    %c0_0 = arith.constant 0 : index
    %c0_1 = arith.constant 0 : index
    %0 = vector.load %arg1[%c0, %c0_0, %c0_1] : memref<6x12x32xf32, #tpu.memory_space<vmem>>, vector<6x12x32xf32>
    %1 = vector.extract_strided_slice %0 {offsets = [0, 11, 0], sizes = [6, 1, 32], strides = [1, 1, 1]} : vector<6x12x32xf32> to vector<6x1x32xf32>
    %2 = vector.shape_cast %1 : vector<6x1x32xf32> to vector<6x32xf32>
    %c0_2 = arith.constant 0 : index
    %c0_3 = arith.constant 0 : index
    %3 = vector.load %arg2[%c0_2, %c0_3] : memref<32x32xf32, #tpu.memory_space<vmem>>, vector<32x32xf32>
    %cst = arith.constant dense<0.000000e+00> : vector<6x32xf32>
    %4 = tpu.matmul %2, %3, %cst {dimension_numbers = #tpu.dot_dimension_numbers<[1], [0], [0], [1], [0, 0, 1, 1], [], []>} : vector<6x32xf32>, vector<32x32xf32>, vector<6x32xf32> -> vector<6x32xf32>
    %c0_4 = arith.constant 0 : index
    %c0_5 = arith.constant 0 : index
    %5 = vector.load %arg3[%c0_4, %c0_5] : memref<1x32xf32, #tpu.memory_space<vmem>>, vector<1x32xf32>
    %6 = vector.broadcast %5 : vector<1x32xf32> to vector<6x32xf32>
    %7 = arith.addf %4, %6 : vector<6x32xf32>
    %8 = arith.addf %2, %7 : vector<6x32xf32>
    %c0_6 = arith.constant 0 : index
    %c0_7 = arith.constant 0 : index
    %9 = vector.load %arg4[%c0_6, %c0_7] : memref<1x32xf32, #tpu.memory_space<vmem>>, vector<1x32xf32>
    %c0_8 = arith.constant 0 : index
    %c0_9 = arith.constant 0 : index
    %10 = vector.load %arg5[%c0_8, %c0_9] : memref<1x32xf32, #tpu.memory_space<vmem>>, vector<1x32xf32>
    %cst_10 = arith.constant dense<0.000000e+00> : vector<6xf32>
    %11 = vector.multi_reduction <add>, %8, %cst_10 [1] : vector<6x32xf32> to vector<6xf32>
    %12 = vector.shape_cast %11 : vector<6xf32> to vector<6x1xf32>
    %cst_11 = arith.constant 3.200000e+01 : f32
    %13 = vector.broadcast %cst_11 : f32 to vector<6x1xf32>
    %14 = arith.divf %12, %13 : vector<6x1xf32>
    %15 = vector.broadcast %14 : vector<6x1xf32> to vector<6x32xf32>
    %16 = arith.subf %8, %15 : vector<6x32xf32>
    %17 = arith.mulf %16, %16 : vector<6x32xf32>
    %cst_12 = arith.constant dense<0.000000e+00> : vector<6xf32>
    %18 = vector.multi_reduction <add>, %17, %cst_12 [1] : vector<6x32xf32> to vector<6xf32>
    %19 = vector.shape_cast %18 : vector<6xf32> to vector<6x1xf32>
    %cst_13 = arith.constant 3.200000e+01 : f32
    %20 = vector.broadcast %cst_13 : f32 to vector<6x1xf32>
    %21 = arith.divf %19, %20 : vector<6x1xf32>
    %22 = vector.broadcast %14 : vector<6x1xf32> to vector<6x32xf32>
    %23 = arith.subf %8, %22 : vector<6x32xf32>
    %cst_14 = arith.constant 9.99999974E-6 : f32
    %24 = vector.broadcast %cst_14 : f32 to vector<6x1xf32>
    %25 = arith.addf %21, %24 : vector<6x1xf32>
    %26 = math.rsqrt %25 : vector<6x1xf32>
    %27 = vector.broadcast %26 : vector<6x1xf32> to vector<6x32xf32>
    %28 = arith.mulf %23, %27 : vector<6x32xf32>
    %29 = vector.broadcast %9 : vector<1x32xf32> to vector<6x32xf32>
    %30 = arith.mulf %28, %29 : vector<6x32xf32>
    %31 = vector.broadcast %10 : vector<1x32xf32> to vector<6x32xf32>
    %32 = arith.addf %30, %31 : vector<6x32xf32>
    %c0_15 = arith.constant 0 : index
    %c0_16 = arith.constant 0 : index
    %33 = vector.load %arg6[%c0_15, %c0_16] : memref<32x32xf32, #tpu.memory_space<vmem>>, vector<32x32xf32>
    %cst_17 = arith.constant dense<0.000000e+00> : vector<6x32xf32>
    %34 = tpu.matmul %32, %33, %cst_17 {dimension_numbers = #tpu.dot_dimension_numbers<[1], [0], [0], [1], [0, 0, 1, 1], [], []>} : vector<6x32xf32>, vector<32x32xf32>, vector<6x32xf32> -> vector<6x32xf32>
    %c0_18 = arith.constant 0 : index
    %c0_19 = arith.constant 0 : index
    %35 = vector.load %arg7[%c0_18, %c0_19] : memref<1x32xf32, #tpu.memory_space<vmem>>, vector<1x32xf32>
    %36 = vector.broadcast %35 : vector<1x32xf32> to vector<6x32xf32>
    %37 = arith.addf %34, %36 : vector<6x32xf32>
    %c0_20 = arith.constant 0 : index
    %c0_21 = arith.constant 0 : index
    %38 = vector.load %arg8[%c0_20, %c0_21] : memref<32x64xf32, #tpu.memory_space<vmem>>, vector<32x64xf32>
    "tpu.trace_start"() <{level = 10 : i32, message = "nsd,de->nse"}> : () -> ()
    %cst_22 = arith.constant dense<0.000000e+00> : vector<6x12x64xf32>
    %39 = tpu.matmul %0, %38, %cst_22 {dimension_numbers = #tpu.dot_dimension_numbers<[2], [0], [0, 1], [1], [0, 0, 0, 1, 1, 1], [], []>} : vector<6x12x32xf32>, vector<32x64xf32>, vector<6x12x64xf32> -> vector<6x12x64xf32>
    "tpu.trace_stop"() : () -> ()
    %c0_23 = arith.constant 0 : index
    %c0_24 = arith.constant 0 : index
    %c0_25 = arith.constant 0 : index
    %40 = vector.load %arg9[%c0_23, %c0_24, %c0_25] : memref<1x1x64xf32, #tpu.memory_space<vmem>>, vector<1x1x64xf32>
    %41 = vector.broadcast %40 : vector<1x1x64xf32> to vector<6x12x64xf32>
    %42 = arith.addf %39, %41 : vector<6x12x64xf32>
    %43 = vector.extract_strided_slice %42 {offsets = [0, 0, 0], sizes = [6, 12, 32], strides = [1, 1, 1]} : vector<6x12x64xf32> to vector<6x12x32xf32>
    %44 = vector.extract_strided_slice %42 {offsets = [0, 0, 32], sizes = [6, 12, 32], strides = [1, 1, 1]} : vector<6x12x64xf32> to vector<6x12x32xf32>
    %45 = vector.shape_cast %37 : vector<6x32xf32> to vector<6x1x32xf32>
    "tpu.trace_start"() <{level = 10 : i32, message = "nud,nsd->nus"}> : () -> ()
    %cst_26 = arith.constant dense<0.000000e+00> : vector<6x1x12xf32>
    %46 = tpu.matmul %45, %43, %cst_26 {dimension_numbers = #tpu.dot_dimension_numbers<[2], [2], [1], [1], [0, 0, 0, 1, 1, 1], [0], [0]>} : vector<6x1x32xf32>, vector<6x12x32xf32>, vector<6x1x12xf32> -> vector<6x1x12xf32>
    "tpu.trace_stop"() : () -> ()
    %cst_27 = arith.constant 0.176776692 : f32
    %47 = vector.broadcast %cst_27 : f32 to vector<6x1x12xf32>
    %48 = arith.mulf %46, %47 : vector<6x1x12xf32>
    %cst_28 = arith.constant dense<0xFF800000> : vector<6x1xf32>
    %49 = vector.multi_reduction <maximumf>, %48, %cst_28 [2] : vector<6x1x12xf32> to vector<6x1xf32>
    %50 = vector.shape_cast %49 : vector<6x1xf32> to vector<6x1x1xf32>
    %51 = vector.broadcast %50 : vector<6x1x1xf32> to vector<6x1x12xf32>
    %52 = arith.subf %48, %51 : vector<6x1x12xf32>
    %53 = math.exp %52 : vector<6x1x12xf32>
    %cst_29 = arith.constant dense<0.000000e+00> : vector<6x1xf32>
    %54 = vector.multi_reduction <add>, %53, %cst_29 [2] : vector<6x1x12xf32> to vector<6x1xf32>
    %55 = vector.shape_cast %54 : vector<6x1xf32> to vector<6x1x1xf32>
    %56 = vector.broadcast %55 : vector<6x1x1xf32> to vector<6x1x12xf32>
    %57 = arith.divf %53, %56 : vector<6x1x12xf32>
    "tpu.trace_start"() <{level = 10 : i32, message = "nus,nsd->nud"}> : () -> ()
    %cst_30 = arith.constant dense<0.000000e+00> : vector<6x1x32xf32>
    %58 = tpu.matmul %57, %44, %cst_30 {dimension_numbers = #tpu.dot_dimension_numbers<[2], [1], [1], [2], [0, 0, 0, 1, 1, 2], [0], [0]>} : vector<6x1x12xf32>, vector<6x12x32xf32>, vector<6x1x32xf32> -> vector<6x1x32xf32>
    "tpu.trace_stop"() : () -> ()
    %59 = vector.shape_cast %58 : vector<6x1x32xf32> to vector<6x32xf32>
    %c0_31 = arith.constant 0 : index
    %c0_32 = arith.constant 0 : index
    %60 = vector.load %arg10[%c0_31, %c0_32] : memref<32x32xf32, #tpu.memory_space<vmem>>, vector<32x32xf32>
    %cst_33 = arith.constant dense<0.000000e+00> : vector<6x32xf32>
    %61 = tpu.matmul %59, %60, %cst_33 {dimension_numbers = #tpu.dot_dimension_numbers<[1], [0], [0], [1], [0, 0, 1, 1], [], []>} : vector<6x32xf32>, vector<32x32xf32>, vector<6x32xf32> -> vector<6x32xf32>
    %c0_34 = arith.constant 0 : index
    %c0_35 = arith.constant 0 : index
    %62 = vector.load %arg11[%c0_34, %c0_35] : memref<1x32xf32, #tpu.memory_space<vmem>>, vector<1x32xf32>
    %63 = vector.broadcast %62 : vector<1x32xf32> to vector<6x32xf32>
    %64 = arith.addf %61, %63 : vector<6x32xf32>
    %65 = arith.addf %32, %64 : vector<6x32xf32>
    %c0_36 = arith.constant 0 : index
    %c0_37 = arith.constant 0 : index
    %66 = vector.load %arg12[%c0_36, %c0_37] : memref<1x32xf32, #tpu.memory_space<vmem>>, vector<1x32xf32>
    %c0_38 = arith.constant 0 : index
    %c0_39 = arith.constant 0 : index
    %67 = vector.load %arg13[%c0_38, %c0_39] : memref<1x32xf32, #tpu.memory_space<vmem>>, vector<1x32xf32>
    %cst_40 = arith.constant dense<0.000000e+00> : vector<6xf32>
    %68 = vector.multi_reduction <add>, %65, %cst_40 [1] : vector<6x32xf32> to vector<6xf32>
    %69 = vector.shape_cast %68 : vector<6xf32> to vector<6x1xf32>
    %cst_41 = arith.constant 3.200000e+01 : f32
    %70 = vector.broadcast %cst_41 : f32 to vector<6x1xf32>
    %71 = arith.divf %69, %70 : vector<6x1xf32>
    %72 = vector.broadcast %71 : vector<6x1xf32> to vector<6x32xf32>
    %73 = arith.subf %65, %72 : vector<6x32xf32>
    %74 = arith.mulf %73, %73 : vector<6x32xf32>
    %cst_42 = arith.constant dense<0.000000e+00> : vector<6xf32>
    %75 = vector.multi_reduction <add>, %74, %cst_42 [1] : vector<6x32xf32> to vector<6xf32>
    %76 = vector.shape_cast %75 : vector<6xf32> to vector<6x1xf32>
    %cst_43 = arith.constant 3.200000e+01 : f32
    %77 = vector.broadcast %cst_43 : f32 to vector<6x1xf32>
    %78 = arith.divf %76, %77 : vector<6x1xf32>
    %79 = vector.broadcast %71 : vector<6x1xf32> to vector<6x32xf32>
    %80 = arith.subf %65, %79 : vector<6x32xf32>
    %cst_44 = arith.constant 9.99999974E-6 : f32
    %81 = vector.broadcast %cst_44 : f32 to vector<6x1xf32>
    %82 = arith.addf %78, %81 : vector<6x1xf32>
    %83 = math.rsqrt %82 : vector<6x1xf32>
    %84 = vector.broadcast %83 : vector<6x1xf32> to vector<6x32xf32>
    %85 = arith.mulf %80, %84 : vector<6x32xf32>
    %86 = vector.broadcast %66 : vector<1x32xf32> to vector<6x32xf32>
    %87 = arith.mulf %85, %86 : vector<6x32xf32>
    %88 = vector.broadcast %67 : vector<1x32xf32> to vector<6x32xf32>
    %89 = arith.addf %87, %88 : vector<6x32xf32>
    %c0_45 = arith.constant 0 : index
    %c0_46 = arith.constant 0 : index
    %90 = vector.load %arg14[%c0_45, %c0_46] : memref<32x64xf32, #tpu.memory_space<vmem>>, vector<32x64xf32>
    %cst_47 = arith.constant dense<0.000000e+00> : vector<6x64xf32>
    %91 = tpu.matmul %89, %90, %cst_47 {dimension_numbers = #tpu.dot_dimension_numbers<[1], [0], [0], [1], [0, 0, 1, 1], [], []>} : vector<6x32xf32>, vector<32x64xf32>, vector<6x64xf32> -> vector<6x64xf32>
    %c0_48 = arith.constant 0 : index
    %c0_49 = arith.constant 0 : index
    %92 = vector.load %arg15[%c0_48, %c0_49] : memref<1x64xf32, #tpu.memory_space<vmem>>, vector<1x64xf32>
    %93 = vector.broadcast %92 : vector<1x64xf32> to vector<6x64xf32>
    %94 = arith.addf %91, %93 : vector<6x64xf32>
    %cst_50 = arith.constant 0.000000e+00 : f32
    %95 = vector.broadcast %cst_50 : f32 to vector<6x64xf32>
    %96 = arith.maximumf %94, %95 : vector<6x64xf32>
    %c0_51 = arith.constant 0 : index
    %c0_52 = arith.constant 0 : index
    %97 = vector.load %arg16[%c0_51, %c0_52] : memref<64x32xf32, #tpu.memory_space<vmem>>, vector<64x32xf32>
    %cst_53 = arith.constant dense<0.000000e+00> : vector<6x32xf32>
    %98 = tpu.matmul %96, %97, %cst_53 {dimension_numbers = #tpu.dot_dimension_numbers<[1], [0], [0], [1], [0, 0, 1, 1], [], []>} : vector<6x64xf32>, vector<64x32xf32>, vector<6x32xf32> -> vector<6x32xf32>
    %c0_54 = arith.constant 0 : index
    %c0_55 = arith.constant 0 : index
    %99 = vector.load %arg17[%c0_54, %c0_55] : memref<1x32xf32, #tpu.memory_space<vmem>>, vector<1x32xf32>
    %100 = vector.broadcast %99 : vector<1x32xf32> to vector<6x32xf32>
    %101 = arith.addf %98, %100 : vector<6x32xf32>
    %102 = arith.addf %89, %101 : vector<6x32xf32>
    %c0_56 = arith.constant 0 : index
    %c0_57 = arith.constant 0 : index
    %103 = vector.load %arg18[%c0_56, %c0_57] : memref<1x32xf32, #tpu.memory_space<vmem>>, vector<1x32xf32>
    %c0_58 = arith.constant 0 : index
    %c0_59 = arith.constant 0 : index
    %104 = vector.load %arg19[%c0_58, %c0_59] : memref<1x32xf32, #tpu.memory_space<vmem>>, vector<1x32xf32>
    %cst_60 = arith.constant dense<0.000000e+00> : vector<6xf32>
    %105 = vector.multi_reduction <add>, %102, %cst_60 [1] : vector<6x32xf32> to vector<6xf32>
    %106 = vector.shape_cast %105 : vector<6xf32> to vector<6x1xf32>
    %cst_61 = arith.constant 3.200000e+01 : f32
    %107 = vector.broadcast %cst_61 : f32 to vector<6x1xf32>
    %108 = arith.divf %106, %107 : vector<6x1xf32>
    %109 = vector.broadcast %108 : vector<6x1xf32> to vector<6x32xf32>
    %110 = arith.subf %102, %109 : vector<6x32xf32>
    %111 = arith.mulf %110, %110 : vector<6x32xf32>
    %cst_62 = arith.constant dense<0.000000e+00> : vector<6xf32>
    %112 = vector.multi_reduction <add>, %111, %cst_62 [1] : vector<6x32xf32> to vector<6xf32>
    %113 = vector.shape_cast %112 : vector<6xf32> to vector<6x1xf32>
    %cst_63 = arith.constant 3.200000e+01 : f32
    %114 = vector.broadcast %cst_63 : f32 to vector<6x1xf32>
    %115 = arith.divf %113, %114 : vector<6x1xf32>
    %116 = vector.broadcast %108 : vector<6x1xf32> to vector<6x32xf32>
    %117 = arith.subf %102, %116 : vector<6x32xf32>
    %cst_64 = arith.constant 9.99999974E-6 : f32
    %118 = vector.broadcast %cst_64 : f32 to vector<6x1xf32>
    %119 = arith.addf %115, %118 : vector<6x1xf32>
    %120 = math.rsqrt %119 : vector<6x1xf32>
    %121 = vector.broadcast %120 : vector<6x1xf32> to vector<6x32xf32>
    %122 = arith.mulf %117, %121 : vector<6x32xf32>
    %123 = vector.broadcast %103 : vector<1x32xf32> to vector<6x32xf32>
    %124 = arith.mulf %122, %123 : vector<6x32xf32>
    %125 = vector.broadcast %104 : vector<1x32xf32> to vector<6x32xf32>
    %126 = arith.addf %124, %125 : vector<6x32xf32>
    %127 = vector.shape_cast %126 : vector<6x32xf32> to vector<6x1x32xf32>
    %c0_65 = arith.constant 0 : index
    %c0_66 = arith.constant 0 : index
    %c0_67 = arith.constant 0 : index
    %128 = vector.load %arg20[%c0_65, %c0_66, %c0_67] : memref<6x1x32xf32, #tpu.memory_space<vmem>>, vector<6x1x32xf32>
    tpu.vector_store %arg20[%c0_65, %c0_66, %c0_67], %127 {strides = array<i32>} : memref<6x1x32xf32, #tpu.memory_space<vmem>>, vector<6x1x32xf32>,
    return
  }
  func.func @transform_0(%arg0: i32) -> (i32, i32, i32) {
    %c0_i32 = arith.constant 0 : i32
    %c0_i32_0 = arith.constant 0 : i32
    %c0_i32_1 = arith.constant 0 : i32
    return %arg0, %c0_i32, %c0_i32_0 : i32, i32, i32
  }
  func.func @transform_1(%arg0: i32) -> (i32, i32) {
    %c0_i32 = arith.constant 0 : i32
    %c0_i32_0 = arith.constant 0 : i32
    %c0_i32_1 = arith.constant 0 : i32
    return %c0_i32, %c0_i32_0 : i32, i32
  }
  func.func @transform_2(%arg0: i32) -> (i32, i32) {
    %c0_i32 = arith.constant 0 : i32
    %c0_i32_0 = arith.constant 0 : i32
    %c0_i32_1 = arith.constant 0 : i32
    return %c0_i32, %c0_i32_0 : i32, i32
  }
  func.func @transform_3(%arg0: i32) -> (i32, i32) {
    %c0_i32 = arith.constant 0 : i32
    %c0_i32_0 = arith.constant 0 : i32
    %c0_i32_1 = arith.constant 0 : i32
    return %c0_i32, %c0_i32_0 : i32, i32
  }
  func.func @transform_4(%arg0: i32) -> (i32, i32) {
    %c0_i32 = arith.constant 0 : i32
    %c0_i32_0 = arith.constant 0 : i32
    %c0_i32_1 = arith.constant 0 : i32
    return %c0_i32, %c0_i32_0 : i32, i32
  }
  func.func @transform_5(%arg0: i32) -> (i32, i32) {
    %c0_i32 = arith.constant 0 : i32
    %c0_i32_0 = arith.constant 0 : i32
    %c0_i32_1 = arith.constant 0 : i32
    return %c0_i32, %c0_i32_0 : i32, i32
  }
  func.func @transform_6(%arg0: i32) -> (i32, i32) {
    %c0_i32 = arith.constant 0 : i32
    %c0_i32_0 = arith.constant 0 : i32
    %c0_i32_1 = arith.constant 0 : i32
    return %c0_i32, %c0_i32_0 : i32, i32
  }
  func.func @transform_7(%arg0: i32) -> (i32, i32) {
    %c0_i32 = arith.constant 0 : i32
    %c0_i32_0 = arith.constant 0 : i32
    %c0_i32_1 = arith.constant 0 : i32
    return %c0_i32, %c0_i32_0 : i32, i32
  }
  func.func @transform_8(%arg0: i32) -> (i32, i32, i32) {
    %c0_i32 = arith.constant 0 : i32
    %c0_i32_0 = arith.constant 0 : i32
    %c0_i32_1 = arith.constant 0 : i32
    %c0_i32_2 = arith.constant 0 : i32
    return %c0_i32, %c0_i32_0, %c0_i32_1 : i32, i32, i32
  }
  func.func @transform_9(%arg0: i32) -> (i32, i32) {
    %c0_i32 = arith.constant 0 : i32
    %c0_i32_0 = arith.constant 0 : i32
    %c0_i32_1 = arith.constant 0 : i32
    return %c0_i32, %c0_i32_0 : i32, i32
  }
  func.func @transform_10(%arg0: i32) -> (i32, i32) {
    %c0_i32 = arith.constant 0 : i32
    %c0_i32_0 = arith.constant 0 : i32
    %c0_i32_1 = arith.constant 0 : i32
    return %c0_i32, %c0_i32_0 : i32, i32
  }
  func.func @transform_11(%arg0: i32) -> (i32, i32) {
    %c0_i32 = arith.constant 0 : i32
    %c0_i32_0 = arith.constant 0 : i32
    %c0_i32_1 = arith.constant 0 : i32
    return %c0_i32, %c0_i32_0 : i32, i32
  }
  func.func @transform_12(%arg0: i32) -> (i32, i32) {
    %c0_i32 = arith.constant 0 : i32
    %c0_i32_0 = arith.constant 0 : i32
    %c0_i32_1 = arith.constant 0 : i32
    return %c0_i32, %c0_i32_0 : i32, i32
  }
  func.func @transform_13(%arg0: i32) -> (i32, i32) {
    %c0_i32 = arith.constant 0 : i32
    %c0_i32_0 = arith.constant 0 : i32
    %c0_i32_1 = arith.constant 0 : i32
    return %c0_i32, %c0_i32_0 : i32, i32
  }
  func.func @transform_14(%arg0: i32) -> (i32, i32) {
    %c0_i32 = arith.constant 0 : i32
    %c0_i32_0 = arith.constant 0 : i32
    %c0_i32_1 = arith.constant 0 : i32
    return %c0_i32, %c0_i32_0 : i32, i32
  }
  func.func @transform_15(%arg0: i32) -> (i32, i32) {
    %c0_i32 = arith.constant 0 : i32
    %c0_i32_0 = arith.constant 0 : i32
    %c0_i32_1 = arith.constant 0 : i32
    return %c0_i32, %c0_i32_0 : i32, i32
  }
  func.func @transform_16(%arg0: i32) -> (i32, i32) {
    %c0_i32 = arith.constant 0 : i32
    %c0_i32_0 = arith.constant 0 : i32
    %c0_i32_1 = arith.constant 0 : i32
    return %c0_i32, %c0_i32_0 : i32, i32
  }
  func.func @transform_17(%arg0: i32) -> (i32, i32) {
    %c0_i32 = arith.constant 0 : i32
    %c0_i32_0 = arith.constant 0 : i32
    %c0_i32_1 = arith.constant 0 : i32
    return %c0_i32, %c0_i32_0 : i32, i32
  }
  func.func @transform_18(%arg0: i32) -> (i32, i32) {
    %c0_i32 = arith.constant 0 : i32
    %c0_i32_0 = arith.constant 0 : i32
    %c0_i32_1 = arith.constant 0 : i32
    return %c0_i32, %c0_i32_0 : i32, i32
  }
  func.func @transform_19(%arg0: i32) -> (i32, i32, i32) {
    %c0_i32 = arith.constant 0 : i32
    %c0_i32_0 = arith.constant 0 : i32
    %c0_i32_1 = arith.constant 0 : i32
    return %arg0, %c0_i32, %c0_i32_0 : i32, i32, i32
  }
}

module attributes {stable_mosaic.version = 11 : i64} {
  func.func @_head_kernel(%arg0: i32, %arg1: memref<6x8xf32, #tpu.memory_space<vmem>>, %arg2: memref<6x32xf32, #tpu.memory_space<vmem>>, %arg3: memref<6x32xf32, #tpu.memory_space<vmem>>, %arg4: memref<8x32xf32, #tpu.memory_space<vmem>>, %arg5: memref<1x32xf32, #tpu.memory_space<vmem>>, %arg6: memref<96x32xf32, #tpu.memory_space<vmem>>, %arg7: memref<1x32xf32, #tpu.memory_space<vmem>>, %arg8: memref<6x32xf32, #tpu.memory_space<vmem>>) attributes {dimension_semantics = [#tpu.dimension_semantics<arbitrary>], iteration_bounds = array<i64: 1>, scalar_prefetch = 0 : i64, scratch_operands = 0 : i64, tpu.core_type = #tpu.core_type<tc>, window_params = [{pipeline_mode = #tpu.pipeline_mode<synchronous>, transform_indices = @transform_0, window_bounds = array<i64: 6, 8>}, {pipeline_mode = #tpu.pipeline_mode<synchronous>, transform_indices = @transform_1, window_bounds = array<i64: 6, 32>}, {pipeline_mode = #tpu.pipeline_mode<synchronous>, transform_indices = @transform_2, window_bounds = array<i64: 6, 32>}, {pipeline_mode = #tpu.pipeline_mode<synchronous>, transform_indices = @transform_3, window_bounds = array<i64: 8, 32>}, {pipeline_mode = #tpu.pipeline_mode<synchronous>, transform_indices = @transform_4, window_bounds = array<i64: 1, 32>}, {pipeline_mode = #tpu.pipeline_mode<synchronous>, transform_indices = @transform_5, window_bounds = array<i64: 96, 32>}, {pipeline_mode = #tpu.pipeline_mode<synchronous>, transform_indices = @transform_6, window_bounds = array<i64: 1, 32>}, {pipeline_mode = #tpu.pipeline_mode<synchronous>, transform_indices = @transform_7, window_bounds = array<i64: 6, 32>}]} {
    %c0 = arith.constant 0 : index
    %c0_0 = arith.constant 0 : index
    %0 = vector.load %arg1[%c0, %c0_0] : memref<6x8xf32, #tpu.memory_space<vmem>>, vector<6x8xf32>
    %c0_1 = arith.constant 0 : index
    %c0_2 = arith.constant 0 : index
    %1 = vector.load %arg4[%c0_1, %c0_2] : memref<8x32xf32, #tpu.memory_space<vmem>>, vector<8x32xf32>
    %cst = arith.constant dense<0.000000e+00> : vector<6x32xf32>
    %2 = tpu.matmul %0, %1, %cst {dimension_numbers = #tpu.dot_dimension_numbers<[1], [0], [0], [1], [0, 0, 1, 1], [], []>} : vector<6x8xf32>, vector<8x32xf32>, vector<6x32xf32> -> vector<6x32xf32>
    %c0_3 = arith.constant 0 : index
    %c0_4 = arith.constant 0 : index
    %3 = vector.load %arg5[%c0_3, %c0_4] : memref<1x32xf32, #tpu.memory_space<vmem>>, vector<1x32xf32>
    %4 = vector.broadcast %3 : vector<1x32xf32> to vector<6x32xf32>
    %5 = arith.addf %2, %4 : vector<6x32xf32>
    %c0_5 = arith.constant 0 : index
    %c0_6 = arith.constant 0 : index
    %6 = vector.load %arg2[%c0_5, %c0_6] : memref<6x32xf32, #tpu.memory_space<vmem>>, vector<6x32xf32>
    %c0_7 = arith.constant 0 : index
    %c0_8 = arith.constant 0 : index
    %7 = vector.load %arg3[%c0_7, %c0_8] : memref<6x32xf32, #tpu.memory_space<vmem>>, vector<6x32xf32>
    %8 = tpu.concatenate %5, %6, %7 in 1 : vector<6x32xf32>, vector<6x32xf32>, vector<6x32xf32> -> vector<6x96xf32>
    %c0_9 = arith.constant 0 : index
    %c0_10 = arith.constant 0 : index
    %9 = vector.load %arg6[%c0_9, %c0_10] : memref<96x32xf32, #tpu.memory_space<vmem>>, vector<96x32xf32>
    %cst_11 = arith.constant dense<0.000000e+00> : vector<6x32xf32>
    %10 = tpu.matmul %8, %9, %cst_11 {dimension_numbers = #tpu.dot_dimension_numbers<[1], [0], [0], [1], [0, 0, 1, 1], [], []>} : vector<6x96xf32>, vector<96x32xf32>, vector<6x32xf32> -> vector<6x32xf32>
    %c0_12 = arith.constant 0 : index
    %c0_13 = arith.constant 0 : index
    %11 = vector.load %arg7[%c0_12, %c0_13] : memref<1x32xf32, #tpu.memory_space<vmem>>, vector<1x32xf32>
    %12 = vector.broadcast %11 : vector<1x32xf32> to vector<6x32xf32>
    %13 = arith.addf %10, %12 : vector<6x32xf32>
    %c0_14 = arith.constant 0 : index
    %c0_15 = arith.constant 0 : index
    %14 = vector.load %arg8[%c0_14, %c0_15] : memref<6x32xf32, #tpu.memory_space<vmem>>, vector<6x32xf32>
    tpu.vector_store %arg8[%c0_14, %c0_15], %13 {strides = array<i32>} : memref<6x32xf32, #tpu.memory_space<vmem>>, vector<6x32xf32>,
    return
  }
  func.func @transform_0(%arg0: i32) -> (i32, i32) {
    %c0_i32 = arith.constant 0 : i32
    %c0_i32_0 = arith.constant 0 : i32
    %c0_i32_1 = arith.constant 0 : i32
    return %c0_i32, %c0_i32_0 : i32, i32
  }
  func.func @transform_1(%arg0: i32) -> (i32, i32) {
    %c0_i32 = arith.constant 0 : i32
    %c0_i32_0 = arith.constant 0 : i32
    %c0_i32_1 = arith.constant 0 : i32
    return %c0_i32, %c0_i32_0 : i32, i32
  }
  func.func @transform_2(%arg0: i32) -> (i32, i32) {
    %c0_i32 = arith.constant 0 : i32
    %c0_i32_0 = arith.constant 0 : i32
    %c0_i32_1 = arith.constant 0 : i32
    return %c0_i32, %c0_i32_0 : i32, i32
  }
  func.func @transform_3(%arg0: i32) -> (i32, i32) {
    %c0_i32 = arith.constant 0 : i32
    %c0_i32_0 = arith.constant 0 : i32
    %c0_i32_1 = arith.constant 0 : i32
    return %c0_i32, %c0_i32_0 : i32, i32
  }
  func.func @transform_4(%arg0: i32) -> (i32, i32) {
    %c0_i32 = arith.constant 0 : i32
    %c0_i32_0 = arith.constant 0 : i32
    %c0_i32_1 = arith.constant 0 : i32
    return %c0_i32, %c0_i32_0 : i32, i32
  }
  func.func @transform_5(%arg0: i32) -> (i32, i32) {
    %c0_i32 = arith.constant 0 : i32
    %c0_i32_0 = arith.constant 0 : i32
    %c0_i32_1 = arith.constant 0 : i32
    return %c0_i32, %c0_i32_0 : i32, i32
  }
  func.func @transform_6(%arg0: i32) -> (i32, i32) {
    %c0_i32 = arith.constant 0 : i32
    %c0_i32_0 = arith.constant 0 : i32
    %c0_i32_1 = arith.constant 0 : i32
    return %c0_i32, %c0_i32_0 : i32, i32
  }
  func.func @transform_7(%arg0: i32) -> (i32, i32) {
    %c0_i32 = arith.constant 0 : i32
    %c0_i32_0 = arith.constant 0 : i32
    %c0_i32_1 = arith.constant 0 : i32
    return %c0_i32, %c0_i32_0 : i32, i32
  }
}

</mosaic_0001>

<llo_original>
// kernel: squeeze.3
$region0: #{squeeze.3}
  %s0 = inlined_call_operand.vmem [shape: f32[2,3,8], index: 0, kind: input, shape index: {}]
  %s1 = inlined_call_operand.vmem [shape: f32[6,8], index: 1, kind: output, shape index: {}]
  $region1: #{squeeze.3} parent=0
    #allocation0 [shape = 'u8[8192]{0}', space=vmem, size = 0x2000, scoped, tag = 'scoped mem for input reshape']
    %s3 = ssub.s32 16, 1
    %s4 = scalar_lea.vmem %s0, 4
    %v5 = vld [vmem:[%s4] sm:%s3]
    %s6 = scalar_lea.vmem [#allocation0], 8
    %7 = vst [vmem:[%s6] sm:%s3] %v5
    %v8 = vld [vmem:[%s0] sm:%s3]
    %9 = vst [vmem:[#allocation0] sm:%s3] %v8
    %v10 = vld [vmem:[#allocation0] sm:$0x7]
    %vm11 = vcmask 64512
    %12 = vst.msk [vmem:[%s1] sm:$0x7] %vm11, %v10
    %s13 = scalar_lea.vmem [#allocation0], 8
    %v14 = vld [vmem:[%s13] sm:$0x7]
    %vm15 = vcmask 64512
    %s16 = scalar_lea.vmem %s1, 3
    %17 = vst.msk [vmem:[%s16] sm:$0x7] %vm15, %v14

// kernel: hrl_encoder_forward.4
$region0: #{hrl_encoder_forward.4}
  #allocation0 [shape = 'u32[]', space=smem, size = 0x4, offset = 0x4, fixed_abs, tag = 'smem constant byte address 0x4 - core index']
  #allocation1 [shape = 'u32[72,128]{1,0:T(1,128)}', space=vmem, size = 0x9000, scoped, tag = 'internal scratch']
  %s0 = inlined_call_operand.vmem [shape: f32[6,24,8], index: 0, kind: input, shape index: {}]
  %s1 = inlined_call_operand.vmem [shape: f32[8,32], index: 1, kind: input, shape index: {}]
  %s2 = inlined_call_operand.vmem [shape: f32[1,32], index: 2, kind: input, shape index: {}]
  %s3 = inlined_call_operand.vmem [shape: f32[96,32], index: 3, kind: input, shape index: {}]
  %s4 = inlined_call_operand.hbm [shape: f32[1,32], index: 4, kind: input, shape index: {}]
  %s5 = inlined_call_operand.vmem [shape: f32[96,32], index: 5, kind: input, shape index: {}]
  %s6 = inlined_call_operand.hbm [shape: f32[1,32], index: 6, kind: input, shape index: {}]
  %s7 = inlined_call_operand.vmem [shape: f32[6,24,32], index: 7, kind: output, shape index: {}]
  %s8 = sld [smem:[#allocation0]]
  $region69: #{hrl_encoder_forward.4} parent=0
    _
  %s10 = ssub.s32 1, %s8
  %s11 = scalar_select 0, %s10, %s8
  $region1: #{hrl_encoder_forward.4} parent=0
    #allocation2 [shape = 'u8[512]{0}', space=vmem, size = 0x400, scoped, tag = 'input window, operand 4, single buffered']
    #allocation3 [shape = 's32[2]{0}', space=sflag, size = 0x8, scoped, tag = 'scoped memory for hrl_encoder_forward.4']
    #allocation4 [shape = 'u8[512]{0}', space=vmem, size = 0x400, scoped, tag = 'input window, operand 6, single buffered']
    #allocation5 [shape = 's32[1]{0}', space=sflag, size = 0x4, scoped, tag = 'scoped memory for hrl_encoder_forward.4']
    %12 = vsyncpa [#allocation3], 0
    %13 = vsyncpa [#allocation5], 0
    loop: start=0, step=1, limit=4
    $region2: #{hrl_encoder_forward.4} parent=1 // loop_pre_header
      _
    $region3: #{hrl_encoder_forward.4} parent=1 // loop_header
      %s15 = sphi 0, %s19
      %p16 = scmp.ge.s32.totalorder %s15, 4
      %s25 = sphi 0, %s27
      %s28 = sphi 0, %s25
      %s29 = sphi 0, %s28
      %s45 = sphi 0, %s29
      %s49 = sphi 0, %s49
      %s51 = sphi 0, %s49
      %s52 = sphi 0, %s51
      %s66 = sphi 0, %s52
      %s70 = sphi 0, %s70
      %s72 = sphi 0, %s70
      %s73 = sphi 0, %s72
      %s87 = sphi 0, %s73
      %s91 = sphi 0, %s91
      %s93 = sphi 0, %s91
      %s94 = sphi 0, %s93
      %s108 = sphi 0, %s94
      %s112 = sphi 0, %s112
      %s114 = sphi 0, %s112
      %s115 = sphi 0, %s114
      %s129 = sphi 0, %s115
      %s133 = sphi 0, %s133
      %s135 = sphi 0, %s133
      %s136 = sphi 0, %s135
      %s150 = sphi 0, %s136
      %s154 = sphi 0, %s154
      %s156 = sphi 0, %s154
      %s157 = sphi 0, %s156
      %s171 = sphi 0, %s157
      %s177 = sphi 0, %s179
      %s180 = sphi 0, %s177
      %s181 = sphi 0, %s180
      %s197 = sphi 0, %s181
    $region4: #{hrl_encoder_forward.4} parent=1 // loop_header_branch
      %18 = sbr.rel (%p16) target = $region8
    $region5: #{hrl_encoder_forward.4} parent=1 // loop_body
      %s20 = ssub.s32 %s15, 1
      %s21 = ssub.s32 %s15, 2
      %s22 = sadd.s32 %s15, 1
      %s23 = ssub.s32 %s15, %s22
      %p24 = scmp.eq.s32.totalorder %s23, 0
      %s26 = sadd.s32 %s25, 1
      %s27 = scalar_select %p24, %s25, %s26
      %p30 = pneg %p24
      %p31 = scmp.eq.s32.totalorder %s15, 1
      %p32 = por %p30, %p31
      %p33 = scmp.ne.s32.totalorder %s25, %s28
      %p34 = scmp.eq.s32.totalorder %s15, 0
      %p35 = por %p33, %p34
      %p36 = scmp.ne.s32.totalorder %s25, %s28
      %p37 = scmp.eq.s32.totalorder %s20, 1
      %p38 = por %p36, %p37
      %p39 = scmp.ne.s32.totalorder %s28, %s29
      %p40 = scmp.eq.s32.totalorder %s20, 0
      %p41 = por %p39, %p40
      %p42 = scmp.ne.s32.totalorder %s28, %s29
      %p43 = scmp.eq.s32.totalorder %s21, 1
      %p44 = por %p42, %p43
      %p46 = scmp.ne.s32.totalorder %s29, %s45
      %p47 = scmp.eq.s32.totalorder %s21, 0
      %p48 = por %p46, %p47
      %s50 = sadd.s32 %s49, 1
      %p53 = scmp.eq.s32.totalorder %s15, 1
      %p54 = scmp.ne.s32.totalorder %s49, %s51
      %p55 = scmp.eq.s32.totalorder %s15, 0
      %p56 = por %p54, %p55
      %p57 = scmp.ne.s32.totalorder %s49, %s51
      %p58 = scmp.eq.s32.totalorder %s20, 1
      %p59 = por %p57, %p58
      %p60 = scmp.ne.s32.totalorder %s51, %s52
      %p61 = scmp.eq.s32.totalorder %s20, 0
      %p62 = por %p60, %p61
      %p63 = scmp.ne.s32.totalorder %s51, %s52
      %p64 = scmp.eq.s32.totalorder %s21, 1
      %p65 = por %p63, %p64
      %p67 = scmp.ne.s32.totalorder %s52, %s66
      %p68 = scmp.eq.s32.totalorder %s21, 0
      %p69 = por %p67, %p68
      %s71 = sadd.s32 %s70, 1
      %p74 = scmp.eq.s32.totalorder %s15, 1
      %p75 = scmp.ne.s32.totalorder %s70, %s72
      %p76 = scmp.eq.s32.totalorder %s15, 0
      %p77 = por %p75, %p76
      %p78 = scmp.ne.s32.totalorder %s70, %s72
      %p79 = scmp.eq.s32.totalorder %s20, 1
      %p80 = por %p78, %p79
      %p81 = scmp.ne.s32.totalorder %s72, %s73
      %p82 = scmp.eq.s32.totalorder %s20, 0
      %p83 = por %p81, %p82
      %p84 = scmp.ne.s32.totalorder %s72, %s73
      %p85 = scmp.eq.s32.totalorder %s21, 1
      %p86 = por %p84, %p85
      %p88 = scmp.ne.s32.totalorder %s73, %s87
      %p89 = scmp.eq.s32.totalorder %s21, 0
      %p90 = por %p88, %p89
      %s92 = sadd.s32 %s91, 1
      %p95 = scmp.eq.s32.totalorder %s15, 1
      %p96 = scmp.ne.s32.totalorder %s91, %s93
      %p97 = scmp.eq.s32.totalorder %s15, 0
      %p98 = por %p96, %p97
      %p99 = scmp.ne.s32.totalorder %s91, %s93
      %p100 = scmp.eq.s32.totalorder %s20, 1
      %p101 = por %p99, %p100
      %p102 = scmp.ne.s32.totalorder %s93, %s94
      %p103 = scmp.eq.s32.totalorder %s20, 0
      %p104 = por %p102, %p103
      %p105 = scmp.ne.s32.totalorder %s93, %s94
      %p106 = scmp.eq.s32.totalorder %s21, 1
      %p107 = por %p105, %p106
      %p109 = scmp.ne.s32.totalorder %s94, %s108
      %p110 = scmp.eq.s32.totalorder %s21, 0
      %p111 = por %p109, %p110
      %s113 = sadd.s32 %s112, 1
      %p116 = scmp.eq.s32.totalorder %s15, 1
      %p117 = scmp.ne.s32.totalorder %s112, %s114
      %p118 = scmp.eq.s32.totalorder %s15, 0
      %p119 = por %p117, %p118
      %p120 = scmp.ne.s32.totalorder %s112, %s114
      %p121 = scmp.eq.s32.totalorder %s20, 1
      %p122 = por %p120, %p121
      %p123 = scmp.ne.s32.totalorder %s114, %s115
      %p124 = scmp.eq.s32.totalorder %s20, 0
      %p125 = por %p123, %p124
      %p126 = scmp.ne.s32.totalorder %s114, %s115
      %p127 = scmp.eq.s32.totalorder %s21, 1
      %p128 = por %p126, %p127
      %p130 = scmp.ne.s32.totalorder %s115, %s129
      %p131 = scmp.eq.s32.totalorder %s21, 0
      %p132 = por %p130, %p131
      %s134 = sadd.s32 %s133, 1
      %p137 = scmp.eq.s32.totalorder %s15, 1
      %p138 = scmp.ne.s32.totalorder %s133, %s135
      %p139 = scmp.eq.s32.totalorder %s15, 0
      %p140 = por %p138, %p139
      %p141 = scmp.ne.s32.totalorder %s133, %s135
      %p142 = scmp.eq.s32.totalorder %s20, 1
      %p143 = por %p141, %p142
      %p144 = scmp.ne.s32.totalorder %s135, %s136
      %p145 = scmp.eq.s32.totalorder %s20, 0
      %p146 = por %p144, %p145
      %p147 = scmp.ne.s32.totalorder %s135, %s136
      %p148 = scmp.eq.s32.totalorder %s21, 1
      %p149 = por %p147, %p148
      %p151 = scmp.ne.s32.totalorder %s136, %s150
      %p152 = scmp.eq.s32.totalorder %s21, 0
      %p153 = por %p151, %p152
      %s155 = sadd.s32 %s154, 1
      %p158 = scmp.eq.s32.totalorder %s15, 1
      %p159 = scmp.ne.s32.totalorder %s154, %s156
      %p160 = scmp.eq.s32.totalorder %s15, 0
      %p161 = por %p159, %p160
      %p162 = scmp.ne.s32.totalorder %s154, %s156
      %p163 = scmp.eq.s32.totalorder %s20, 1
      %p164 = por %p162, %p163
      %p165 = scmp.ne.s32.totalorder %s156, %s157
      %p166 = scmp.eq.s32.totalorder %s20, 0
      %p167 = por %p165, %p166
      %p168 = scmp.ne.s32.totalorder %s156, %s157
      %p169 = scmp.eq.s32.totalorder %s21, 1
      %p170 = por %p168, %p169
      %p172 = scmp.ne.s32.totalorder %s157, %s171
      %p173 = scmp.eq.s32.totalorder %s21, 0
      %p174 = por %p172, %p173
      %s175 = ssub.s32 %s15, %s22
      %p176 = scmp.eq.s32.totalorder %s175, 0
      %s178 = sadd.s32 %s177, 1
      %s179 = scalar_select %p176, %s177, %s178
      %p182 = pneg %p176
      %p183 = scmp.eq.s32.totalorder %s15, 1
      %p184 = por %p182, %p183
      %p185 = scmp.ne.s32.totalorder %s177, %s180
      %p186 = scmp.eq.s32.totalorder %s15, 0
      %p187 = por %p185, %p186
      %p188 = scmp.ne.s32.totalorder %s177, %s180
      %p189 = scmp.eq.s32.totalorder %s20, 1
      %p190 = por %p188, %p189
      %p191 = scmp.ne.s32.totalorder %s180, %s181
      %p192 = scmp.eq.s32.totalorder %s20, 0
      %p193 = por %p191, %p192
      %p194 = scmp.ne.s32.totalorder %s180, %s181
      %p195 = scmp.eq.s32.totalorder %s21, 1
      %p196 = por %p194, %p195
      %p198 = scmp.ne.s32.totalorder %s181, %s197
      %p199 = scmp.eq.s32.totalorder %s21, 0
      %p200 = por %p198, %p199
      %p201 = scmp.le.s32.totalorder 1, %s15
      %p202 = scmp.lt.s32.totalorder %s15, 3
      %p203 = pnand %p201, %p202
      %p204 = pneg %p203
      // Predicated region
      $region9: #{hrl_encoder_forward.4} parent=5 // pred_check
        _
      $region10: #{hrl_encoder_forward.4} parent=5 // pred_check_branch
        %206 = sbr.rel (%p203) target = $region12
      $region11: #{hrl_encoder_forward.4} parent=5 // pred_region
        %s207 = ssub.s32 %s15, 1
        // Predicated region
        $region13: #{hrl_encoder_forward.4} parent=11 // pred_check
          %p208 = pneg %p62
        $region14: #{hrl_encoder_forward.4} parent=11 // pred_check_branch
          %210 = sbr.rel (%p208) target = $region16
        $region15: #{hrl_encoder_forward.4} parent=11 // pred_region
          _
        $region16: #{hrl_encoder_forward.4} parent=11 // pred_fallthru
          _
        // Predicated region
        $region17: #{hrl_encoder_forward.4} parent=11 // pred_check
          %p211 = pneg %p83
        $region18: #{hrl_encoder_forward.4} parent=11 // pred_check_branch
          %213 = sbr.rel (%p211) target = $region20
        $region19: #{hrl_encoder_forward.4} parent=11 // pred_region
          _
        $region20: #{hrl_encoder_forward.4} parent=11 // pred_fallthru
          _
        // Predicated region
        $region21: #{hrl_encoder_forward.4} parent=11 // pred_check
          %p214 = pneg %p104
        $region22: #{hrl_encoder_forward.4} parent=11 // pred_check_branch
          %216 = sbr.rel (%p214) target = $region24
        $region23: #{hrl_encoder_forward.4} parent=11 // pred_region
          _
        $region24: #{hrl_encoder_forward.4} parent=11 // pred_fallthru
          _
        // Predicated region
        $region25: #{hrl_encoder_forward.4} parent=11 // pred_check
          %p217 = pneg %p125
        $region26: #{hrl_encoder_forward.4} parent=11 // pred_check_branch
          %219 = sbr.rel (%p217) target = $region28
        $region27: #{hrl_encoder_forward.4} parent=11 // pred_region
          %221 = vsyncadd [#allocation3], 0
          %s223 = sshll.u32 %s4, 4
          %s224 = int_to_ptr.hbm [resolvable:$true] %s223
          %s225 = sshll.u32 [#allocation2], 4
          %s226 = int_to_ptr.vmem [resolvable:$true] %s225
          %228 = dma.hbm_to_vmem [thread:$0]  %s224, 16, %s226, [#allocation3]
        $region28: #{hrl_encoder_forward.4} parent=11 // pred_fallthru
          _
        // Predicated region
        $region29: #{hrl_encoder_forward.4} parent=11 // pred_check
          %p229 = pneg %p146
        $region30: #{hrl_encoder_forward.4} parent=11 // pred_check_branch
          %231 = sbr.rel (%p229) target = $region32
        $region31: #{hrl_encoder_forward.4} parent=11 // pred_region
          _
        $region32: #{hrl_encoder_forward.4} parent=11 // pred_fallthru
          _
        // Predicated region
        $region33: #{hrl_encoder_forward.4} parent=11 // pred_check
          %p232 = pneg %p167
        $region34: #{hrl_encoder_forward.4} parent=11 // pred_check_branch
          %234 = sbr.rel (%p232) target = $region36
        $region35: #{hrl_encoder_forward.4} parent=11 // pred_region
          %236 = vsyncadd [#allocation5], 0
          %s238 = sshll.u32 %s6, 4
          %s239 = int_to_ptr.hbm [resolvable:$true] %s238
          %s240 = sshll.u32 [#allocation4], 4
          %s241 = int_to_ptr.vmem [resolvable:$true] %s240
          %243 = dma.hbm_to_vmem [thread:$0]  %s239, 16, %s241, [#allocation5]
        $region36: #{hrl_encoder_forward.4} parent=11 // pred_fallthru
          _
      $region12: #{hrl_encoder_forward.4} parent=5 // pred_fallthru
        _
      %p244 = scmp.lt.s32.totalorder %s15, 2
      // Predicated region
      $region37: #{hrl_encoder_forward.4} parent=5 // pred_check
        %p245 = pneg %p244
      $region38: #{hrl_encoder_forward.4} parent=5 // pred_check_branch
        %247 = sbr.rel (%p245) target = $region40
      $region39: #{hrl_encoder_forward.4} parent=5 // pred_region
        // Predicated region
        $region41: #{hrl_encoder_forward.4} parent=39 // pred_check
          %p248 = pneg %p35
        $region42: #{hrl_encoder_forward.4} parent=39 // pred_check_branch
          %250 = sbr.rel (%p248) target = $region44
        $region43: #{hrl_encoder_forward.4} parent=39 // pred_region
          %s251 = smul.u32 3, %s15
          %p252 = scmp.lt.s32.totalorder %s251, 5
          %s253 = scalar_select %p252, %s251, 5
          %s254 = smul.addr %s253, 3
          %s255 = smul.addr %s254, 8
          %s256 = scalar_lea.vmem %s0, %s255
          %s257 = smul.u32 3, %s15
        $region44: #{hrl_encoder_forward.4} parent=39 // pred_fallthru
          _
      $region40: #{hrl_encoder_forward.4} parent=5 // pred_fallthru
        _
      %p258 = scmp.le.s32.totalorder 1, %s15
      %p259 = scmp.lt.s32.totalorder %s15, 3
      %p260 = pnand %p258, %p259
      %p261 = pneg %p260
      // Predicated region
      $region45: #{hrl_encoder_forward.4} parent=5 // pred_check
        _
      $region46: #{hrl_encoder_forward.4} parent=5 // pred_check_branch
        %263 = sbr.rel (%p260) target = $region48
      $region47: #{hrl_encoder_forward.4} parent=5 // pred_region
        %s264 = ssub.s32 %s15, 1
        // Predicated region
        $region49: #{hrl_encoder_forward.4} parent=47 // pred_check
          %p265 = pneg %p125
        $region50: #{hrl_encoder_forward.4} parent=47 // pred_check_branch
          %267 = sbr.rel (%p265) target = $region52
        $region51: #{hrl_encoder_forward.4} parent=47 // pred_region
          %269 = dma.done [#allocation3], 16
        $region52: #{hrl_encoder_forward.4} parent=47 // pred_fallthru
          _
        // Predicated region
        $region53: #{hrl_encoder_forward.4} parent=47 // pred_check
          %p270 = pneg %p167
        $region54: #{hrl_encoder_forward.4} parent=47 // pred_check_branch
          %272 = sbr.rel (%p270) target = $region56
        $region55: #{hrl_encoder_forward.4} parent=47 // pred_region
          %274 = dma.done [#allocation5], 16
        $region56: #{hrl_encoder_forward.4} parent=47 // pred_fallthru
          _
        %s275 = smul.u32 3, %s20
        %p276 = scmp.lt.s32.totalorder %s275, 5
        %s277 = scalar_select %p276, %s275, 5
        %s278 = smul.addr %s277, 3
        %s279 = smul.addr %s278, 8
        %s280 = scalar_lea.vmem %s0, %s279
        %p281 = pneg %p41
        %p282 = pneg %p38
        %p283 = pneg %p62
        %p284 = pneg %p59
        %p285 = pneg %p83
        %p286 = pneg %p80
        %p287 = pneg %p104
        %p288 = pneg %p101
        %p289 = pneg %p125
        %p290 = pneg %p122
        %p291 = pneg %p146
        %p292 = pneg %p143
        %p293 = pneg %p167
        %p294 = pneg %p164
        %p295 = pneg %p193
        %p296 = pneg %p190
        %s297 = smul.u32 3, %s20
        %p298 = scmp.lt.s32.totalorder %s297, 5
        %s299 = scalar_select %p298, %s297, 5
        %s300 = smul.addr %s299, 3
        %s301 = smul.addr %s300, 8
        %s302 = scalar_lea.vmem %s7, %s301
        %s303 = smul.u32 3, %s20
        %p304 = scmp.lt.s32.totalorder %s303, 5
        %s305 = scalar_select %p304, %s303, 5
        %s306 = smul.addr %s305, 3
        %s307 = smul.addr %s306, 8
        %s308 = scalar_lea.vmem %s0, %s307
        %s309 = smul.u32 3, %s20
        %s310 = smul.u32 3, %s20
        %p311 = scmp.lt.s32.totalorder %s310, 5
        %s312 = scalar_select %p311, %s310, 5
        %s313 = smul.addr %s312, 3
        %s314 = smul.addr %s313, 8
        %s315 = scalar_lea.vmem %s7, %s314
        %s316 = smul.u32 3, %s20
        %v317 = vld [vmem:[%s308] sm:$0xff]
        %v318 = vld [vmem:[%s308 + $0x8] sm:$0xff]
        %v319 = vld [vmem:[%s308 + $0x10] sm:$0xff]
        %v320 = vld [vmem:[%s308 + $0x18] sm:$0xff]
        %v321 = vld [vmem:[%s308 + $0x20] sm:$0xff]
        %v322 = vld [vmem:[%s308 + $0x28] sm:$0xff]
        %v323 = vld [vmem:[%s308 + $0x30] sm:$0xff]
        %v324 = vld [vmem:[%s308 + $0x38] sm:$0xff]
        %v325 = vld [vmem:[%s308 + $0x40] sm:$0xff]
        %v326 = vld [vmem:[%s1] sm:$0xff]
        %v327 = vld [vmem:[%s2] sm:$0x1]
        %v329 = vperm.slane %v327, 0
        %vm331 = vcmask 64512
        %v333 = vsel %vm331, %v317, 0
        %v336 = vsel %vm331, %v318, 0
        %v339 = vsel %vm331, %v319, 0
        %v342 = vsel %vm331, %v320, 0
        %v345 = vsel %vm331, %v321, 0
        %v348 = vsel %vm331, %v322, 0
        %v351 = vsel %vm331, %v323, 0
        %v354 = vsel %vm331, %v324, 0
        %v357 = vsel %vm331, %v325, 0
        %359 = vmatpush.msra.mxu0 0.0
        %360 = vmatpush.msra.mxu0 0.0
        %361 = vmatpush.msra.mxu0 0.0
        %362 = vmatpush.msra.mxu0 0.0
        %363 = vmatpush.msra.mxu0 0.0
        %364 = vmatpush.msra.mxu0 0.0
        %365 = vmatpush.msra.mxu0 0.0
        %366 = vmatpush.msra.mxu0 0.0
        %367 = vmatpush.msra.mxu0 0.0
        %368 = vmatpush.msra.mxu0 0.0
        %369 = vmatpush.msra.mxu0 0.0
        %370 = vmatpush.msra.mxu0 0.0
        %371 = vmatpush.msra.mxu0 0.0
        %372 = vmatpush.msra.mxu0 0.0
        %373 = vmatpush.msra.mxu0 0.0
        %374 = vmatpush.msra.mxu0 %v326
        %375 = vmatmul.f32.gmra.mxu0 %v333
        %v376 = vpop.f32.mrf.mxu0
        %v377 = vadd.f32 %v329, %v376
        %378 = vmatmul.f32.gmra.mxu0 %v336
        %v379 = vpop.f32.mrf.mxu0
        %v380 = vadd.f32 %v329, %v379
        %381 = vmatmul.f32.gmra.mxu0 %v339
        %v382 = vpop.f32.mrf.mxu0
        %v383 = vadd.f32 %v329, %v382
        %384 = vmatmul.f32.gmra.mxu0 %v342
        %v385 = vpop.f32.mrf.mxu0
        %v386 = vadd.f32 %v329, %v385
        %387 = vmatmul.f32.gmra.mxu0 %v345
        %v388 = vpop.f32.mrf.mxu0
        %v389 = vadd.f32 %v329, %v388
        %390 = vmatmul.f32.gmra.mxu0 %v348
        %v391 = vpop.f32.mrf.mxu0
        %v392 = vadd.f32 %v329, %v391
        %393 = vmatmul.f32.gmra.mxu0 %v351
        %v394 = vpop.f32.mrf.mxu0
        %v395 = vadd.f32 %v329, %v394
        %396 = vmatmul.f32.gmra.mxu0 %v354
        %v397 = vpop.f32.mrf.mxu0
        %v398 = vadd.f32 %v329, %v397
        %399 = vmatmul.f32.gmra.mxu0 %v357
        %v400 = vpop.f32.mrf.mxu0
        %v401 = vadd.f32 %v329, %v400
        %402 = vdwg.mxu0
        %v403 = vld [vmem:[%s3] sm:$0xff]
        %v404 = vld [vmem:[%s3 + $0x8] sm:$0xff]
        %v405 = vld [vmem:[%s3 + $0x10] sm:$0xff]
        %v406 = vld [vmem:[%s3 + $0x18] sm:$0xff]
        %v407 = vld [vmem:[%s3 + $0x20] sm:$0xff]
        %v408 = vld [vmem:[%s3 + $0x28] sm:$0xff]
        %v409 = vld [vmem:[%s3 + $0x30] sm:$0xff]
        %v410 = vld [vmem:[%s3 + $0x38] sm:$0xff]
        %v411 = vld [vmem:[%s3 + $0x40] sm:$0xff]
        %v412 = vld [vmem:[%s3 + $0x48] sm:$0xff]
        %v413 = vld [vmem:[%s3 + $0x50] sm:$0xff]
        %v414 = vld [vmem:[%s3 + $0x58] sm:$0xff]
        %v415 = vld [vmem:[#allocation2] sm:$0x1]
        %vm425 = vcmask 1041408
        %v426 = vrot.slane %v377, 6
        %v427 = vrot.slane %v380, 6
        %v428 = vsel %vm425, %v426, %v427
        %v429 = vrot.slane %v383, 6
        %v430 = vsel %vm425, %v427, %v429
        %v431 = vrot.slane %v386, 6
        %v432 = vrot.slane %v389, 6
        %v433 = vsel %vm425, %v431, %v432
        %v434 = vrot.slane %v392, 6
        %v435 = vsel %vm425, %v432, %v434
        %v436 = vrot.slane %v395, 6
        %v437 = vrot.slane %v398, 6
        %v438 = vsel %vm425, %v436, %v437
        %v439 = vrot.slane %v401, 6
        %v440 = vsel %vm425, %v437, %v439
        %v450 = vsel %vm425, 0.0, %v426
        %v451 = vsel %vm425, 0.0, %v431
        %v452 = vsel %vm425, 0.0, %v436
        %vm456 = vcmask 1046528
        %v457 = vrot.slane %v450, 1
        %v458 = vrot.slane %v428, 1
        %v459 = vsel %vm456, %v457, %v458
        %v460 = vrot.slane %v430, 1
        %v461 = vsel %vm456, %v458, %v460
        %v462 = vrot.slane %v429, 1
        %v463 = vsel %vm456, %v460, %v462
        %v464 = vrot.slane %v451, 1
        %v465 = vrot.slane %v433, 1
        %v466 = vsel %vm456, %v464, %v465
        %v467 = vrot.slane %v435, 1
        %v468 = vsel %vm456, %v465, %v467
        %v469 = vrot.slane %v434, 1
        %v470 = vsel %vm456, %v467, %v469
        %v471 = vrot.slane %v452, 1
        %v472 = vrot.slane %v438, 1
        %v473 = vsel %vm456, %v471, %v472
        %v474 = vrot.slane %v440, 1
        %v475 = vsel %vm456, %v472, %v474
        %v476 = vrot.slane %v439, 1
        %v477 = vsel %vm456, %v474, %v476
        %478 = vrot.lane.b32.xlu0 %v459, 32
        %v479 = vpop.permute.xlu0 %478
        %480 = vrot.lane.b32.xlu0 %v461, 32
        %v481 = vpop.permute.xlu0 %480
        %482 = vrot.lane.b32.xlu0 %v463, 32
        %v483 = vpop.permute.xlu0 %482
        %484 = vrot.lane.b32.xlu0 %v466, 32
        %v485 = vpop.permute.xlu0 %484
        %486 = vrot.lane.b32.xlu0 %v468, 32
        %v487 = vpop.permute.xlu0 %486
        %488 = vrot.lane.b32.xlu0 %v470, 32
        %v489 = vpop.permute.xlu0 %488
        %490 = vrot.lane.b32.xlu0 %v473, 32
        %v491 = vpop.permute.xlu0 %490
        %492 = vrot.lane.b32.xlu0 %v475, 32
        %v493 = vpop.permute.xlu0 %492
        %494 = vrot.lane.b32.xlu0 %v477, 32
        %v495 = vpop.permute.xlu0 %494
        %vm505 = vcmask 1045504
        %v506 = vrot.slane %v450, 2
        %v507 = vrot.slane %v428, 2
        %v508 = vsel %vm505, %v506, %v507
        %v509 = vrot.slane %v430, 2
        %v510 = vsel %vm505, %v507, %v509
        %v511 = vrot.slane %v429, 2
        %v512 = vsel %vm505, %v509, %v511
        %v513 = vrot.slane %v451, 2
        %v514 = vrot.slane %v433, 2
        %v515 = vsel %vm505, %v513, %v514
        %v516 = vrot.slane %v435, 2
        %v517 = vsel %vm505, %v514, %v516
        %v518 = vrot.slane %v434, 2
        %v519 = vsel %vm505, %v516, %v518
        %v520 = vrot.slane %v452, 2
        %v521 = vrot.slane %v438, 2
        %v522 = vsel %vm505, %v520, %v521
        %v523 = vrot.slane %v440, 2
        %v524 = vsel %vm505, %v521, %v523
        %v525 = vrot.slane %v439, 2
        %v526 = vsel %vm505, %v523, %v525
        %527 = vrot.lane.b32.xlu0 %v508, 64
        %v528 = vpop.permute.xlu0 %527
        %529 = vrot.lane.b32.xlu0 %v510, 64
        %v530 = vpop.permute.xlu0 %529
        %531 = vrot.lane.b32.xlu0 %v512, 64
        %v532 = vpop.permute.xlu0 %531
        %533 = vrot.lane.b32.xlu0 %v515, 64
        %v534 = vpop.permute.xlu0 %533
        %535 = vrot.lane.b32.xlu0 %v517, 64
        %v536 = vpop.permute.xlu0 %535
        %537 = vrot.lane.b32.xlu0 %v519, 64
        %v538 = vpop.permute.xlu0 %537
        %539 = vrot.lane.b32.xlu0 %v522, 64
        %v540 = vpop.permute.xlu0 %539
        %541 = vrot.lane.b32.xlu0 %v524, 64
        %v542 = vpop.permute.xlu0 %541
        %543 = vrot.lane.b32.xlu0 %v526, 64
        %v544 = vpop.permute.xlu0 %543
        %vm554 = vcmask 261120
        %v555 = vsel %vm554, %v450, %v479
        %v556 = vsel %vm554, %v428, %v481
        %v557 = vsel %vm554, %v430, %v483
        %v558 = vsel %vm554, %v451, %v485
        %v559 = vsel %vm554, %v433, %v487
        %v560 = vsel %vm554, %v435, %v489
        %v561 = vsel %vm554, %v452, %v491
        %v562 = vsel %vm554, %v438, %v493
        %v563 = vsel %vm554, %v440, %v495
        %vm564 = vcmask 523264
        %v565 = vsel %vm564, %v555, %v528
        %v566 = vsel %vm564, %v556, %v530
        %v567 = vsel %vm564, %v557, %v532
        %v568 = vsel %vm564, %v558, %v534
        %v569 = vsel %vm564, %v559, %v536
        %v570 = vsel %vm564, %v560, %v538
        %v571 = vsel %vm564, %v561, %v540
        %v572 = vsel %vm564, %v562, %v542
        %v573 = vsel %vm564, %v563, %v544
        %v575 = vperm.slane %v415, 0
        %vm577 = vcmask 785408
        %v579 = vsel %vm577, %v565, 0
        %v582 = vsel %vm577, %v566, 0
        %v585 = vsel %vm577, %v567, 0
        %v588 = vsel %vm577, %v568, 0
        %v591 = vsel %vm577, %v569, 0
        %v594 = vsel %vm577, %v570, 0
        %v597 = vsel %vm577, %v571, 0
        %v600 = vsel %vm577, %v572, 0
        %v603 = vsel %vm577, %v573, 0
        %605 = vmatpush.msra.mxu0 0.0
        %606 = vmatpush.msra.mxu0 0.0
        %607 = vmatpush.msra.mxu0 0.0
        %608 = vmatpush.msra.mxu0 0.0
        %609 = vmatpush.msra.mxu0 %v414
        %610 = vmatpush.msra.mxu0 %v413
        %611 = vmatpush.msra.mxu0 %v412
        %612 = vmatpush.msra.mxu0 %v411
        %613 = vmatpush.msra.mxu0 %v410
        %614 = vmatpush.msra.mxu0 %v409
        %615 = vmatpush.msra.mxu0 %v408
        %616 = vmatpush.msra.mxu0 %v407
        %617 = vmatpush.msra.mxu0 %v406
        %618 = vmatpush.msra.mxu0 %v405
        %619 = vmatpush.msra.mxu0 %v404
        %620 = vmatpush.msra.mxu0 %v403
        %621 = vmatmul.f32.gmra.mxu0 %v579
        %v622 = vpop.f32.mrf.mxu0
        %v623 = vadd.f32 %v575, %v622
        %624 = vmatmul.f32.gmra.mxu0 %v582
        %v625 = vpop.f32.mrf.mxu0
        %v626 = vadd.f32 %v575, %v625
        %627 = vmatmul.f32.gmra.mxu0 %v585
        %v628 = vpop.f32.mrf.mxu0
        %v629 = vadd.f32 %v575, %v628
        %630 = vmatmul.f32.gmra.mxu0 %v588
        %v631 = vpop.f32.mrf.mxu0
        %v632 = vadd.f32 %v575, %v631
        %633 = vmatmul.f32.gmra.mxu0 %v591
        %v634 = vpop.f32.mrf.mxu0
        %v635 = vadd.f32 %v575, %v634
        %636 = vmatmul.f32.gmra.mxu0 %v594
        %v637 = vpop.f32.mrf.mxu0
        %v638 = vadd.f32 %v575, %v637
        %639 = vmatmul.f32.gmra.mxu0 %v597
        %v640 = vpop.f32.mrf.mxu0
        %v641 = vadd.f32 %v575, %v640
        %642 = vmatmul.f32.gmra.mxu0 %v600
        %v643 = vpop.f32.mrf.mxu0
        %v644 = vadd.f32 %v575, %v643
        %645 = vmatmul.f32.gmra.mxu0 %v603
        %v646 = vpop.f32.mrf.mxu0
        %v647 = vadd.f32 %v575, %v646
        %648 = vdwg.mxu0
        %v649 = vmax.f32 %v623, 0.0
        %v650 = vmax.f32 %v626, 0.0
        %v651 = vmax.f32 %v629, 0.0
        %v652 = vmax.f32 %v632, 0.0
        %v653 = vmax.f32 %v635, 0.0
        %v654 = vmax.f32 %v638, 0.0
        %v655 = vmax.f32 %v641, 0.0
        %v656 = vmax.f32 %v644, 0.0
        %v657 = vmax.f32 %v647, 0.0
        %v658 = vadd.f32 %v649, %v377
        %v659 = vadd.f32 %v650, %v380
        %v660 = vadd.f32 %v651, %v383
        %v661 = vadd.f32 %v652, %v386
        %v662 = vadd.f32 %v653, %v389
        %v663 = vadd.f32 %v654, %v392
        %v664 = vadd.f32 %v655, %v395
        %v665 = vadd.f32 %v656, %v398
        %v666 = vadd.f32 %v657, %v401
        %v667 = vmax.f32 %v658, 0.0
        %v668 = vmax.f32 %v659, 0.0
        %v669 = vmax.f32 %v660, 0.0
        %v670 = vmax.f32 %v661, 0.0
        %v671 = vmax.f32 %v662, 0.0
        %v672 = vmax.f32 %v663, 0.0
        %v673 = vmax.f32 %v664, 0.0
        %v674 = vmax.f32 %v665, 0.0
        %v675 = vmax.f32 %v666, 0.0
        %v676 = vld [vmem:[%s5] sm:$0xff]
        %v677 = vld [vmem:[%s5 + $0x8] sm:$0xff]
        %v678 = vld [vmem:[%s5 + $0x10] sm:$0xff]
        %v679 = vld [vmem:[%s5 + $0x18] sm:$0xff]
        %v680 = vld [vmem:[%s5 + $0x20] sm:$0xff]
        %v681 = vld [vmem:[%s5 + $0x28] sm:$0xff]
        %v682 = vld [vmem:[%s5 + $0x30] sm:$0xff]
        %v683 = vld [vmem:[%s5 + $0x38] sm:$0xff]
        %v684 = vld [vmem:[%s5 + $0x40] sm:$0xff]
        %v685 = vld [vmem:[%s5 + $0x48] sm:$0xff]
        %v686 = vld [vmem:[%s5 + $0x50] sm:$0xff]
        %v687 = vld [vmem:[%s5 + $0x58] sm:$0xff]
        %v688 = vld [vmem:[#allocation4] sm:$0x1]
        %vm698 = vcmask 1043456
        %v699 = vrot.slane %v667, 4
        %v700 = vrot.slane %v668, 4
        %v701 = vsel %vm698, %v699, %v700
        %v702 = vrot.slane %v669, 4
        %v703 = vsel %vm698, %v700, %v702
        %v704 = vrot.slane %v670, 4
        %v705 = vrot.slane %v671, 4
        %v706 = vsel %vm698, %v704, %v705
        %v707 = vrot.slane %v672, 4
        %v708 = vsel %vm698, %v705, %v707
        %v709 = vrot.slane %v673, 4
        %v710 = vrot.slane %v674, 4
        %v711 = vsel %vm698, %v709, %v710
        %v712 = vrot.slane %v675, 4
        %v713 = vsel %vm698, %v710, %v712
        %v723 = vsel %vm698, 0.0, %v699
        %v724 = vsel %vm698, 0.0, %v704
        %v725 = vsel %vm698, 0.0, %v709
        %v729 = vrot.slane %v723, 2
        %v730 = vrot.slane %v701, 2
        %v731 = vsel %vm505, %v729, %v730
        %v732 = vrot.slane %v703, 2
        %v733 = vsel %vm505, %v730, %v732
        %v734 = vrot.slane %v702, 2
        %v735 = vsel %vm505, %v732, %v734
        %v736 = vrot.slane %v724, 2
        %v737 = vrot.slane %v706, 2
        %v738 = vsel %vm505, %v736, %v737
        %v739 = vrot.slane %v708, 2
        %v740 = vsel %vm505, %v737, %v739
        %v741 = vrot.slane %v707, 2
        %v742 = vsel %vm505, %v739, %v741
        %v743 = vrot.slane %v725, 2
        %v744 = vrot.slane %v711, 2
        %v745 = vsel %vm505, %v743, %v744
        %v746 = vrot.slane %v713, 2
        %v747 = vsel %vm505, %v744, %v746
        %v748 = vrot.slane %v712, 2
        %v749 = vsel %vm505, %v746, %v748
        %750 = vrot.lane.b32.xlu0 %v731, 32
        %v751 = vpop.permute.xlu0 %750
        %752 = vrot.lane.b32.xlu0 %v733, 32
        %v753 = vpop.permute.xlu0 %752
        %754 = vrot.lane.b32.xlu0 %v735, 32
        %v755 = vpop.permute.xlu0 %754
        %756 = vrot.lane.b32.xlu0 %v738, 32
        %v757 = vpop.permute.xlu0 %756
        %758 = vrot.lane.b32.xlu0 %v740, 32
        %v759 = vpop.permute.xlu0 %758
        %760 = vrot.lane.b32.xlu0 %v742, 32
        %v761 = vpop.permute.xlu0 %760
        %762 = vrot.lane.b32.xlu0 %v745, 32
        %v763 = vpop.permute.xlu0 %762
        %764 = vrot.lane.b32.xlu0 %v747, 32
        %v765 = vpop.permute.xlu0 %764
        %766 = vrot.lane.b32.xlu0 %v749, 32
        %v767 = vpop.permute.xlu0 %766
        %v777 = vrot.slane %v723, 4
        %v778 = vrot.slane %v701, 4
        %v779 = vsel %vm698, %v777, %v778
        %v780 = vrot.slane %v703, 4
        %v781 = vsel %vm698, %v778, %v780
        %v782 = vrot.slane %v702, 4
        %v783 = vsel %vm698, %v780, %v782
        %v784 = vrot.slane %v724, 4
        %v785 = vrot.slane %v706, 4
        %v786 = vsel %vm698, %v784, %v785
        %v787 = vrot.slane %v708, 4
        %v788 = vsel %vm698, %v785, %v787
        %v789 = vrot.slane %v707, 4
        %v790 = vsel %vm698, %v787, %v789
        %v791 = vrot.slane %v725, 4
        %v792 = vrot.slane %v711, 4
        %v793 = vsel %vm698, %v791, %v792
        %v794 = vrot.slane %v713, 4
        %v795 = vsel %vm698, %v792, %v794
        %v796 = vrot.slane %v712, 4
        %v797 = vsel %vm698, %v794, %v796
        %798 = vrot.lane.b32.xlu0 %v779, 64
        %v799 = vpop.permute.xlu0 %798
        %800 = vrot.lane.b32.xlu0 %v781, 64
        %v801 = vpop.permute.xlu0 %800
        %802 = vrot.lane.b32.xlu0 %v783, 64
        %v803 = vpop.permute.xlu0 %802
        %804 = vrot.lane.b32.xlu0 %v786, 64
        %v805 = vpop.permute.xlu0 %804
        %806 = vrot.lane.b32.xlu0 %v788, 64
        %v807 = vpop.permute.xlu0 %806
        %808 = vrot.lane.b32.xlu0 %v790, 64
        %v809 = vpop.permute.xlu0 %808
        %810 = vrot.lane.b32.xlu0 %v793, 64
        %v811 = vpop.permute.xlu0 %810
        %812 = vrot.lane.b32.xlu0 %v795, 64
        %v813 = vpop.permute.xlu0 %812
        %814 = vrot.lane.b32.xlu0 %v797, 64
        %v815 = vpop.permute.xlu0 %814
        %v825 = vsel %vm554, %v723, %v751
        %v826 = vsel %vm554, %v701, %v753
        %v827 = vsel %vm554, %v703, %v755
        %v828 = vsel %vm554, %v724, %v757
        %v829 = vsel %vm554, %v706, %v759
        %v830 = vsel %vm554, %v708, %v761
        %v831 = vsel %vm554, %v725, %v763
        %v832 = vsel %vm554, %v711, %v765
        %v833 = vsel %vm554, %v713, %v767
        %v834 = vsel %vm564, %v825, %v799
        %v835 = vsel %vm564, %v826, %v801
        %v836 = vsel %vm564, %v827, %v803
        %v837 = vsel %vm564, %v828, %v805
        %v838 = vsel %vm564, %v829, %v807
        %v839 = vsel %vm564, %v830, %v809
        %v840 = vsel %vm564, %v831, %v811
        %v841 = vsel %vm564, %v832, %v813
        %v842 = vsel %vm564, %v833, %v815
        %v844 = vperm.slane %v688, 0
        %v847 = vsel %vm577, %v834, 0
        %v850 = vsel %vm577, %v835, 0
        %v853 = vsel %vm577, %v836, 0
        %v856 = vsel %vm577, %v837, 0
        %v859 = vsel %vm577, %v838, 0
        %v862 = vsel %vm577, %v839, 0
        %v865 = vsel %vm577, %v840, 0
        %v868 = vsel %vm577, %v841, 0
        %v871 = vsel %vm577, %v842, 0
        %873 = vmatpush.msra.mxu0 0.0
        %874 = vmatpush.msra.mxu0 0.0
        %875 = vmatpush.msra.mxu0 0.0
        %876 = vmatpush.msra.mxu0 0.0
        %877 = vmatpush.msra.mxu0 %v687
        %878 = vmatpush.msra.mxu0 %v686
        %879 = vmatpush.msra.mxu0 %v685
        %880 = vmatpush.msra.mxu0 %v684
        %881 = vmatpush.msra.mxu0 %v683
        %882 = vmatpush.msra.mxu0 %v682
        %883 = vmatpush.msra.mxu0 %v681
        %884 = vmatpush.msra.mxu0 %v680
        %885 = vmatpush.msra.mxu0 %v679
        %886 = vmatpush.msra.mxu0 %v678
        %887 = vmatpush.msra.mxu0 %v677
        %888 = vmatpush.msra.mxu0 %v676
        %889 = vmatmul.f32.gmra.mxu0 %v847
        %v890 = vpop.f32.mrf.mxu0
        %v891 = vadd.f32 %v844, %v890
        %892 = vmatmul.f32.gmra.mxu0 %v850
        %v893 = vpop.f32.mrf.mxu0
        %v894 = vadd.f32 %v844, %v893
        %895 = vmatmul.f32.gmra.mxu0 %v853
        %v896 = vpop.f32.mrf.mxu0
        %v897 = vadd.f32 %v844, %v896
        %898 = vmatmul.f32.gmra.mxu0 %v856
        %v899 = vpop.f32.mrf.mxu0
        %v900 = vadd.f32 %v844, %v899
        %901 = vmatmul.f32.gmra.mxu0 %v859
        %v902 = vpop.f32.mrf.mxu0
        %v903 = vadd.f32 %v844, %v902
        %904 = vmatmul.f32.gmra.mxu0 %v862
        %v905 = vpop.f32.mrf.mxu0
        %v906 = vadd.f32 %v844, %v905
        %907 = vmatmul.f32.gmra.mxu0 %v865
        %v908 = vpop.f32.mrf.mxu0
        %v909 = vadd.f32 %v844, %v908
        %910 = vmatmul.f32.gmra.mxu0 %v868
        %v911 = vpop.f32.mrf.mxu0
        %v912 = vadd.f32 %v844, %v911
        %913 = vmatmul.f32.gmra.mxu0 %v871
        %v914 = vpop.f32.mrf.mxu0
        %v915 = vadd.f32 %v844, %v914
        %916 = vdwg.mxu0
        %v917 = vmax.f32 %v891, 0.0
        %v918 = vmax.f32 %v894, 0.0
        %v919 = vmax.f32 %v897, 0.0
        %v920 = vmax.f32 %v900, 0.0
        %v921 = vmax.f32 %v903, 0.0
        %v922 = vmax.f32 %v906, 0.0
        %v923 = vmax.f32 %v909, 0.0
        %v924 = vmax.f32 %v912, 0.0
        %v925 = vmax.f32 %v915, 0.0
        %v926 = vadd.f32 %v917, %v667
        %v927 = vadd.f32 %v918, %v668
        %v928 = vadd.f32 %v919, %v669
        %v929 = vadd.f32 %v920, %v670
        %v930 = vadd.f32 %v921, %v671
        %v931 = vadd.f32 %v922, %v672
        %v932 = vadd.f32 %v923, %v673
        %v933 = vadd.f32 %v924, %v674
        %v934 = vadd.f32 %v925, %v675
        %v935 = vmax.f32 %v926, 0.0
        %v936 = vmax.f32 %v927, 0.0
        %v937 = vmax.f32 %v928, 0.0
        %v938 = vmax.f32 %v929, 0.0
        %v939 = vmax.f32 %v930, 0.0
        %v940 = vmax.f32 %v931, 0.0
        %v941 = vmax.f32 %v932, 0.0
        %v942 = vmax.f32 %v933, 0.0
        %v943 = vmax.f32 %v934, 0.0
        %944 = vst.msk [vmem:[%s315] sm:$0xff] %vm554, %v935
        %945 = vst.msk [vmem:[%s315 + $0x8] sm:$0xff] %vm554, %v936
        %946 = vst.msk [vmem:[%s315 + $0x10] sm:$0xff] %vm554, %v937
        %947 = vst.msk [vmem:[%s315 + $0x18] sm:$0xff] %vm554, %v938
        %948 = vst.msk [vmem:[%s315 + $0x20] sm:$0xff] %vm554, %v939
        %949 = vst.msk [vmem:[%s315 + $0x28] sm:$0xff] %vm554, %v940
        %950 = vst.msk [vmem:[%s315 + $0x30] sm:$0xff] %vm554, %v941
        %951 = vst.msk [vmem:[%s315 + $0x38] sm:$0xff] %vm554, %v942
        %952 = vst.msk [vmem:[%s315 + $0x40] sm:$0xff] %vm554, %v943
        %s953 = smul.u32 3, %s20
        %p954 = scmp.lt.s32.totalorder %s953, 5
        %s955 = scalar_select %p954, %s953, 5
        %s956 = smul.addr %s955, 3
        %s957 = smul.addr %s956, 8
        %s958 = scalar_lea.vmem %s7, %s957
        // Predicated region
        $region57: #{hrl_encoder_forward.4} parent=47 // pred_check
          %p959 = pneg %p190
        $region58: #{hrl_encoder_forward.4} parent=47 // pred_check_branch
          %961 = sbr.rel (%p959) target = $region60
        $region59: #{hrl_encoder_forward.4} parent=47 // pred_region
          %s962 = smul.u32 3, %s20
        $region60: #{hrl_encoder_forward.4} parent=47 // pred_fallthru
          _
      $region48: #{hrl_encoder_forward.4} parent=5 // pred_fallthru
        _
      %p963 = scmp.le.s32.totalorder 2, %s15
      // Predicated region
      $region61: #{hrl_encoder_forward.4} parent=5 // pred_check
        %p964 = pneg %p963
      $region62: #{hrl_encoder_forward.4} parent=5 // pred_check_branch
        %966 = sbr.rel (%p964) target = $region64
      $region63: #{hrl_encoder_forward.4} parent=5 // pred_region
        %s967 = ssub.s32 %s15, 2
        // Predicated region
        $region65: #{hrl_encoder_forward.4} parent=63 // pred_check
          %p968 = pneg %p196
        $region66: #{hrl_encoder_forward.4} parent=63 // pred_check_branch
          %970 = sbr.rel (%p968) target = $region68
        $region67: #{hrl_encoder_forward.4} parent=63 // pred_region
          %s971 = smul.u32 3, %s21
          %p972 = scmp.lt.s32.totalorder %s971, 5
          %s973 = scalar_select %p972, %s971, 5
          %s974 = smul.addr %s973, 3
          %s975 = smul.addr %s974, 8
          %s976 = scalar_lea.vmem %s7, %s975
        $region68: #{hrl_encoder_forward.4} parent=63 // pred_fallthru
          _
      $region64: #{hrl_encoder_forward.4} parent=5 // pred_fallthru
        _
    $region6: #{hrl_encoder_forward.4} parent=1 // loop_footer
      %s19 = sadd.s32 1, %s15
    $region7: #{hrl_encoder_forward.4} parent=1 // loop_footer_branch
      %14 = sbr.rel target = $region3
    $region8: #{hrl_encoder_forward.4} parent=1 // loop_exit
      _
    %977 = vsyncpa [#allocation3], 1
    %s978 = scalar_lea.sflag [#allocation3], 1
    %979 = vsyncpa %s978, 1
    %980 = vsyncpa [#allocation5], 1

// kernel: hrl_encoder_forward.7
$region0: #{hrl_encoder_forward.7}
  #allocation0 [shape = 'u32[]', space=smem, size = 0x4, offset = 0x4, fixed_abs, tag = 'smem constant byte address 0x4 - core index']
  #allocation1 [shape = 'u32[72,128]{1,0:T(1,128)}', space=vmem, size = 0x9000, scoped, tag = 'internal scratch']
  %s0 = inlined_call_operand.vmem [shape: f32[6,8], index: 0, kind: input, shape index: {}]
  %s1 = inlined_call_operand.vmem [shape: f32[6,32], index: 1, kind: input, shape index: {}]
  %s2 = inlined_call_operand.vmem [shape: f32[6,32], index: 2, kind: input, shape index: {}]
  %s3 = inlined_call_operand.vmem [shape: f32[8,32], index: 3, kind: input, shape index: {}]
  %s4 = inlined_call_operand.vmem [shape: f32[1,32], index: 4, kind: input, shape index: {}]
  %s5 = inlined_call_operand.vmem [shape: f32[96,32], index: 5, kind: input, shape index: {}]
  %s6 = inlined_call_operand.vmem [shape: f32[1,32], index: 6, kind: input, shape index: {}]
  %s7 = inlined_call_operand.vmem [shape: f32[6,32], index: 7, kind: output, shape index: {}]
  %s8 = sld [smem:[#allocation0]]
  $region38: #{hrl_encoder_forward.7} parent=0
    _
  %s10 = ssub.s32 1, %s8
  %s11 = scalar_select 0, %s10, %s8
  // Predicated region
  $region2: #{hrl_encoder_forward.7} parent=0 // pred_check
    _
  $region3: #{hrl_encoder_forward.7} parent=0 // pred_check_branch
    %13 = sbr.rel (0) target = $region5
  $region4: #{hrl_encoder_forward.7} parent=0 // pred_region
    _
  $region5: #{hrl_encoder_forward.7} parent=0 // pred_fallthru
    _
  // Predicated region
  $region6: #{hrl_encoder_forward.7} parent=0 // pred_check
    _
  $region7: #{hrl_encoder_forward.7} parent=0 // pred_check_branch
    %15 = sbr.rel (0) target = $region9
  $region8: #{hrl_encoder_forward.7} parent=0 // pred_region
    _
  $region9: #{hrl_encoder_forward.7} parent=0 // pred_fallthru
    _
  // Predicated region
  $region10: #{hrl_encoder_forward.7} parent=0 // pred_check
    _
  $region11: #{hrl_encoder_forward.7} parent=0 // pred_check_branch
    %17 = sbr.rel (0) target = $region13
  $region12: #{hrl_encoder_forward.7} parent=0 // pred_region
    _
  $region13: #{hrl_encoder_forward.7} parent=0 // pred_fallthru
    _
  // Predicated region
  $region14: #{hrl_encoder_forward.7} parent=0 // pred_check
    _
  $region15: #{hrl_encoder_forward.7} parent=0 // pred_check_branch
    %19 = sbr.rel (0) target = $region17
  $region16: #{hrl_encoder_forward.7} parent=0 // pred_region
    _
  $region17: #{hrl_encoder_forward.7} parent=0 // pred_fallthru
    _
  // Predicated region
  $region18: #{hrl_encoder_forward.7} parent=0 // pred_check
    _
  $region19: #{hrl_encoder_forward.7} parent=0 // pred_check_branch
    %21 = sbr.rel (0) target = $region21
  $region20: #{hrl_encoder_forward.7} parent=0 // pred_region
    _
  $region21: #{hrl_encoder_forward.7} parent=0 // pred_fallthru
    _
  // Predicated region
  $region22: #{hrl_encoder_forward.7} parent=0 // pred_check
    _
  $region23: #{hrl_encoder_forward.7} parent=0 // pred_check_branch
    %23 = sbr.rel (0) target = $region25
  $region24: #{hrl_encoder_forward.7} parent=0 // pred_region
    _
  $region25: #{hrl_encoder_forward.7} parent=0 // pred_fallthru
    _
  // Predicated region
  $region26: #{hrl_encoder_forward.7} parent=0 // pred_check
    _
  $region27: #{hrl_encoder_forward.7} parent=0 // pred_check_branch
    %25 = sbr.rel (0) target = $region29
  $region28: #{hrl_encoder_forward.7} parent=0 // pred_region
    _
  $region29: #{hrl_encoder_forward.7} parent=0 // pred_fallthru
    _
  %v26 = vld [vmem:[%s0] sm:$0x3f]
  %v27 = vld [vmem:[%s3] sm:$0xff]
  %v28 = vld [vmem:[%s4] sm:$0x1]
  %v30 = vperm.slane %v28, 0
  %vm32 = vcmask 64512
  %v34 = vsel %vm32, %v26, 0
  %36 = vmatpush.msra.mxu0 0.0
  %37 = vmatpush.msra.mxu0 0.0
  %38 = vmatpush.msra.mxu0 0.0
  %39 = vmatpush.msra.mxu0 0.0
  %40 = vmatpush.msra.mxu0 0.0
  %41 = vmatpush.msra.mxu0 0.0
  %42 = vmatpush.msra.mxu0 0.0
  %43 = vmatpush.msra.mxu0 0.0
  %44 = vmatpush.msra.mxu0 0.0
  %45 = vmatpush.msra.mxu0 0.0
  %46 = vmatpush.msra.mxu0 0.0
  %47 = vmatpush.msra.mxu0 0.0
  %48 = vmatpush.msra.mxu0 0.0
  %49 = vmatpush.msra.mxu0 0.0
  %50 = vmatpush.msra.mxu0 0.0
  %51 = vmatpush.msra.mxu0 %v27
  %52 = vmatmul.f32.gmra.mxu0 %v34
  %v53 = vpop.f32.mrf.mxu0
  %v54 = vadd.f32 %v30, %v53
  %55 = vdwg.mxu0
  %v56 = vld [vmem:[%s1] sm:$0x3f]
  %v57 = vld [vmem:[%s2] sm:$0x3f]
  %59 = vrot.lane.b32.xlu0 %v56, 32
  %v60 = vpop.permute.xlu0 %59
  %63 = vrot.lane.b32.xlu0 %v57, 64
  %v64 = vpop.permute.xlu0 %63
  %vm66 = vcmask 261120
  %v67 = vsel %vm66, %v54, %v60
  %vm68 = vcmask 523264
  %v69 = vsel %vm68, %v67, %v64
  %v70 = vld [vmem:[%s5] sm:$0xff]
  %v71 = vld [vmem:[%s5 + $0x8] sm:$0xff]
  %v72 = vld [vmem:[%s5 + $0x10] sm:$0xff]
  %v73 = vld [vmem:[%s5 + $0x18] sm:$0xff]
  %v74 = vld [vmem:[%s5 + $0x20] sm:$0xff]
  %v75 = vld [vmem:[%s5 + $0x28] sm:$0xff]
  %v76 = vld [vmem:[%s5 + $0x30] sm:$0xff]
  %v77 = vld [vmem:[%s5 + $0x38] sm:$0xff]
  %v78 = vld [vmem:[%s5 + $0x40] sm:$0xff]
  %v79 = vld [vmem:[%s5 + $0x48] sm:$0xff]
  %v80 = vld [vmem:[%s5 + $0x50] sm:$0xff]
  %v81 = vld [vmem:[%s5 + $0x58] sm:$0xff]
  %v82 = vld [vmem:[%s6] sm:$0x1]
  %v84 = vperm.slane %v82, 0
  %vm86 = vcmask 785408
  %v88 = vsel %vm86, %v69, 0
  %90 = vmatpush.msra.mxu0 0.0
  %91 = vmatpush.msra.mxu0 0.0
  %92 = vmatpush.msra.mxu0 0.0
  %93 = vmatpush.msra.mxu0 0.0
  %94 = vmatpush.msra.mxu0 %v81
  %95 = vmatpush.msra.mxu0 %v80
  %96 = vmatpush.msra.mxu0 %v79
  %97 = vmatpush.msra.mxu0 %v78
  %98 = vmatpush.msra.mxu0 %v77
  %99 = vmatpush.msra.mxu0 %v76
  %100 = vmatpush.msra.mxu0 %v75
  %101 = vmatpush.msra.mxu0 %v74
  %102 = vmatpush.msra.mxu0 %v73
  %103 = vmatpush.msra.mxu0 %v72
  %104 = vmatpush.msra.mxu0 %v71
  %105 = vmatpush.msra.mxu0 %v70
  %106 = vmatmul.f32.gmra.mxu0 %v88
  %v107 = vpop.f32.mrf.mxu0
  %v108 = vadd.f32 %v84, %v107
  %109 = vdwg.mxu0
  %vm110 = vcmask 259072
  %111 = vst.msk [vmem:[%s7] sm:$0x3f] %vm110, %v108
  // Predicated region
  $region30: #{hrl_encoder_forward.7} parent=0 // pred_check
    _
  $region31: #{hrl_encoder_forward.7} parent=0 // pred_check_branch
    %113 = sbr.rel (0) target = $region33
  $region32: #{hrl_encoder_forward.7} parent=0 // pred_region
    _
  $region33: #{hrl_encoder_forward.7} parent=0 // pred_fallthru
    _
  // Predicated region
  $region34: #{hrl_encoder_forward.7} parent=0 // pred_check
    _
  $region35: #{hrl_encoder_forward.7} parent=0 // pred_check_branch
    %115 = sbr.rel (0) target = $region37
  $region36: #{hrl_encoder_forward.7} parent=0 // pred_region
    _
  $region37: #{hrl_encoder_forward.7} parent=0 // pred_fallthru
    _

// kernel: hrl_encoder_forward.6
$region0: #{hrl_encoder_forward.6}
  #allocation0 [shape = 'u32[]', space=smem, size = 0x4, offset = 0x4, fixed_abs, tag = 'smem constant byte address 0x4 - core index']
  #allocation1 [shape = 'u32[72,128]{1,0:T(1,128)}', space=vmem, size = 0x9000, scoped, tag = 'internal scratch']
  %s0 = inlined_call_operand.vmem [shape: f32[6,2,32], index: 0, kind: input, shape index: {}]
  %s1 = inlined_call_operand.vmem [shape: f32[32,32], index: 1, kind: input, shape index: {}]
  %s2 = inlined_call_operand.vmem [shape: f32[1,32], index: 2, kind: input, shape index: {}]
  %s3 = inlined_call_operand.vmem [shape: f32[1,32], index: 3, kind: input, shape index: {}]
  %s4 = inlined_call_operand.vmem [shape: f32[1,32], index: 4, kind: input, shape index: {}]
  %s5 = inlined_call_operand.vmem [shape: f32[32,32], index: 5, kind: input, shape index: {}]
  %s6 = inlined_call_operand.vmem [shape: f32[1,32], index: 6, kind: input, shape index: {}]
  %s7 = inlined_call_operand.vmem [shape: f32[32,64], index: 7, kind: input, shape index: {}]
  %s8 = inlined_call_operand.vmem [shape: f32[1,1,64], index: 8, kind: input, shape index: {}]
  %s9 = inlined_call_operand.vmem [shape: f32[32,32], index: 9, kind: input, shape index: {}]
  %s10 = inlined_call_operand.vmem [shape: f32[1,32], index: 10, kind: input, shape index: {}]
  %s11 = inlined_call_operand.vmem [shape: f32[1,32], index: 11, kind: input, shape index: {}]
  %s12 = inlined_call_operand.vmem [shape: f32[1,32], index: 12, kind: input, shape index: {}]
  %s13 = inlined_call_operand.vmem [shape: f32[32,64], index: 13, kind: input, shape index: {}]
  %s14 = inlined_call_operand.vmem [shape: f32[1,64], index: 14, kind: input, shape index: {}]
  %s15 = inlined_call_operand.vmem [shape: f32[64,32], index: 15, kind: input, shape index: {}]
  %s16 = inlined_call_operand.vmem [shape: f32[1,32], index: 16, kind: input, shape index: {}]
  %s17 = inlined_call_operand.vmem [shape: f32[1,32], index: 17, kind: input, shape index: {}]
  %s18 = inlined_call_operand.vmem [shape: f32[1,32], index: 18, kind: input, shape index: {}]
  %s19 = inlined_call_operand.vmem [shape: f32[6,1,32], index: 19, kind: output, shape index: {}]
  %s20 = sld [smem:[#allocation0]]
  $region109: #{hrl_encoder_forward.6} parent=0
    _
  %s22 = ssub.s32 1, %s20
  %s23 = scalar_select 0, %s22, %s20
  loop: start=0, step=1, limit=4
  $region2: #{hrl_encoder_forward.6} parent=0 // loop_pre_header
    _
  $region3: #{hrl_encoder_forward.6} parent=0 // loop_header
    %s25 = sphi 0, %s29
    %p26 = scmp.ge.s32.totalorder %s25, 4
    %s35 = sphi 0, %s37
    %s38 = sphi 0, %s35
    %s39 = sphi 0, %s38
    %s55 = sphi 0, %s39
    %s59 = sphi 0, %s59
    %s61 = sphi 0, %s59
    %s62 = sphi 0, %s61
    %s76 = sphi 0, %s62
    %s80 = sphi 0, %s80
    %s82 = sphi 0, %s80
    %s83 = sphi 0, %s82
    %s97 = sphi 0, %s83
    %s101 = sphi 0, %s101
    %s103 = sphi 0, %s101
    %s104 = sphi 0, %s103
    %s118 = sphi 0, %s104
    %s122 = sphi 0, %s122
    %s124 = sphi 0, %s122
    %s125 = sphi 0, %s124
    %s139 = sphi 0, %s125
    %s143 = sphi 0, %s143
    %s145 = sphi 0, %s143
    %s146 = sphi 0, %s145
    %s160 = sphi 0, %s146
    %s164 = sphi 0, %s164
    %s166 = sphi 0, %s164
    %s167 = sphi 0, %s166
    %s181 = sphi 0, %s167
    %s185 = sphi 0, %s185
    %s187 = sphi 0, %s185
    %s188 = sphi 0, %s187
    %s202 = sphi 0, %s188
    %s206 = sphi 0, %s206
    %s208 = sphi 0, %s206
    %s209 = sphi 0, %s208
    %s223 = sphi 0, %s209
    %s227 = sphi 0, %s227
    %s229 = sphi 0, %s227
    %s230 = sphi 0, %s229
    %s244 = sphi 0, %s230
    %s248 = sphi 0, %s248
    %s250 = sphi 0, %s248
    %s251 = sphi 0, %s250
    %s265 = sphi 0, %s251
    %s269 = sphi 0, %s269
    %s271 = sphi 0, %s269
    %s272 = sphi 0, %s271
    %s286 = sphi 0, %s272
    %s290 = sphi 0, %s290
    %s292 = sphi 0, %s290
    %s293 = sphi 0, %s292
    %s307 = sphi 0, %s293
    %s311 = sphi 0, %s311
    %s313 = sphi 0, %s311
    %s314 = sphi 0, %s313
    %s328 = sphi 0, %s314
    %s332 = sphi 0, %s332
    %s334 = sphi 0, %s332
    %s335 = sphi 0, %s334
    %s349 = sphi 0, %s335
    %s353 = sphi 0, %s353
    %s355 = sphi 0, %s353
    %s356 = sphi 0, %s355
    %s370 = sphi 0, %s356
    %s374 = sphi 0, %s374
    %s376 = sphi 0, %s374
    %s377 = sphi 0, %s376
    %s391 = sphi 0, %s377
    %s395 = sphi 0, %s395
    %s397 = sphi 0, %s395
    %s398 = sphi 0, %s397
    %s412 = sphi 0, %s398
    %s416 = sphi 0, %s416
    %s418 = sphi 0, %s416
    %s419 = sphi 0, %s418
    %s433 = sphi 0, %s419
    %s439 = sphi 0, %s441
    %s442 = sphi 0, %s439
    %s443 = sphi 0, %s442
    %s459 = sphi 0, %s443
  $region4: #{hrl_encoder_forward.6} parent=0 // loop_header_branch
    %28 = sbr.rel (%p26) target = $region8
  $region5: #{hrl_encoder_forward.6} parent=0 // loop_body
    %s30 = ssub.s32 %s25, 1
    %s31 = ssub.s32 %s25, 2
    %s32 = sadd.s32 %s25, 1
    %s33 = ssub.s32 %s25, %s32
    %p34 = scmp.eq.s32.totalorder %s33, 0
    %s36 = sadd.s32 %s35, 1
    %s37 = scalar_select %p34, %s35, %s36
    %p40 = pneg %p34
    %p41 = scmp.eq.s32.totalorder %s25, 1
    %p42 = por %p40, %p41
    %p43 = scmp.ne.s32.totalorder %s35, %s38
    %p44 = scmp.eq.s32.totalorder %s25, 0
    %p45 = por %p43, %p44
    %p46 = scmp.ne.s32.totalorder %s35, %s38
    %p47 = scmp.eq.s32.totalorder %s30, 1
    %p48 = por %p46, %p47
    %p49 = scmp.ne.s32.totalorder %s38, %s39
    %p50 = scmp.eq.s32.totalorder %s30, 0
    %p51 = por %p49, %p50
    %p52 = scmp.ne.s32.totalorder %s38, %s39
    %p53 = scmp.eq.s32.totalorder %s31, 1
    %p54 = por %p52, %p53
    %p56 = scmp.ne.s32.totalorder %s39, %s55
    %p57 = scmp.eq.s32.totalorder %s31, 0
    %p58 = por %p56, %p57
    %s60 = sadd.s32 %s59, 1
    %p63 = scmp.eq.s32.totalorder %s25, 1
    %p64 = scmp.ne.s32.totalorder %s59, %s61
    %p65 = scmp.eq.s32.totalorder %s25, 0
    %p66 = por %p64, %p65
    %p67 = scmp.ne.s32.totalorder %s59, %s61
    %p68 = scmp.eq.s32.totalorder %s30, 1
    %p69 = por %p67, %p68
    %p70 = scmp.ne.s32.totalorder %s61, %s62
    %p71 = scmp.eq.s32.totalorder %s30, 0
    %p72 = por %p70, %p71
    %p73 = scmp.ne.s32.totalorder %s61, %s62
    %p74 = scmp.eq.s32.totalorder %s31, 1
    %p75 = por %p73, %p74
    %p77 = scmp.ne.s32.totalorder %s62, %s76
    %p78 = scmp.eq.s32.totalorder %s31, 0
    %p79 = por %p77, %p78
    %s81 = sadd.s32 %s80, 1
    %p84 = scmp.eq.s32.totalorder %s25, 1
    %p85 = scmp.ne.s32.totalorder %s80, %s82
    %p86 = scmp.eq.s32.totalorder %s25, 0
    %p87 = por %p85, %p86
    %p88 = scmp.ne.s32.totalorder %s80, %s82
    %p89 = scmp.eq.s32.totalorder %s30, 1
    %p90 = por %p88, %p89
    %p91 = scmp.ne.s32.totalorder %s82, %s83
    %p92 = scmp.eq.s32.totalorder %s30, 0
    %p93 = por %p91, %p92
    %p94 = scmp.ne.s32.totalorder %s82, %s83
    %p95 = scmp.eq.s32.totalorder %s31, 1
    %p96 = por %p94, %p95
    %p98 = scmp.ne.s32.totalorder %s83, %s97
    %p99 = scmp.eq.s32.totalorder %s31, 0
    %p100 = por %p98, %p99
    %s102 = sadd.s32 %s101, 1
    %p105 = scmp.eq.s32.totalorder %s25, 1
    %p106 = scmp.ne.s32.totalorder %s101, %s103
    %p107 = scmp.eq.s32.totalorder %s25, 0
    %p108 = por %p106, %p107
    %p109 = scmp.ne.s32.totalorder %s101, %s103
    %p110 = scmp.eq.s32.totalorder %s30, 1
    %p111 = por %p109, %p110
    %p112 = scmp.ne.s32.totalorder %s103, %s104
    %p113 = scmp.eq.s32.totalorder %s30, 0
    %p114 = por %p112, %p113
    %p115 = scmp.ne.s32.totalorder %s103, %s104
    %p116 = scmp.eq.s32.totalorder %s31, 1
    %p117 = por %p115, %p116
    %p119 = scmp.ne.s32.totalorder %s104, %s118
    %p120 = scmp.eq.s32.totalorder %s31, 0
    %p121 = por %p119, %p120
    %s123 = sadd.s32 %s122, 1
    %p126 = scmp.eq.s32.totalorder %s25, 1
    %p127 = scmp.ne.s32.totalorder %s122, %s124
    %p128 = scmp.eq.s32.totalorder %s25, 0
    %p129 = por %p127, %p128
    %p130 = scmp.ne.s32.totalorder %s122, %s124
    %p131 = scmp.eq.s32.totalorder %s30, 1
    %p132 = por %p130, %p131
    %p133 = scmp.ne.s32.totalorder %s124, %s125
    %p134 = scmp.eq.s32.totalorder %s30, 0
    %p135 = por %p133, %p134
    %p136 = scmp.ne.s32.totalorder %s124, %s125
    %p137 = scmp.eq.s32.totalorder %s31, 1
    %p138 = por %p136, %p137
    %p140 = scmp.ne.s32.totalorder %s125, %s139
    %p141 = scmp.eq.s32.totalorder %s31, 0
    %p142 = por %p140, %p141
    %s144 = sadd.s32 %s143, 1
    %p147 = scmp.eq.s32.totalorder %s25, 1
    %p148 = scmp.ne.s32.totalorder %s143, %s145
    %p149 = scmp.eq.s32.totalorder %s25, 0
    %p150 = por %p148, %p149
    %p151 = scmp.ne.s32.totalorder %s143, %s145
    %p152 = scmp.eq.s32.totalorder %s30, 1
    %p153 = por %p151, %p152
    %p154 = scmp.ne.s32.totalorder %s145, %s146
    %p155 = scmp.eq.s32.totalorder %s30, 0
    %p156 = por %p154, %p155
    %p157 = scmp.ne.s32.totalorder %s145, %s146
    %p158 = scmp.eq.s32.totalorder %s31, 1
    %p159 = por %p157, %p158
    %p161 = scmp.ne.s32.totalorder %s146, %s160
    %p162 = scmp.eq.s32.totalorder %s31, 0
    %p163 = por %p161, %p162
    %s165 = sadd.s32 %s164, 1
    %p168 = scmp.eq.s32.totalorder %s25, 1
    %p169 = scmp.ne.s32.totalorder %s164, %s166
    %p170 = scmp.eq.s32.totalorder %s25, 0
    %p171 = por %p169, %p170
    %p172 = scmp.ne.s32.totalorder %s164, %s166
    %p173 = scmp.eq.s32.totalorder %s30, 1
    %p174 = por %p172, %p173
    %p175 = scmp.ne.s32.totalorder %s166, %s167
    %p176 = scmp.eq.s32.totalorder %s30, 0
    %p177 = por %p175, %p176
    %p178 = scmp.ne.s32.totalorder %s166, %s167
    %p179 = scmp.eq.s32.totalorder %s31, 1
    %p180 = por %p178, %p179
    %p182 = scmp.ne.s32.totalorder %s167, %s181
    %p183 = scmp.eq.s32.totalorder %s31, 0
    %p184 = por %p182, %p183
    %s186 = sadd.s32 %s185, 1
    %p189 = scmp.eq.s32.totalorder %s25, 1
    %p190 = scmp.ne.s32.totalorder %s185, %s187
    %p191 = scmp.eq.s32.totalorder %s25, 0
    %p192 = por %p190, %p191
    %p193 = scmp.ne.s32.totalorder %s185, %s187
    %p194 = scmp.eq.s32.totalorder %s30, 1
    %p195 = por %p193, %p194
    %p196 = scmp.ne.s32.totalorder %s187, %s188
    %p197 = scmp.eq.s32.totalorder %s30, 0
    %p198 = por %p196, %p197
    %p199 = scmp.ne.s32.totalorder %s187, %s188
    %p200 = scmp.eq.s32.totalorder %s31, 1
    %p201 = por %p199, %p200
    %p203 = scmp.ne.s32.totalorder %s188, %s202
    %p204 = scmp.eq.s32.totalorder %s31, 0
    %p205 = por %p203, %p204
    %s207 = sadd.s32 %s206, 1
    %p210 = scmp.eq.s32.totalorder %s25, 1
    %p211 = scmp.ne.s32.totalorder %s206, %s208
    %p212 = scmp.eq.s32.totalorder %s25, 0
    %p213 = por %p211, %p212
    %p214 = scmp.ne.s32.totalorder %s206, %s208
    %p215 = scmp.eq.s32.totalorder %s30, 1
    %p216 = por %p214, %p215
    %p217 = scmp.ne.s32.totalorder %s208, %s209
    %p218 = scmp.eq.s32.totalorder %s30, 0
    %p219 = por %p217, %p218
    %p220 = scmp.ne.s32.totalorder %s208, %s209
    %p221 = scmp.eq.s32.totalorder %s31, 1
    %p222 = por %p220, %p221
    %p224 = scmp.ne.s32.totalorder %s209, %s223
    %p225 = scmp.eq.s32.totalorder %s31, 0
    %p226 = por %p224, %p225
    %s228 = sadd.s32 %s227, 1
    %p231 = scmp.eq.s32.totalorder %s25, 1
    %p232 = scmp.ne.s32.totalorder %s227, %s229
    %p233 = scmp.eq.s32.totalorder %s25, 0
    %p234 = por %p232, %p233
    %p235 = scmp.ne.s32.totalorder %s227, %s229
    %p236 = scmp.eq.s32.totalorder %s30, 1
    %p237 = por %p235, %p236
    %p238 = scmp.ne.s32.totalorder %s229, %s230
    %p239 = scmp.eq.s32.totalorder %s30, 0
    %p240 = por %p238, %p239
    %p241 = scmp.ne.s32.totalorder %s229, %s230
    %p242 = scmp.eq.s32.totalorder %s31, 1
    %p243 = por %p241, %p242
    %p245 = scmp.ne.s32.totalorder %s230, %s244
    %p246 = scmp.eq.s32.totalorder %s31, 0
    %p247 = por %p245, %p246
    %s249 = sadd.s32 %s248, 1
    %p252 = scmp.eq.s32.totalorder %s25, 1
    %p253 = scmp.ne.s32.totalorder %s248, %s250
    %p254 = scmp.eq.s32.totalorder %s25, 0
    %p255 = por %p253, %p254
    %p256 = scmp.ne.s32.totalorder %s248, %s250
    %p257 = scmp.eq.s32.totalorder %s30, 1
    %p258 = por %p256, %p257
    %p259 = scmp.ne.s32.totalorder %s250, %s251
    %p260 = scmp.eq.s32.totalorder %s30, 0
    %p261 = por %p259, %p260
    %p262 = scmp.ne.s32.totalorder %s250, %s251
    %p263 = scmp.eq.s32.totalorder %s31, 1
    %p264 = por %p262, %p263
    %p266 = scmp.ne.s32.totalorder %s251, %s265
    %p267 = scmp.eq.s32.totalorder %s31, 0
    %p268 = por %p266, %p267
    %s270 = sadd.s32 %s269, 1
    %p273 = scmp.eq.s32.totalorder %s25, 1
    %p274 = scmp.ne.s32.totalorder %s269, %s271
    %p275 = scmp.eq.s32.totalorder %s25, 0
    %p276 = por %p274, %p275
    %p277 = scmp.ne.s32.totalorder %s269, %s271
    %p278 = scmp.eq.s32.totalorder %s30, 1
    %p279 = por %p277, %p278
    %p280 = scmp.ne.s32.totalorder %s271, %s272
    %p281 = scmp.eq.s32.totalorder %s30, 0
    %p282 = por %p280, %p281
    %p283 = scmp.ne.s32.totalorder %s271, %s272
    %p284 = scmp.eq.s32.totalorder %s31, 1
    %p285 = por %p283, %p284
    %p287 = scmp.ne.s32.totalorder %s272, %s286
    %p288 = scmp.eq.s32.totalorder %s31, 0
    %p289 = por %p287, %p288
    %s291 = sadd.s32 %s290, 1
    %p294 = scmp.eq.s32.totalorder %s25, 1
    %p295 = scmp.ne.s32.totalorder %s290, %s292
    %p296 = scmp.eq.s32.totalorder %s25, 0
    %p297 = por %p295, %p296
    %p298 = scmp.ne.s32.totalorder %s290, %s292
    %p299 = scmp.eq.s32.totalorder %s30, 1
    %p300 = por %p298, %p299
    %p301 = scmp.ne.s32.totalorder %s292, %s293
    %p302 = scmp.eq.s32.totalorder %s30, 0
    %p303 = por %p301, %p302
    %p304 = scmp.ne.s32.totalorder %s292, %s293
    %p305 = scmp.eq.s32.totalorder %s31, 1
    %p306 = por %p304, %p305
    %p308 = scmp.ne.s32.totalorder %s293, %s307
    %p309 = scmp.eq.s32.totalorder %s31, 0
    %p310 = por %p308, %p309
    %s312 = sadd.s32 %s311, 1
    %p315 = scmp.eq.s32.totalorder %s25, 1
    %p316 = scmp.ne.s32.totalorder %s311, %s313
    %p317 = scmp.eq.s32.totalorder %s25, 0
    %p318 = por %p316, %p317
    %p319 = scmp.ne.s32.totalorder %s311, %s313
    %p320 = scmp.eq.s32.totalorder %s30, 1
    %p321 = por %p319, %p320
    %p322 = scmp.ne.s32.totalorder %s313, %s314
    %p323 = scmp.eq.s32.totalorder %s30, 0
    %p324 = por %p322, %p323
    %p325 = scmp.ne.s32.totalorder %s313, %s314
    %p326 = scmp.eq.s32.totalorder %s31, 1
    %p327 = por %p325, %p326
    %p329 = scmp.ne.s32.totalorder %s314, %s328
    %p330 = scmp.eq.s32.totalorder %s31, 0
    %p331 = por %p329, %p330
    %s333 = sadd.s32 %s332, 1
    %p336 = scmp.eq.s32.totalorder %s25, 1
    %p337 = scmp.ne.s32.totalorder %s332, %s334
    %p338 = scmp.eq.s32.totalorder %s25, 0
    %p339 = por %p337, %p338
    %p340 = scmp.ne.s32.totalorder %s332, %s334
    %p341 = scmp.eq.s32.totalorder %s30, 1
    %p342 = por %p340, %p341
    %p343 = scmp.ne.s32.totalorder %s334, %s335
    %p344 = scmp.eq.s32.totalorder %s30, 0
    %p345 = por %p343, %p344
    %p346 = scmp.ne.s32.totalorder %s334, %s335
    %p347 = scmp.eq.s32.totalorder %s31, 1
    %p348 = por %p346, %p347
    %p350 = scmp.ne.s32.totalorder %s335, %s349
    %p351 = scmp.eq.s32.totalorder %s31, 0
    %p352 = por %p350, %p351
    %s354 = sadd.s32 %s353, 1
    %p357 = scmp.eq.s32.totalorder %s25, 1
    %p358 = scmp.ne.s32.totalorder %s353, %s355
    %p359 = scmp.eq.s32.totalorder %s25, 0
    %p360 = por %p358, %p359
    %p361 = scmp.ne.s32.totalorder %s353, %s355
    %p362 = scmp.eq.s32.totalorder %s30, 1
    %p363 = por %p361, %p362
    %p364 = scmp.ne.s32.totalorder %s355, %s356
    %p365 = scmp.eq.s32.totalorder %s30, 0
    %p366 = por %p364, %p365
    %p367 = scmp.ne.s32.totalorder %s355, %s356
    %p368 = scmp.eq.s32.totalorder %s31, 1
    %p369 = por %p367, %p368
    %p371 = scmp.ne.s32.totalorder %s356, %s370
    %p372 = scmp.eq.s32.totalorder %s31, 0
    %p373 = por %p371, %p372
    %s375 = sadd.s32 %s374, 1
    %p378 = scmp.eq.s32.totalorder %s25, 1
    %p379 = scmp.ne.s32.totalorder %s374, %s376
    %p380 = scmp.eq.s32.totalorder %s25, 0
    %p381 = por %p379, %p380
    %p382 = scmp.ne.s32.totalorder %s374, %s376
    %p383 = scmp.eq.s32.totalorder %s30, 1
    %p384 = por %p382, %p383
    %p385 = scmp.ne.s32.totalorder %s376, %s377
    %p386 = scmp.eq.s32.totalorder %s30, 0
    %p387 = por %p385, %p386
    %p388 = scmp.ne.s32.totalorder %s376, %s377
    %p389 = scmp.eq.s32.totalorder %s31, 1
    %p390 = por %p388, %p389
    %p392 = scmp.ne.s32.totalorder %s377, %s391
    %p393 = scmp.eq.s32.totalorder %s31, 0
    %p394 = por %p392, %p393
    %s396 = sadd.s32 %s395, 1
    %p399 = scmp.eq.s32.totalorder %s25, 1
    %p400 = scmp.ne.s32.totalorder %s395, %s397
    %p401 = scmp.eq.s32.totalorder %s25, 0
    %p402 = por %p400, %p401
    %p403 = scmp.ne.s32.totalorder %s395, %s397
    %p404 = scmp.eq.s32.totalorder %s30, 1
    %p405 = por %p403, %p404
    %p406 = scmp.ne.s32.totalorder %s397, %s398
    %p407 = scmp.eq.s32.totalorder %s30, 0
    %p408 = por %p406, %p407
    %p409 = scmp.ne.s32.totalorder %s397, %s398
    %p410 = scmp.eq.s32.totalorder %s31, 1
    %p411 = por %p409, %p410
    %p413 = scmp.ne.s32.totalorder %s398, %s412
    %p414 = scmp.eq.s32.totalorder %s31, 0
    %p415 = por %p413, %p414
    %s417 = sadd.s32 %s416, 1
    %p420 = scmp.eq.s32.totalorder %s25, 1
    %p421 = scmp.ne.s32.totalorder %s416, %s418
    %p422 = scmp.eq.s32.totalorder %s25, 0
    %p423 = por %p421, %p422
    %p424 = scmp.ne.s32.totalorder %s416, %s418
    %p425 = scmp.eq.s32.totalorder %s30, 1
    %p426 = por %p424, %p425
    %p427 = scmp.ne.s32.totalorder %s418, %s419
    %p428 = scmp.eq.s32.totalorder %s30, 0
    %p429 = por %p427, %p428
    %p430 = scmp.ne.s32.totalorder %s418, %s419
    %p431 = scmp.eq.s32.totalorder %s31, 1
    %p432 = por %p430, %p431
    %p434 = scmp.ne.s32.totalorder %s419, %s433
    %p435 = scmp.eq.s32.totalorder %s31, 0
    %p436 = por %p434, %p435
    %s437 = ssub.s32 %s25, %s32
    %p438 = scmp.eq.s32.totalorder %s437, 0
    %s440 = sadd.s32 %s439, 1
    %s441 = scalar_select %p438, %s439, %s440
    %p444 = pneg %p438
    %p445 = scmp.eq.s32.totalorder %s25, 1
    %p446 = por %p444, %p445
    %p447 = scmp.ne.s32.totalorder %s439, %s442
    %p448 = scmp.eq.s32.totalorder %s25, 0
    %p449 = por %p447, %p448
    %p450 = scmp.ne.s32.totalorder %s439, %s442
    %p451 = scmp.eq.s32.totalorder %s30, 1
    %p452 = por %p450, %p451
    %p453 = scmp.ne.s32.totalorder %s442, %s443
    %p454 = scmp.eq.s32.totalorder %s30, 0
    %p455 = por %p453, %p454
    %p456 = scmp.ne.s32.totalorder %s442, %s443
    %p457 = scmp.eq.s32.totalorder %s31, 1
    %p458 = por %p456, %p457
    %p460 = scmp.ne.s32.totalorder %s443, %s459
    %p461 = scmp.eq.s32.totalorder %s31, 0
    %p462 = por %p460, %p461
    %p463 = scmp.le.s32.totalorder 1, %s25
    %p464 = scmp.lt.s32.totalorder %s25, 3
    %p465 = pnand %p463, %p464
    %p466 = pneg %p465
    // Predicated region
    $region9: #{hrl_encoder_forward.6} parent=5 // pred_check
      _
    $region10: #{hrl_encoder_forward.6} parent=5 // pred_check_branch
      %468 = sbr.rel (%p465) target = $region12
    $region11: #{hrl_encoder_forward.6} parent=5 // pred_region
      %s469 = ssub.s32 %s25, 1
      // Predicated region
      $region13: #{hrl_encoder_forward.6} parent=11 // pred_check
        %p470 = pneg %p72
      $region14: #{hrl_encoder_forward.6} parent=11 // pred_check_branch
        %472 = sbr.rel (%p470) target = $region16
      $region15: #{hrl_encoder_forward.6} parent=11 // pred_region
        _
      $region16: #{hrl_encoder_forward.6} parent=11 // pred_fallthru
        _
      // Predicated region
      $region17: #{hrl_encoder_forward.6} parent=11 // pred_check
        %p473 = pneg %p93
      $region18: #{hrl_encoder_forward.6} parent=11 // pred_check_branch
        %475 = sbr.rel (%p473) target = $region20
      $region19: #{hrl_encoder_forward.6} parent=11 // pred_region
        _
      $region20: #{hrl_encoder_forward.6} parent=11 // pred_fallthru
        _
      // Predicated region
      $region21: #{hrl_encoder_forward.6} parent=11 // pred_check
        %p476 = pneg %p114
      $region22: #{hrl_encoder_forward.6} parent=11 // pred_check_branch
        %478 = sbr.rel (%p476) target = $region24
      $region23: #{hrl_encoder_forward.6} parent=11 // pred_region
        _
      $region24: #{hrl_encoder_forward.6} parent=11 // pred_fallthru
        _
      // Predicated region
      $region25: #{hrl_encoder_forward.6} parent=11 // pred_check
        %p479 = pneg %p135
      $region26: #{hrl_encoder_forward.6} parent=11 // pred_check_branch
        %481 = sbr.rel (%p479) target = $region28
      $region27: #{hrl_encoder_forward.6} parent=11 // pred_region
        _
      $region28: #{hrl_encoder_forward.6} parent=11 // pred_fallthru
        _
      // Predicated region
      $region29: #{hrl_encoder_forward.6} parent=11 // pred_check
        %p482 = pneg %p156
      $region30: #{hrl_encoder_forward.6} parent=11 // pred_check_branch
        %484 = sbr.rel (%p482) target = $region32
      $region31: #{hrl_encoder_forward.6} parent=11 // pred_region
        _
      $region32: #{hrl_encoder_forward.6} parent=11 // pred_fallthru
        _
      // Predicated region
      $region33: #{hrl_encoder_forward.6} parent=11 // pred_check
        %p485 = pneg %p177
      $region34: #{hrl_encoder_forward.6} parent=11 // pred_check_branch
        %487 = sbr.rel (%p485) target = $region36
      $region35: #{hrl_encoder_forward.6} parent=11 // pred_region
        _
      $region36: #{hrl_encoder_forward.6} parent=11 // pred_fallthru
        _
      // Predicated region
      $region37: #{hrl_encoder_forward.6} parent=11 // pred_check
        %p488 = pneg %p198
      $region38: #{hrl_encoder_forward.6} parent=11 // pred_check_branch
        %490 = sbr.rel (%p488) target = $region40
      $region39: #{hrl_encoder_forward.6} parent=11 // pred_region
        _
      $region40: #{hrl_encoder_forward.6} parent=11 // pred_fallthru
        _
      // Predicated region
      $region41: #{hrl_encoder_forward.6} parent=11 // pred_check
        %p491 = pneg %p219
      $region42: #{hrl_encoder_forward.6} parent=11 // pred_check_branch
        %493 = sbr.rel (%p491) target = $region44
      $region43: #{hrl_encoder_forward.6} parent=11 // pred_region
        _
      $region44: #{hrl_encoder_forward.6} parent=11 // pred_fallthru
        _
      // Predicated region
      $region45: #{hrl_encoder_forward.6} parent=11 // pred_check
        %p494 = pneg %p240
      $region46: #{hrl_encoder_forward.6} parent=11 // pred_check_branch
        %496 = sbr.rel (%p494) target = $region48
      $region47: #{hrl_encoder_forward.6} parent=11 // pred_region
        _
      $region48: #{hrl_encoder_forward.6} parent=11 // pred_fallthru
        _
      // Predicated region
      $region49: #{hrl_encoder_forward.6} parent=11 // pred_check
        %p497 = pneg %p261
      $region50: #{hrl_encoder_forward.6} parent=11 // pred_check_branch
        %499 = sbr.rel (%p497) target = $region52
      $region51: #{hrl_encoder_forward.6} parent=11 // pred_region
        _
      $region52: #{hrl_encoder_forward.6} parent=11 // pred_fallthru
        _
      // Predicated region
      $region53: #{hrl_encoder_forward.6} parent=11 // pred_check
        %p500 = pneg %p282
      $region54: #{hrl_encoder_forward.6} parent=11 // pred_check_branch
        %502 = sbr.rel (%p500) target = $region56
      $region55: #{hrl_encoder_forward.6} parent=11 // pred_region
        _
      $region56: #{hrl_encoder_forward.6} parent=11 // pred_fallthru
        _
      // Predicated region
      $region57: #{hrl_encoder_forward.6} parent=11 // pred_check
        %p503 = pneg %p303
      $region58: #{hrl_encoder_forward.6} parent=11 // pred_check_branch
        %505 = sbr.rel (%p503) target = $region60
      $region59: #{hrl_encoder_forward.6} parent=11 // pred_region
        _
      $region60: #{hrl_encoder_forward.6} parent=11 // pred_fallthru
        _
      // Predicated region
      $region61: #{hrl_encoder_forward.6} parent=11 // pred_check
        %p506 = pneg %p324
      $region62: #{hrl_encoder_forward.6} parent=11 // pred_check_branch
        %508 = sbr.rel (%p506) target = $region64
      $region63: #{hrl_encoder_forward.6} parent=11 // pred_region
        _
      $region64: #{hrl_encoder_forward.6} parent=11 // pred_fallthru
        _
      // Predicated region
      $region65: #{hrl_encoder_forward.6} parent=11 // pred_check
        %p509 = pneg %p345
      $region66: #{hrl_encoder_forward.6} parent=11 // pred_check_branch
        %511 = sbr.rel (%p509) target = $region68
      $region67: #{hrl_encoder_forward.6} parent=11 // pred_region
        _
      $region68: #{hrl_encoder_forward.6} parent=11 // pred_fallthru
        _
      // Predicated region
      $region69: #{hrl_encoder_forward.6} parent=11 // pred_check
        %p512 = pneg %p366
      $region70: #{hrl_encoder_forward.6} parent=11 // pred_check_branch
        %514 = sbr.rel (%p512) target = $region72
      $region71: #{hrl_encoder_forward.6} parent=11 // pred_region
        _
      $region72: #{hrl_encoder_forward.6} parent=11 // pred_fallthru
        _
      // Predicated region
      $region73: #{hrl_encoder_forward.6} parent=11 // pred_check
        %p515 = pneg %p387
      $region74: #{hrl_encoder_forward.6} parent=11 // pred_check_branch
        %517 = sbr.rel (%p515) target = $region76
      $region75: #{hrl_encoder_forward.6} parent=11 // pred_region
        _
      $region76: #{hrl_encoder_forward.6} parent=11 // pred_fallthru
        _
      // Predicated region
      $region77: #{hrl_encoder_forward.6} parent=11 // pred_check
        %p518 = pneg %p408
      $region78: #{hrl_encoder_forward.6} parent=11 // pred_check_branch
        %520 = sbr.rel (%p518) target = $region80
      $region79: #{hrl_encoder_forward.6} parent=11 // pred_region
        _
      $region80: #{hrl_encoder_forward.6} parent=11 // pred_fallthru
        _
      // Predicated region
      $region81: #{hrl_encoder_forward.6} parent=11 // pred_check
        %p521 = pneg %p429
      $region82: #{hrl_encoder_forward.6} parent=11 // pred_check_branch
        %523 = sbr.rel (%p521) target = $region84
      $region83: #{hrl_encoder_forward.6} parent=11 // pred_region
        _
      $region84: #{hrl_encoder_forward.6} parent=11 // pred_fallthru
        _
    $region12: #{hrl_encoder_forward.6} parent=5 // pred_fallthru
      _
    %p524 = scmp.lt.s32.totalorder %s25, 2
    // Predicated region
    $region85: #{hrl_encoder_forward.6} parent=5 // pred_check
      %p525 = pneg %p524
    $region86: #{hrl_encoder_forward.6} parent=5 // pred_check_branch
      %527 = sbr.rel (%p525) target = $region88
    $region87: #{hrl_encoder_forward.6} parent=5 // pred_region
      // Predicated region
      $region89: #{hrl_encoder_forward.6} parent=87 // pred_check
        %p528 = pneg %p45
      $region90: #{hrl_encoder_forward.6} parent=87 // pred_check_branch
        %530 = sbr.rel (%p528) target = $region92
      $region91: #{hrl_encoder_forward.6} parent=87 // pred_region
        %s531 = smul.u32 3, %s25
        %p532 = scmp.lt.s32.totalorder %s531, 5
        %s533 = scalar_select %p532, %s531, 5
        %s534 = smul.addr %s533, 2
        %s535 = scalar_lea.vmem %s0, %s534
        %s536 = smul.u32 3, %s25
      $region92: #{hrl_encoder_forward.6} parent=87 // pred_fallthru
        _
    $region88: #{hrl_encoder_forward.6} parent=5 // pred_fallthru
      _
    %p537 = scmp.le.s32.totalorder 1, %s25
    %p538 = scmp.lt.s32.totalorder %s25, 3
    %p539 = pnand %p537, %p538
    %p540 = pneg %p539
    // Predicated region
    $region93: #{hrl_encoder_forward.6} parent=5 // pred_check
      _
    $region94: #{hrl_encoder_forward.6} parent=5 // pred_check_branch
      %542 = sbr.rel (%p539) target = $region96
    $region95: #{hrl_encoder_forward.6} parent=5 // pred_region
      %s543 = ssub.s32 %s25, 1
      %s544 = smul.u32 3, %s30
      %p545 = scmp.lt.s32.totalorder %s544, 5
      %s546 = scalar_select %p545, %s544, 5
      %s547 = smul.addr %s546, 2
      %s548 = scalar_lea.vmem %s0, %s547
      %p549 = pneg %p51
      %p550 = pneg %p48
      %p551 = pneg %p72
      %p552 = pneg %p69
      %p553 = pneg %p93
      %p554 = pneg %p90
      %p555 = pneg %p114
      %p556 = pneg %p111
      %p557 = pneg %p135
      %p558 = pneg %p132
      %p559 = pneg %p156
      %p560 = pneg %p153
      %p561 = pneg %p177
      %p562 = pneg %p174
      %p563 = pneg %p198
      %p564 = pneg %p195
      %p565 = pneg %p219
      %p566 = pneg %p216
      %p567 = pneg %p240
      %p568 = pneg %p237
      %p569 = pneg %p261
      %p570 = pneg %p258
      %p571 = pneg %p282
      %p572 = pneg %p279
      %p573 = pneg %p303
      %p574 = pneg %p300
      %p575 = pneg %p324
      %p576 = pneg %p321
      %p577 = pneg %p345
      %p578 = pneg %p342
      %p579 = pneg %p366
      %p580 = pneg %p363
      %p581 = pneg %p387
      %p582 = pneg %p384
      %p583 = pneg %p408
      %p584 = pneg %p405
      %p585 = pneg %p429
      %p586 = pneg %p426
      %p587 = pneg %p455
      %p588 = pneg %p452
      %s589 = smul.u32 3, %s30
      %p590 = scmp.lt.s32.totalorder %s589, 5
      %s591 = scalar_select %p590, %s589, 5
      %s592 = scalar_lea.vmem %s19, %s591
      %s593 = smul.u32 3, %s30
      %p594 = scmp.lt.s32.totalorder %s593, 5
      %s595 = scalar_select %p594, %s593, 5
      %s596 = smul.addr %s595, 2
      %s597 = scalar_lea.vmem %s0, %s596
      %s598 = smul.u32 3, %s30
      %s599 = smul.u32 3, %s30
      %p600 = scmp.lt.s32.totalorder %s599, 5
      %s601 = scalar_select %p600, %s599, 5
      %s602 = scalar_lea.vmem %s19, %s601
      %s603 = smul.u32 3, %s30
      %v604 = vld [vmem:[%s597] sm:$0x3]
      %v605 = vld [vmem:[%s597 + $0x2] sm:$0x3]
      %v606 = vld [vmem:[%s597 + $0x4] sm:$0x3]
      %v607 = vld [vmem:[%s1] sm:$0xff]
      %v608 = vld [vmem:[%s1 + $0x8] sm:$0xff]
      %v609 = vld [vmem:[%s1 + $0x10] sm:$0xff]
      %v610 = vld [vmem:[%s1 + $0x18] sm:$0xff]
      %v611 = vld [vmem:[%s2] sm:$0x1]
      %v613 = vperm.slane %v611, 0
      %v618 = vrot.slane %v604, 1
      %vm619 = vcmask 1041409
      %v620 = vsel %vm619, %v605, %v618
      %v621 = vrot.slane %v606, 7
      %vm622 = vcmask 1042434
      %v623 = vsel %vm622, %v621, %v620
      %vm624 = vcmask 261120
      %v625 = vsel %vm624, %v623, 0
      %627 = vmatpush.msra.mxu0 0.0
      %628 = vmatpush.msra.mxu0 0.0
      %629 = vmatpush.msra.mxu0 0.0
      %630 = vmatpush.msra.mxu0 0.0
      %631 = vmatpush.msra.mxu0 0.0
      %632 = vmatpush.msra.mxu0 0.0
      %633 = vmatpush.msra.mxu0 0.0
      %634 = vmatpush.msra.mxu0 0.0
      %635 = vmatpush.msra.mxu0 0.0
      %636 = vmatpush.msra.mxu0 0.0
      %637 = vmatpush.msra.mxu0 0.0
      %638 = vmatpush.msra.mxu0 0.0
      %639 = vmatpush.msra.mxu0 %v610
      %640 = vmatpush.msra.mxu0 %v609
      %641 = vmatpush.msra.mxu0 %v608
      %642 = vmatpush.msra.mxu0 %v607
      %643 = vmatmul.f32.gmra.mxu0 %v625
      %v644 = vpop.f32.mrf.mxu0
      %v645 = vadd.f32 %v613, %v644
      %646 = vdwg.mxu0
      %v648 = vrot.slane %v645, 7
      %v649 = vrot.slane %v645, 1
      %v653 = vadd.f32 %v604, %v648
      %v654 = vadd.f32 %v605, %v645
      %v655 = vadd.f32 %v606, %v649
      %v656 = vld [vmem:[%s3] sm:$0x1]
      %v657 = vld [vmem:[%s4] sm:$0x1]
      %v661 = vrot.slane %v654, 7
      %v662 = vsel %vm622, %v661, %v653
      %v663 = vrot.slane %v655, 6
      %vm664 = vcmask 1043459
      %v665 = vsel %vm664, %v663, %v662
      %vm667 = vcmask 257025
      %v668 = vsel %vm667, %v665, 0.0
      %669 = vadd.xlane.f32.xlu0 %v668
      %v670 = vpop.xlane.xlu0 %669
      %v671 = vrcp.pop 32.0
      %v672 = vmul.f32 32.0, %v671
      %v673 = vsub.f32 1.0, %v672
      %v674 = vmul.f32 %v671, %v673
      %v675 = vadd.f32 %v671, %v674
      %vm676 = vweird.f32 %v671
      %v677 = vsel %vm676, %v671, %v675
      %v678 = vmul.f32 %v670, %v677
      %v680 = vrot.slane %v678, 1
      %v681 = vrot.slane %v678, 2
      %v685 = vsub.f32 %v653, %v678
      %v686 = vsub.f32 %v654, %v680
      %v687 = vsub.f32 %v655, %v681
      %v688 = vmul.f32 %v685, %v685
      %v689 = vmul.f32 %v686, %v686
      %v690 = vmul.f32 %v687, %v687
      %v694 = vrot.slane %v689, 7
      %v695 = vsel %vm622, %v694, %v688
      %v696 = vrot.slane %v690, 6
      %v697 = vsel %vm664, %v696, %v695
      %v699 = vsel %vm667, %v697, 0.0
      %700 = vadd.xlane.f32.xlu0 %v699
      %v701 = vpop.xlane.xlu0 %700
      %v702 = vmul.f32 %v701, %v677
      %v703 = vadd.f32 %v702, 1e-05
      %v704 = vrsqrt.pop %v703
      %v705 = vmul.f32 %v704, %v703
      %v706 = vmul.f32 %v705, %v704
      %v707 = vmul.f32 0.5, %v706
      %v708 = vsub.f32 1.5, %v707
      %v709 = vmul.f32 %v704, %v708
      %vm710 = vweird.f32 %v703
      %vm711 = vweird.f32 %v704
      %vm712 = vmor %vm710, %vm711
      %v713 = vsel %vm712, %v704, %v709
      %v715 = vrot.slane %v713, 1
      %v716 = vrot.slane %v713, 2
      %v720 = vmul.f32 %v685, %v713
      %v721 = vmul.f32 %v686, %v715
      %v722 = vmul.f32 %v687, %v716
      %v724 = vperm.slane %v656, 0
      %v726 = vmul.f32 %v720, %v724
      %v727 = vmul.f32 %v721, %v724
      %v728 = vmul.f32 %v722, %v724
      %v730 = vperm.slane %v657, 0
      %v732 = vadd.f32 %v726, %v730
      %v733 = vadd.f32 %v727, %v730
      %v734 = vadd.f32 %v728, %v730
      %v735 = vld [vmem:[%s5] sm:$0xff]
      %v736 = vld [vmem:[%s5 + $0x8] sm:$0xff]
      %v737 = vld [vmem:[%s5 + $0x10] sm:$0xff]
      %v738 = vld [vmem:[%s5 + $0x18] sm:$0xff]
      %v739 = vld [vmem:[%s6] sm:$0x1]
      %v741 = vperm.slane %v739, 0
      %v746 = vrot.slane %v732, 1
      %v747 = vsel %vm619, %v733, %v746
      %v748 = vrot.slane %v734, 7
      %v749 = vsel %vm622, %v748, %v747
      %v750 = vsel %vm624, %v749, 0
      %752 = vmatpush.msra.mxu0 0.0
      %753 = vmatpush.msra.mxu0 0.0
      %754 = vmatpush.msra.mxu0 0.0
      %755 = vmatpush.msra.mxu0 0.0
      %756 = vmatpush.msra.mxu0 0.0
      %757 = vmatpush.msra.mxu0 0.0
      %758 = vmatpush.msra.mxu0 0.0
      %759 = vmatpush.msra.mxu0 0.0
      %760 = vmatpush.msra.mxu0 0.0
      %761 = vmatpush.msra.mxu0 0.0
      %762 = vmatpush.msra.mxu0 0.0
      %763 = vmatpush.msra.mxu0 0.0
      %764 = vmatpush.msra.mxu0 %v738
      %765 = vmatpush.msra.mxu0 %v737
      %766 = vmatpush.msra.mxu0 %v736
      %767 = vmatpush.msra.mxu0 %v735
      %768 = vmatmul.f32.gmra.mxu0 %v750
      %v769 = vpop.f32.mrf.mxu0
      %v770 = vadd.f32 %v741, %v769
      %771 = vdwg.mxu0
      %v772 = vld [vmem:[%s7] sm:$0xff]
      %v773 = vld [vmem:[%s7 + $0x8] sm:$0xff]
      %v774 = vld [vmem:[%s7 + $0x10] sm:$0xff]
      %v775 = vld [vmem:[%s7 + $0x18] sm:$0xff]
      %v776 = vld [vmem:[%s8] sm:$0x1]
      %v778 = vperm.slane %v776, 0
      %779 = vst [vmem:[#allocation1] ss:$4 sm:$0xff] %v604
      %s780 = scalar_lea.vmem [#allocation1], 1
      %781 = vst [vmem:[%s780] ss:$4 sm:$0xff] %v605
      %s782 = scalar_lea.vmem [#allocation1], 2
      %783 = vst [vmem:[%s782] ss:$4 sm:$0xff] %v606
      %v784 = vld.sshfl [vmem:[#allocation1] sm:$0xff pattern:$0x73625140]
      %785 = vst [vmem:[#allocation1] ss:$4 sm:$0xff] %v778
      %s786 = scalar_lea.vmem [#allocation1], 1
      %787 = vst [vmem:[%s786] ss:$4 sm:$0xff] %v778
      %s788 = scalar_lea.vmem [#allocation1], 2
      %789 = vst [vmem:[%s788] ss:$4 sm:$0xff] %v778
      %v790 = vld.sshfl [vmem:[#allocation1] sm:$0xff pattern:$0x73625140]
      %v792 = vsel %vm624, %v784, 0
      %794 = vmatpush.msra.mxu0 0.0
      %795 = vmatpush.msra.mxu0 0.0
      %796 = vmatpush.msra.mxu0 0.0
      %797 = vmatpush.msra.mxu0 0.0
      %798 = vmatpush.msra.mxu0 0.0
      %799 = vmatpush.msra.mxu0 0.0
      %800 = vmatpush.msra.mxu0 0.0
      %801 = vmatpush.msra.mxu0 0.0
      %802 = vmatpush.msra.mxu0 0.0
      %803 = vmatpush.msra.mxu0 0.0
      %804 = vmatpush.msra.mxu0 0.0
      %805 = vmatpush.msra.mxu0 0.0
      %806 = vmatpush.msra.mxu0 %v775
      %807 = vmatpush.msra.mxu0 %v774
      %808 = vmatpush.msra.mxu0 %v773
      %809 = vmatpush.msra.mxu0 %v772
      %810 = vmatmul.f32.gmra.mxu0 %v792
      %v811 = vpop.f32.mrf.mxu0
      %v812 = vadd.f32 %v790, %v811
      %813 = vdwg.mxu0
      %v815 = vrot.slane %v812, 2
      %v816 = vrot.slane %v812, 4
      %v818 = vrot.slane %v770, 1
      %v819 = vrot.slane %v770, 2
      %v820 = vsel %vm624, %v770, 0
      %v822 = vsel %vm624, %v812, 0
      %824 = vmatpush.xpose.msra.mxu0 0.0
      %825 = vmatpush.xpose.msra.mxu0 0.0
      %826 = vmatpush.xpose.msra.mxu0 0.0
      %827 = vmatpush.xpose.msra.mxu0 0.0
      %828 = vmatpush.xpose.msra.mxu0 0.0
      %829 = vmatpush.xpose.msra.mxu0 0.0
      %830 = vmatpush.xpose.msra.mxu0 0.0
      %831 = vmatpush.xpose.msra.mxu0 0.0
      %832 = vmatpush.xpose.msra.mxu0 0.0
      %833 = vmatpush.xpose.msra.mxu0 0.0
      %834 = vmatpush.xpose.msra.mxu0 0.0
      %835 = vmatpush.xpose.msra.mxu0 0.0
      %836 = vmatpush.xpose.msra.mxu0 0.0
      %837 = vmatpush.xpose.msra.mxu0 0.0
      %838 = vmatpush.xpose.msra.mxu0 0.0
      %839 = vmatpush.xpose.msra.mxu0 %v822
      %840 = vmatmul.f32.gmra.mxu0 %v820
      %v841 = vpop.f32.mrf.mxu0
      %v842 = vadd.f32 0.0, %v841
      %843 = vdwg.mxu0
      %v844 = vsel %vm624, %v818, 0
      %v846 = vsel %vm624, %v815, 0
      %848 = vmatpush.xpose.msra.mxu0 0.0
      %849 = vmatpush.xpose.msra.mxu0 0.0
      %850 = vmatpush.xpose.msra.mxu0 0.0
      %851 = vmatpush.xpose.msra.mxu0 0.0
      %852 = vmatpush.xpose.msra.mxu0 0.0
      %853 = vmatpush.xpose.msra.mxu0 0.0
      %854 = vmatpush.xpose.msra.mxu0 0.0
      %855 = vmatpush.xpose.msra.mxu0 0.0
      %856 = vmatpush.xpose.msra.mxu0 0.0
      %857 = vmatpush.xpose.msra.mxu0 0.0
      %858 = vmatpush.xpose.msra.mxu0 0.0
      %859 = vmatpush.xpose.msra.mxu0 0.0
      %860 = vmatpush.xpose.msra.mxu0 0.0
      %861 = vmatpush.xpose.msra.mxu0 0.0
      %862 = vmatpush.xpose.msra.mxu0 0.0
      %863 = vmatpush.xpose.msra.mxu0 %v846
      %864 = vmatmul.f32.gmra.mxu0 %v844
      %v865 = vpop.f32.mrf.mxu0
      %v866 = vadd.f32 0.0, %v865
      %867 = vdwg.mxu0
      %v868 = vsel %vm624, %v819, 0
      %v870 = vsel %vm624, %v816, 0
      %872 = vmatpush.xpose.msra.mxu0 0.0
      %873 = vmatpush.xpose.msra.mxu0 0.0
      %874 = vmatpush.xpose.msra.mxu0 0.0
      %875 = vmatpush.xpose.msra.mxu0 0.0
      %876 = vmatpush.xpose.msra.mxu0 0.0
      %877 = vmatpush.xpose.msra.mxu0 0.0
      %878 = vmatpush.xpose.msra.mxu0 0.0
      %879 = vmatpush.xpose.msra.mxu0 0.0
      %880 = vmatpush.xpose.msra.mxu0 0.0
      %881 = vmatpush.xpose.msra.mxu0 0.0
      %882 = vmatpush.xpose.msra.mxu0 0.0
      %883 = vmatpush.xpose.msra.mxu0 0.0
      %884 = vmatpush.xpose.msra.mxu0 0.0
      %885 = vmatpush.xpose.msra.mxu0 0.0
      %886 = vmatpush.xpose.msra.mxu0 0.0
      %887 = vmatpush.xpose.msra.mxu0 %v870
      %888 = vmatmul.f32.gmra.mxu0 %v868
      %v889 = vpop.f32.mrf.mxu0
      %v890 = vadd.f32 0.0, %v889
      %891 = vdwg.mxu0
      %v892 = vmul.f32 %v842, 0.17677669
      %v893 = vmul.f32 %v866, 0.17677669
      %v894 = vmul.f32 %v890, 0.17677669
      %vm895 = vcmask 8192
      %v896 = vsel %vm895, %v892, -inf
      %897 = vmax.xlane.f32.xlu0 %v896
      %v898 = vpop.xlane.xlu0 %897
      %v899 = vsel %vm895, %v893, -inf
      %900 = vmax.xlane.f32.xlu0 %v899
      %v901 = vpop.xlane.xlu0 %900
      %v902 = vsel %vm895, %v894, -inf
      %903 = vmax.xlane.f32.xlu0 %v902
      %v904 = vpop.xlane.xlu0 %903
      %v905 = vsub.f32 %v892, %v898
      %v906 = vsub.f32 %v893, %v901
      %v907 = vsub.f32 %v894, %v904
      %v908 = vmul.f32 %v905, 1.442695
      %v909 = vpow.pop %v908
      %v910 = vmul.f32 %v906, 1.442695
      %v911 = vpow.pop %v910
      %v912 = vmul.f32 %v907, 1.442695
      %v913 = vpow.pop %v912
      %v914 = vsel %vm895, %v909, 0.0
      %915 = vadd.xlane.f32.xlu0 %v914
      %v916 = vpop.xlane.xlu0 %915
      %v917 = vsel %vm895, %v911, 0.0
      %918 = vadd.xlane.f32.xlu0 %v917
      %v919 = vpop.xlane.xlu0 %918
      %v920 = vsel %vm895, %v913, 0.0
      %921 = vadd.xlane.f32.xlu0 %v920
      %v922 = vpop.xlane.xlu0 %921
      %v923 = vrcp.pop %v916
      %v924 = vmul.f32 %v916, %v923
      %v925 = vsub.f32 1.0, %v924
      %v926 = vmul.f32 %v923, %v925
      %v927 = vadd.f32 %v923, %v926
      %vm928 = vweird.f32 %v916
      %vm929 = vweird.f32 %v923
      %vm930 = vmor %vm928, %vm929
      %v931 = vsel %vm930, %v923, %v927
      %v932 = vand.u32 2147483647, %v916
      %vm933 = vcmp.eq.f32.partialorder %v932, 8.507059e+37
      %v934 = vand.u32 %v916, 2147483648
      %v935 = vor.u32 1.1754944e-38, %v934
      %v936 = vsel %vm933, %v935, %v931
      %v937 = vmul.f32 %v909, %v936
      %v938 = vrcp.pop %v919
      %v939 = vmul.f32 %v919, %v938
      %v940 = vsub.f32 1.0, %v939
      %v941 = vmul.f32 %v938, %v940
      %v942 = vadd.f32 %v938, %v941
      %vm943 = vweird.f32 %v919
      %vm944 = vweird.f32 %v938
      %vm945 = vmor %vm943, %vm944
      %v946 = vsel %vm945, %v938, %v942
      %v947 = vand.u32 2147483647, %v919
      %vm948 = vcmp.eq.f32.partialorder %v947, 8.507059e+37
      %v949 = vand.u32 %v919, 2147483648
      %v950 = vor.u32 1.1754944e-38, %v949
      %v951 = vsel %vm948, %v950, %v946
      %v952 = vmul.f32 %v911, %v951
      %v953 = vrcp.pop %v922
      %v954 = vmul.f32 %v922, %v953
      %v955 = vsub.f32 1.0, %v954
      %v956 = vmul.f32 %v953, %v955
      %v957 = vadd.f32 %v953, %v956
      %vm958 = vweird.f32 %v922
      %vm959 = vweird.f32 %v953
      %vm960 = vmor %vm958, %vm959
      %v961 = vsel %vm960, %v953, %v957
      %v962 = vand.u32 2147483647, %v922
      %vm963 = vcmp.eq.f32.partialorder %v962, 8.507059e+37
      %v964 = vand.u32 %v922, 2147483648
      %v965 = vor.u32 1.1754944e-38, %v964
      %v966 = vsel %vm963, %v965, %v961
      %v967 = vmul.f32 %v913, %v966
      %968 = vst [vmem:[#allocation1] ss:$4 sm:$0xff] %v812
      %v969 = vld.sshfl [vmem:[#allocation1] sm:$0xff pattern:$0x73625140]
      %970 = vrot.lane.b32.xlu0 %v969, 96
      %v971 = vpop.permute.xlu0 %970
      %vm972 = vcmask 15360
      %v974 = vsel %vm972, %v937, 0
      %vm976 = vcmask 1041408
      %v977 = vsel %vm976, %v971, 0
      %979 = vmatpush.msra.mxu0 0.0
      %980 = vmatpush.msra.mxu0 0.0
      %981 = vmatpush.msra.mxu0 0.0
      %982 = vmatpush.msra.mxu0 0.0
      %983 = vmatpush.msra.mxu0 0.0
      %984 = vmatpush.msra.mxu0 0.0
      %985 = vmatpush.msra.mxu0 0.0
      %986 = vmatpush.msra.mxu0 0.0
      %987 = vmatpush.msra.mxu0 0.0
      %988 = vmatpush.msra.mxu0 0.0
      %989 = vmatpush.msra.mxu0 0.0
      %990 = vmatpush.msra.mxu0 0.0
      %991 = vmatpush.msra.mxu0 0.0
      %992 = vmatpush.msra.mxu0 0.0
      %993 = vmatpush.msra.mxu0 0.0
      %994 = vmatpush.msra.mxu0 %v977
      %995 = vmatmul.f32.gmra.mxu0 %v974
      %v996 = vpop.f32.mrf.mxu0
      %v997 = vadd.f32 0.0, %v996
      %998 = vdwg.mxu0
      %999 = vst [vmem:[#allocation1] ss:$4 sm:$0xff] %v815
      %v1000 = vld.sshfl [vmem:[#allocation1] sm:$0xff pattern:$0x73625140]
      %1001 = vrot.lane.b32.xlu0 %v1000, 96
      %v1002 = vpop.permute.xlu0 %1001
      %v1004 = vsel %vm972, %v952, 0
      %v1006 = vsel %vm976, %v1002, 0
      %1008 = vmatpush.msra.mxu0 0.0
      %1009 = vmatpush.msra.mxu0 0.0
      %1010 = vmatpush.msra.mxu0 0.0
      %1011 = vmatpush.msra.mxu0 0.0
      %1012 = vmatpush.msra.mxu0 0.0
      %1013 = vmatpush.msra.mxu0 0.0
      %1014 = vmatpush.msra.mxu0 0.0
      %1015 = vmatpush.msra.mxu0 0.0
      %1016 = vmatpush.msra.mxu0 0.0
      %1017 = vmatpush.msra.mxu0 0.0
      %1018 = vmatpush.msra.mxu0 0.0
      %1019 = vmatpush.msra.mxu0 0.0
      %1020 = vmatpush.msra.mxu0 0.0
      %1021 = vmatpush.msra.mxu0 0.0
      %1022 = vmatpush.msra.mxu0 0.0
      %1023 = vmatpush.msra.mxu0 %v1006
      %1024 = vmatmul.f32.gmra.mxu0 %v1004
      %v1025 = vpop.f32.mrf.mxu0
      %v1026 = vadd.f32 0.0, %v1025
      %1027 = vdwg.mxu0
      %1028 = vst [vmem:[#allocation1] ss:$4 sm:$0xff] %v816
      %v1029 = vld.sshfl [vmem:[#allocation1] sm:$0xff pattern:$0x73625140]
      %1030 = vrot.lane.b32.xlu0 %v1029, 96
      %v1031 = vpop.permute.xlu0 %1030
      %v1033 = vsel %vm972, %v967, 0
      %v1035 = vsel %vm976, %v1031, 0
      %1037 = vmatpush.msra.mxu0 0.0
      %1038 = vmatpush.msra.mxu0 0.0
      %1039 = vmatpush.msra.mxu0 0.0
      %1040 = vmatpush.msra.mxu0 0.0
      %1041 = vmatpush.msra.mxu0 0.0
      %1042 = vmatpush.msra.mxu0 0.0
      %1043 = vmatpush.msra.mxu0 0.0
      %1044 = vmatpush.msra.mxu0 0.0
      %1045 = vmatpush.msra.mxu0 0.0
      %1046 = vmatpush.msra.mxu0 0.0
      %1047 = vmatpush.msra.mxu0 0.0
      %1048 = vmatpush.msra.mxu0 0.0
      %1049 = vmatpush.msra.mxu0 0.0
      %1050 = vmatpush.msra.mxu0 0.0
      %1051 = vmatpush.msra.mxu0 0.0
      %1052 = vmatpush.msra.mxu0 %v1035
      %1053 = vmatmul.f32.gmra.mxu0 %v1033
      %v1054 = vpop.f32.mrf.mxu0
      %v1055 = vadd.f32 0.0, %v1054
      %1056 = vdwg.mxu0
      %v1057 = vld [vmem:[%s9] sm:$0xff]
      %v1058 = vld [vmem:[%s9 + $0x8] sm:$0xff]
      %v1059 = vld [vmem:[%s9 + $0x10] sm:$0xff]
      %v1060 = vld [vmem:[%s9 + $0x18] sm:$0xff]
      %v1061 = vld [vmem:[%s10] sm:$0x1]
      %v1063 = vperm.slane %v1061, 0
      %v1068 = vrot.slane %v1026, 7
      %v1069 = vsel %vm619, %v1068, %v997
      %v1070 = vrot.slane %v1055, 6
      %v1071 = vsel %vm622, %v1070, %v1069
      %v1072 = vsel %vm624, %v1071, 0
      %1074 = vmatpush.msra.mxu0 0.0
      %1075 = vmatpush.msra.mxu0 0.0
      %1076 = vmatpush.msra.mxu0 0.0
      %1077 = vmatpush.msra.mxu0 0.0
      %1078 = vmatpush.msra.mxu0 0.0
      %1079 = vmatpush.msra.mxu0 0.0
      %1080 = vmatpush.msra.mxu0 0.0
      %1081 = vmatpush.msra.mxu0 0.0
      %1082 = vmatpush.msra.mxu0 0.0
      %1083 = vmatpush.msra.mxu0 0.0
      %1084 = vmatpush.msra.mxu0 0.0
      %1085 = vmatpush.msra.mxu0 0.0
      %1086 = vmatpush.msra.mxu0 %v1060
      %1087 = vmatpush.msra.mxu0 %v1059
      %1088 = vmatpush.msra.mxu0 %v1058
      %1089 = vmatpush.msra.mxu0 %v1057
      %1090 = vmatmul.f32.gmra.mxu0 %v1072
      %v1091 = vpop.f32.mrf.mxu0
      %v1092 = vadd.f32 %v1063, %v1091
      %1093 = vdwg.mxu0
      %v1095 = vrot.slane %v1092, 7
      %v1096 = vrot.slane %v1092, 1
      %v1100 = vadd.f32 %v732, %v1095
      %v1101 = vadd.f32 %v733, %v1092
      %v1102 = vadd.f32 %v734, %v1096
      %v1103 = vld [vmem:[%s11] sm:$0x1]
      %v1104 = vld [vmem:[%s12] sm:$0x1]
      %v1108 = vrot.slane %v1101, 7
      %v1109 = vsel %vm622, %v1108, %v1100
      %v1110 = vrot.slane %v1102, 6
      %v1111 = vsel %vm664, %v1110, %v1109
      %v1113 = vsel %vm667, %v1111, 0.0
      %1114 = vadd.xlane.f32.xlu0 %v1113
      %v1115 = vpop.xlane.xlu0 %1114
      %v1116 = vmul.f32 %v1115, %v677
      %v1118 = vrot.slane %v1116, 1
      %v1119 = vrot.slane %v1116, 2
      %v1123 = vsub.f32 %v1100, %v1116
      %v1124 = vsub.f32 %v1101, %v1118
      %v1125 = vsub.f32 %v1102, %v1119
      %v1126 = vmul.f32 %v1123, %v1123
      %v1127 = vmul.f32 %v1124, %v1124
      %v1128 = vmul.f32 %v1125, %v1125
      %v1132 = vrot.slane %v1127, 7
      %v1133 = vsel %vm622, %v1132, %v1126
      %v1134 = vrot.slane %v1128, 6
      %v1135 = vsel %vm664, %v1134, %v1133
      %v1137 = vsel %vm667, %v1135, 0.0
      %1138 = vadd.xlane.f32.xlu0 %v1137
      %v1139 = vpop.xlane.xlu0 %1138
      %v1140 = vmul.f32 %v1139, %v677
      %v1141 = vadd.f32 %v1140, 1e-05
      %v1142 = vrsqrt.pop %v1141
      %v1143 = vmul.f32 %v1142, %v1141
      %v1144 = vmul.f32 %v1143, %v1142
      %v1145 = vmul.f32 0.5, %v1144
      %v1146 = vsub.f32 1.5, %v1145
      %v1147 = vmul.f32 %v1142, %v1146
      %vm1148 = vweird.f32 %v1141
      %vm1149 = vweird.f32 %v1142
      %vm1150 = vmor %vm1148, %vm1149
      %v1151 = vsel %vm1150, %v1142, %v1147
      %v1153 = vrot.slane %v1151, 1
      %v1154 = vrot.slane %v1151, 2
      %v1158 = vmul.f32 %v1123, %v1151
      %v1159 = vmul.f32 %v1124, %v1153
      %v1160 = vmul.f32 %v1125, %v1154
      %v1162 = vperm.slane %v1103, 0
      %v1164 = vmul.f32 %v1158, %v1162
      %v1165 = vmul.f32 %v1159, %v1162
      %v1166 = vmul.f32 %v1160, %v1162
      %v1168 = vperm.slane %v1104, 0
      %v1170 = vadd.f32 %v1164, %v1168
      %v1171 = vadd.f32 %v1165, %v1168
      %v1172 = vadd.f32 %v1166, %v1168
      %v1173 = vld [vmem:[%s13] sm:$0xff]
      %v1174 = vld [vmem:[%s13 + $0x8] sm:$0xff]
      %v1175 = vld [vmem:[%s13 + $0x10] sm:$0xff]
      %v1176 = vld [vmem:[%s13 + $0x18] sm:$0xff]
      %v1177 = vld [vmem:[%s14] sm:$0x1]
      %v1179 = vperm.slane %v1177, 0
      %v1184 = vrot.slane %v1170, 1
      %v1185 = vsel %vm619, %v1171, %v1184
      %v1186 = vrot.slane %v1172, 7
      %v1187 = vsel %vm622, %v1186, %v1185
      %v1188 = vsel %vm624, %v1187, 0
      %1190 = vmatpush.msra.mxu0 0.0
      %1191 = vmatpush.msra.mxu0 0.0
      %1192 = vmatpush.msra.mxu0 0.0
      %1193 = vmatpush.msra.mxu0 0.0
      %1194 = vmatpush.msra.mxu0 0.0
      %1195 = vmatpush.msra.mxu0 0.0
      %1196 = vmatpush.msra.mxu0 0.0
      %1197 = vmatpush.msra.mxu0 0.0
      %1198 = vmatpush.msra.mxu0 0.0
      %1199 = vmatpush.msra.mxu0 0.0
      %1200 = vmatpush.msra.mxu0 0.0
      %1201 = vmatpush.msra.mxu0 0.0
      %1202 = vmatpush.msra.mxu0 %v1176
      %1203 = vmatpush.msra.mxu0 %v1175
      %1204 = vmatpush.msra.mxu0 %v1174
      %1205 = vmatpush.msra.mxu0 %v1173
      %1206 = vmatmul.f32.gmra.mxu0 %v1188
      %v1207 = vpop.f32.mrf.mxu0
      %v1208 = vadd.f32 %v1179, %v1207
      %1209 = vdwg.mxu0
      %v1210 = vmax.f32 %v1208, 0.0
      %v1211 = vld [vmem:[%s15] sm:$0xff]
      %v1212 = vld [vmem:[%s15 + $0x8] sm:$0xff]
      %v1213 = vld [vmem:[%s15 + $0x10] sm:$0xff]
      %v1214 = vld [vmem:[%s15 + $0x18] sm:$0xff]
      %v1215 = vld [vmem:[%s15 + $0x20] sm:$0xff]
      %v1216 = vld [vmem:[%s15 + $0x28] sm:$0xff]
      %v1217 = vld [vmem:[%s15 + $0x30] sm:$0xff]
      %v1218 = vld [vmem:[%s15 + $0x38] sm:$0xff]
      %v1219 = vld [vmem:[%s16] sm:$0x1]
      %v1221 = vperm.slane %v1219, 0
      %vm1223 = vcmask 523264
      %v1225 = vsel %vm1223, %v1210, 0
      %1227 = vmatpush.msra.mxu0 0.0
      %1228 = vmatpush.msra.mxu0 0.0
      %1229 = vmatpush.msra.mxu0 0.0
      %1230 = vmatpush.msra.mxu0 0.0
      %1231 = vmatpush.msra.mxu0 0.0
      %1232 = vmatpush.msra.mxu0 0.0
      %1233 = vmatpush.msra.mxu0 0.0
      %1234 = vmatpush.msra.mxu0 0.0
      %1235 = vmatpush.msra.mxu0 %v1218
      %1236 = vmatpush.msra.mxu0 %v1217
      %1237 = vmatpush.msra.mxu0 %v1216
      %1238 = vmatpush.msra.mxu0 %v1215
      %1239 = vmatpush.msra.mxu0 %v1214
      %1240 = vmatpush.msra.mxu0 %v1213
      %1241 = vmatpush.msra.mxu0 %v1212
      %1242 = vmatpush.msra.mxu0 %v1211
      %1243 = vmatmul.f32.gmra.mxu0 %v1225
      %v1244 = vpop.f32.mrf.mxu0
      %v1245 = vadd.f32 %v1221, %v1244
      %1246 = vdwg.mxu0
      %v1248 = vrot.slane %v1245, 7
      %v1249 = vrot.slane %v1245, 1
      %v1253 = vadd.f32 %v1170, %v1248
      %v1254 = vadd.f32 %v1171, %v1245
      %v1255 = vadd.f32 %v1172, %v1249
      %v1256 = vld [vmem:[%s17] sm:$0x1]
      %v1257 = vld [vmem:[%s18] sm:$0x1]
      %v1261 = vrot.slane %v1254, 7
      %v1262 = vsel %vm622, %v1261, %v1253
      %v1263 = vrot.slane %v1255, 6
      %v1264 = vsel %vm664, %v1263, %v1262
      %v1266 = vsel %vm667, %v1264, 0.0
      %1267 = vadd.xlane.f32.xlu0 %v1266
      %v1268 = vpop.xlane.xlu0 %1267
      %v1269 = vmul.f32 %v1268, %v677
      %v1271 = vrot.slane %v1269, 1
      %v1272 = vrot.slane %v1269, 2
      %v1276 = vsub.f32 %v1253, %v1269
      %v1277 = vsub.f32 %v1254, %v1271
      %v1278 = vsub.f32 %v1255, %v1272
      %v1279 = vmul.f32 %v1276, %v1276
      %v1280 = vmul.f32 %v1277, %v1277
      %v1281 = vmul.f32 %v1278, %v1278
      %v1285 = vrot.slane %v1280, 7
      %v1286 = vsel %vm622, %v1285, %v1279
      %v1287 = vrot.slane %v1281, 6
      %v1288 = vsel %vm664, %v1287, %v1286
      %v1290 = vsel %vm667, %v1288, 0.0
      %1291 = vadd.xlane.f32.xlu0 %v1290
      %v1292 = vpop.xlane.xlu0 %1291
      %v1293 = vmul.f32 %v1292, %v677
      %v1294 = vadd.f32 %v1293, 1e-05
      %v1295 = vrsqrt.pop %v1294
      %v1296 = vmul.f32 %v1295, %v1294
      %v1297 = vmul.f32 %v1296, %v1295
      %v1298 = vmul.f32 0.5, %v1297
      %v1299 = vsub.f32 1.5, %v1298
      %v1300 = vmul.f32 %v1295, %v1299
      %vm1301 = vweird.f32 %v1294
      %vm1302 = vweird.f32 %v1295
      %vm1303 = vmor %vm1301, %vm1302
      %v1304 = vsel %vm1303, %v1295, %v1300
      %v1306 = vrot.slane %v1304, 1
      %v1307 = vrot.slane %v1304, 2
      %v1311 = vmul.f32 %v1276, %v1304
      %v1312 = vmul.f32 %v1277, %v1306
      %v1313 = vmul.f32 %v1278, %v1307
      %v1315 = vperm.slane %v1256, 0
      %v1317 = vmul.f32 %v1311, %v1315
      %v1318 = vmul.f32 %v1312, %v1315
      %v1319 = vmul.f32 %v1313, %v1315
      %v1321 = vperm.slane %v1257, 0
      %v1323 = vadd.f32 %v1317, %v1321
      %v1324 = vadd.f32 %v1318, %v1321
      %v1325 = vadd.f32 %v1319, %v1321
      %vm1326 = vcmask 254977
      %1327 = vst.msk [vmem:[%s602 - $0x1] sm:$0x2] %vm1326, %v1323
      %1328 = vst.msk [vmem:[%s602] sm:$0x2] %vm1326, %v1324
      %1329 = vst.msk [vmem:[%s602 + $0x1] sm:$0x2] %vm1326, %v1325
      %s1330 = smul.u32 3, %s30
      %p1331 = scmp.lt.s32.totalorder %s1330, 5
      %s1332 = scalar_select %p1331, %s1330, 5
      %s1333 = scalar_lea.vmem %s19, %s1332
      // Predicated region
      $region97: #{hrl_encoder_forward.6} parent=95 // pred_check
        %p1334 = pneg %p452
      $region98: #{hrl_encoder_forward.6} parent=95 // pred_check_branch
        %1336 = sbr.rel (%p1334) target = $region100
      $region99: #{hrl_encoder_forward.6} parent=95 // pred_region
        %s1337 = smul.u32 3, %s30
      $region100: #{hrl_encoder_forward.6} parent=95 // pred_fallthru
        _
    $region96: #{hrl_encoder_forward.6} parent=5 // pred_fallthru
      _
    %p1338 = scmp.le.s32.totalorder 2, %s25
    // Predicated region
    $region101: #{hrl_encoder_forward.6} parent=5 // pred_check
      %p1339 = pneg %p1338
    $region102: #{hrl_encoder_forward.6} parent=5 // pred_check_branch
      %1341 = sbr.rel (%p1339) target = $region104
    $region103: #{hrl_encoder_forward.6} parent=5 // pred_region
      %s1342 = ssub.s32 %s25, 2
      // Predicated region
      $region105: #{hrl_encoder_forward.6} parent=103 // pred_check
        %p1343 = pneg %p458
      $region106: #{hrl_encoder_forward.6} parent=103 // pred_check_branch
        %1345 = sbr.rel (%p1343) target = $region108
      $region107: #{hrl_encoder_forward.6} parent=103 // pred_region
        %s1346 = smul.u32 3, %s31
        %p1347 = scmp.lt.s32.totalorder %s1346, 5
        %s1348 = scalar_select %p1347, %s1346, 5
        %s1349 = scalar_lea.vmem %s19, %s1348
      $region108: #{hrl_encoder_forward.6} parent=103 // pred_fallthru
        _
    $region104: #{hrl_encoder_forward.6} parent=5 // pred_fallthru
      _
  $region6: #{hrl_encoder_forward.6} parent=0 // loop_footer
    %s29 = sadd.s32 1, %s25
  $region7: #{hrl_encoder_forward.6} parent=0 // loop_footer_branch
    %24 = sbr.rel target = $region3
  $region8: #{hrl_encoder_forward.6} parent=0 // loop_exit
    _

// kernel: hrl_encoder_forward.5
$region0: #{hrl_encoder_forward.5}
  #allocation0 [shape = 'u32[]', space=smem, size = 0x4, offset = 0x4, fixed_abs, tag = 'smem constant byte address 0x4 - core index']
  #allocation1 [shape = 'u32[72,128]{1,0:T(1,128)}', space=vmem, size = 0x9000, scoped, tag = 'internal scratch']
  %s0 = inlined_call_operand.vmem [shape: f32[12,12,32], index: 0, kind: input, shape index: {}]
  %s1 = inlined_call_operand.vmem [shape: f32[32,32], index: 1, kind: input, shape index: {}]
  %s2 = inlined_call_operand.vmem [shape: f32[1,32], index: 2, kind: input, shape index: {}]
  %s3 = inlined_call_operand.vmem [shape: f32[1,32], index: 3, kind: input, shape index: {}]
  %s4 = inlined_call_operand.vmem [shape: f32[1,32], index: 4, kind: input, shape index: {}]
  %s5 = inlined_call_operand.vmem [shape: f32[32,32], index: 5, kind: input, shape index: {}]
  %s6 = inlined_call_operand.vmem [shape: f32[1,32], index: 6, kind: input, shape index: {}]
  %s7 = inlined_call_operand.vmem [shape: f32[32,64], index: 7, kind: input, shape index: {}]
  %s8 = inlined_call_operand.vmem [shape: f32[1,1,64], index: 8, kind: input, shape index: {}]
  %s9 = inlined_call_operand.vmem [shape: f32[32,32], index: 9, kind: input, shape index: {}]
  %s10 = inlined_call_operand.vmem [shape: f32[1,32], index: 10, kind: input, shape index: {}]
  %s11 = inlined_call_operand.vmem [shape: f32[1,32], index: 11, kind: input, shape index: {}]
  %s12 = inlined_call_operand.vmem [shape: f32[1,32], index: 12, kind: input, shape index: {}]
  %s13 = inlined_call_operand.vmem [shape: f32[32,64], index: 13, kind: input, shape index: {}]
  %s14 = inlined_call_operand.vmem [shape: f32[1,64], index: 14, kind: input, shape index: {}]
  %s15 = inlined_call_operand.vmem [shape: f32[64,32], index: 15, kind: input, shape index: {}]
  %s16 = inlined_call_operand.vmem [shape: f32[1,32], index: 16, kind: input, shape index: {}]
  %s17 = inlined_call_operand.vmem [shape: f32[1,32], index: 17, kind: input, shape index: {}]
  %s18 = inlined_call_operand.vmem [shape: f32[1,32], index: 18, kind: input, shape index: {}]
  %s19 = inlined_call_operand.vmem [shape: f32[12,1,32], index: 19, kind: output, shape index: {}]
  %s20 = sld [smem:[#allocation0]]
  $region109: #{hrl_encoder_forward.5} parent=0
    _
  %s22 = ssub.s32 1, %s20
  %s23 = scalar_select 0, %s22, %s20
  loop: start=0, step=1, limit=4
  $region2: #{hrl_encoder_forward.5} parent=0 // loop_pre_header
    _
  $region3: #{hrl_encoder_forward.5} parent=0 // loop_header
    %s25 = sphi 0, %s29
    %p26 = scmp.ge.s32.totalorder %s25, 4
    %s35 = sphi 0, %s37
    %s38 = sphi 0, %s35
    %s39 = sphi 0, %s38
    %s55 = sphi 0, %s39
    %s59 = sphi 0, %s59
    %s61 = sphi 0, %s59
    %s62 = sphi 0, %s61
    %s76 = sphi 0, %s62
    %s80 = sphi 0, %s80
    %s82 = sphi 0, %s80
    %s83 = sphi 0, %s82
    %s97 = sphi 0, %s83
    %s101 = sphi 0, %s101
    %s103 = sphi 0, %s101
    %s104 = sphi 0, %s103
    %s118 = sphi 0, %s104
    %s122 = sphi 0, %s122
    %s124 = sphi 0, %s122
    %s125 = sphi 0, %s124
    %s139 = sphi 0, %s125
    %s143 = sphi 0, %s143
    %s145 = sphi 0, %s143
    %s146 = sphi 0, %s145
    %s160 = sphi 0, %s146
    %s164 = sphi 0, %s164
    %s166 = sphi 0, %s164
    %s167 = sphi 0, %s166
    %s181 = sphi 0, %s167
    %s185 = sphi 0, %s185
    %s187 = sphi 0, %s185
    %s188 = sphi 0, %s187
    %s202 = sphi 0, %s188
    %s206 = sphi 0, %s206
    %s208 = sphi 0, %s206
    %s209 = sphi 0, %s208
    %s223 = sphi 0, %s209
    %s227 = sphi 0, %s227
    %s229 = sphi 0, %s227
    %s230 = sphi 0, %s229
    %s244 = sphi 0, %s230
    %s248 = sphi 0, %s248
    %s250 = sphi 0, %s248
    %s251 = sphi 0, %s250
    %s265 = sphi 0, %s251
    %s269 = sphi 0, %s269
    %s271 = sphi 0, %s269
    %s272 = sphi 0, %s271
    %s286 = sphi 0, %s272
    %s290 = sphi 0, %s290
    %s292 = sphi 0, %s290
    %s293 = sphi 0, %s292
    %s307 = sphi 0, %s293
    %s311 = sphi 0, %s311
    %s313 = sphi 0, %s311
    %s314 = sphi 0, %s313
    %s328 = sphi 0, %s314
    %s332 = sphi 0, %s332
    %s334 = sphi 0, %s332
    %s335 = sphi 0, %s334
    %s349 = sphi 0, %s335
    %s353 = sphi 0, %s353
    %s355 = sphi 0, %s353
    %s356 = sphi 0, %s355
    %s370 = sphi 0, %s356
    %s374 = sphi 0, %s374
    %s376 = sphi 0, %s374
    %s377 = sphi 0, %s376
    %s391 = sphi 0, %s377
    %s395 = sphi 0, %s395
    %s397 = sphi 0, %s395
    %s398 = sphi 0, %s397
    %s412 = sphi 0, %s398
    %s416 = sphi 0, %s416
    %s418 = sphi 0, %s416
    %s419 = sphi 0, %s418
    %s433 = sphi 0, %s419
    %s439 = sphi 0, %s441
    %s442 = sphi 0, %s439
    %s443 = sphi 0, %s442
    %s459 = sphi 0, %s443
  $region4: #{hrl_encoder_forward.5} parent=0 // loop_header_branch
    %28 = sbr.rel (%p26) target = $region8
  $region5: #{hrl_encoder_forward.5} parent=0 // loop_body
    %s30 = ssub.s32 %s25, 1
    %s31 = ssub.s32 %s25, 2
    %s32 = sadd.s32 %s25, 1
    %s33 = ssub.s32 %s25, %s32
    %p34 = scmp.eq.s32.totalorder %s33, 0
    %s36 = sadd.s32 %s35, 1
    %s37 = scalar_select %p34, %s35, %s36
    %p40 = pneg %p34
    %p41 = scmp.eq.s32.totalorder %s25, 1
    %p42 = por %p40, %p41
    %p43 = scmp.ne.s32.totalorder %s35, %s38
    %p44 = scmp.eq.s32.totalorder %s25, 0
    %p45 = por %p43, %p44
    %p46 = scmp.ne.s32.totalorder %s35, %s38
    %p47 = scmp.eq.s32.totalorder %s30, 1
    %p48 = por %p46, %p47
    %p49 = scmp.ne.s32.totalorder %s38, %s39
    %p50 = scmp.eq.s32.totalorder %s30, 0
    %p51 = por %p49, %p50
    %p52 = scmp.ne.s32.totalorder %s38, %s39
    %p53 = scmp.eq.s32.totalorder %s31, 1
    %p54 = por %p52, %p53
    %p56 = scmp.ne.s32.totalorder %s39, %s55
    %p57 = scmp.eq.s32.totalorder %s31, 0
    %p58 = por %p56, %p57
    %s60 = sadd.s32 %s59, 1
    %p63 = scmp.eq.s32.totalorder %s25, 1
    %p64 = scmp.ne.s32.totalorder %s59, %s61
    %p65 = scmp.eq.s32.totalorder %s25, 0
    %p66 = por %p64, %p65
    %p67 = scmp.ne.s32.totalorder %s59, %s61
    %p68 = scmp.eq.s32.totalorder %s30, 1
    %p69 = por %p67, %p68
    %p70 = scmp.ne.s32.totalorder %s61, %s62
    %p71 = scmp.eq.s32.totalorder %s30, 0
    %p72 = por %p70, %p71
    %p73 = scmp.ne.s32.totalorder %s61, %s62
    %p74 = scmp.eq.s32.totalorder %s31, 1
    %p75 = por %p73, %p74
    %p77 = scmp.ne.s32.totalorder %s62, %s76
    %p78 = scmp.eq.s32.totalorder %s31, 0
    %p79 = por %p77, %p78
    %s81 = sadd.s32 %s80, 1
    %p84 = scmp.eq.s32.totalorder %s25, 1
    %p85 = scmp.ne.s32.totalorder %s80, %s82
    %p86 = scmp.eq.s32.totalorder %s25, 0
    %p87 = por %p85, %p86
    %p88 = scmp.ne.s32.totalorder %s80, %s82
    %p89 = scmp.eq.s32.totalorder %s30, 1
    %p90 = por %p88, %p89
    %p91 = scmp.ne.s32.totalorder %s82, %s83
    %p92 = scmp.eq.s32.totalorder %s30, 0
    %p93 = por %p91, %p92
    %p94 = scmp.ne.s32.totalorder %s82, %s83
    %p95 = scmp.eq.s32.totalorder %s31, 1
    %p96 = por %p94, %p95
    %p98 = scmp.ne.s32.totalorder %s83, %s97
    %p99 = scmp.eq.s32.totalorder %s31, 0
    %p100 = por %p98, %p99
    %s102 = sadd.s32 %s101, 1
    %p105 = scmp.eq.s32.totalorder %s25, 1
    %p106 = scmp.ne.s32.totalorder %s101, %s103
    %p107 = scmp.eq.s32.totalorder %s25, 0
    %p108 = por %p106, %p107
    %p109 = scmp.ne.s32.totalorder %s101, %s103
    %p110 = scmp.eq.s32.totalorder %s30, 1
    %p111 = por %p109, %p110
    %p112 = scmp.ne.s32.totalorder %s103, %s104
    %p113 = scmp.eq.s32.totalorder %s30, 0
    %p114 = por %p112, %p113
    %p115 = scmp.ne.s32.totalorder %s103, %s104
    %p116 = scmp.eq.s32.totalorder %s31, 1
    %p117 = por %p115, %p116
    %p119 = scmp.ne.s32.totalorder %s104, %s118
    %p120 = scmp.eq.s32.totalorder %s31, 0
    %p121 = por %p119, %p120
    %s123 = sadd.s32 %s122, 1
    %p126 = scmp.eq.s32.totalorder %s25, 1
    %p127 = scmp.ne.s32.totalorder %s122, %s124
    %p128 = scmp.eq.s32.totalorder %s25, 0
    %p129 = por %p127, %p128
    %p130 = scmp.ne.s32.totalorder %s122, %s124
    %p131 = scmp.eq.s32.totalorder %s30, 1
    %p132 = por %p130, %p131
    %p133 = scmp.ne.s32.totalorder %s124, %s125
    %p134 = scmp.eq.s32.totalorder %s30, 0
    %p135 = por %p133, %p134
    %p136 = scmp.ne.s32.totalorder %s124, %s125
    %p137 = scmp.eq.s32.totalorder %s31, 1
    %p138 = por %p136, %p137
    %p140 = scmp.ne.s32.totalorder %s125, %s139
    %p141 = scmp.eq.s32.totalorder %s31, 0
    %p142 = por %p140, %p141
    %s144 = sadd.s32 %s143, 1
    %p147 = scmp.eq.s32.totalorder %s25, 1
    %p148 = scmp.ne.s32.totalorder %s143, %s145
    %p149 = scmp.eq.s32.totalorder %s25, 0
    %p150 = por %p148, %p149
    %p151 = scmp.ne.s32.totalorder %s143, %s145
    %p152 = scmp.eq.s32.totalorder %s30, 1
    %p153 = por %p151, %p152
    %p154 = scmp.ne.s32.totalorder %s145, %s146
    %p155 = scmp.eq.s32.totalorder %s30, 0
    %p156 = por %p154, %p155
    %p157 = scmp.ne.s32.totalorder %s145, %s146
    %p158 = scmp.eq.s32.totalorder %s31, 1
    %p159 = por %p157, %p158
    %p161 = scmp.ne.s32.totalorder %s146, %s160
    %p162 = scmp.eq.s32.totalorder %s31, 0
    %p163 = por %p161, %p162
    %s165 = sadd.s32 %s164, 1
    %p168 = scmp.eq.s32.totalorder %s25, 1
    %p169 = scmp.ne.s32.totalorder %s164, %s166
    %p170 = scmp.eq.s32.totalorder %s25, 0
    %p171 = por %p169, %p170
    %p172 = scmp.ne.s32.totalorder %s164, %s166
    %p173 = scmp.eq.s32.totalorder %s30, 1
    %p174 = por %p172, %p173
    %p175 = scmp.ne.s32.totalorder %s166, %s167
    %p176 = scmp.eq.s32.totalorder %s30, 0
    %p177 = por %p175, %p176
    %p178 = scmp.ne.s32.totalorder %s166, %s167
    %p179 = scmp.eq.s32.totalorder %s31, 1
    %p180 = por %p178, %p179
    %p182 = scmp.ne.s32.totalorder %s167, %s181
    %p183 = scmp.eq.s32.totalorder %s31, 0
    %p184 = por %p182, %p183
    %s186 = sadd.s32 %s185, 1
    %p189 = scmp.eq.s32.totalorder %s25, 1
    %p190 = scmp.ne.s32.totalorder %s185, %s187
    %p191 = scmp.eq.s32.totalorder %s25, 0
    %p192 = por %p190, %p191
    %p193 = scmp.ne.s32.totalorder %s185, %s187
    %p194 = scmp.eq.s32.totalorder %s30, 1
    %p195 = por %p193, %p194
    %p196 = scmp.ne.s32.totalorder %s187, %s188
    %p197 = scmp.eq.s32.totalorder %s30, 0
    %p198 = por %p196, %p197
    %p199 = scmp.ne.s32.totalorder %s187, %s188
    %p200 = scmp.eq.s32.totalorder %s31, 1
    %p201 = por %p199, %p200
    %p203 = scmp.ne.s32.totalorder %s188, %s202
    %p204 = scmp.eq.s32.totalorder %s31, 0
    %p205 = por %p203, %p204
    %s207 = sadd.s32 %s206, 1
    %p210 = scmp.eq.s32.totalorder %s25, 1
    %p211 = scmp.ne.s32.totalorder %s206, %s208
    %p212 = scmp.eq.s32.totalorder %s25, 0
    %p213 = por %p211, %p212
    %p214 = scmp.ne.s32.totalorder %s206, %s208
    %p215 = scmp.eq.s32.totalorder %s30, 1
    %p216 = por %p214, %p215
    %p217 = scmp.ne.s32.totalorder %s208, %s209
    %p218 = scmp.eq.s32.totalorder %s30, 0
    %p219 = por %p217, %p218
    %p220 = scmp.ne.s32.totalorder %s208, %s209
    %p221 = scmp.eq.s32.totalorder %s31, 1
    %p222 = por %p220, %p221
    %p224 = scmp.ne.s32.totalorder %s209, %s223
    %p225 = scmp.eq.s32.totalorder %s31, 0
    %p226 = por %p224, %p225
    %s228 = sadd.s32 %s227, 1
    %p231 = scmp.eq.s32.totalorder %s25, 1
    %p232 = scmp.ne.s32.totalorder %s227, %s229
    %p233 = scmp.eq.s32.totalorder %s25, 0
    %p234 = por %p232, %p233
    %p235 = scmp.ne.s32.totalorder %s227, %s229
    %p236 = scmp.eq.s32.totalorder %s30, 1
    %p237 = por %p235, %p236
    %p238 = scmp.ne.s32.totalorder %s229, %s230
    %p239 = scmp.eq.s32.totalorder %s30, 0
    %p240 = por %p238, %p239
    %p241 = scmp.ne.s32.totalorder %s229, %s230
    %p242 = scmp.eq.s32.totalorder %s31, 1
    %p243 = por %p241, %p242
    %p245 = scmp.ne.s32.totalorder %s230, %s244
    %p246 = scmp.eq.s32.totalorder %s31, 0
    %p247 = por %p245, %p246
    %s249 = sadd.s32 %s248, 1
    %p252 = scmp.eq.s32.totalorder %s25, 1
    %p253 = scmp.ne.s32.totalorder %s248, %s250
    %p254 = scmp.eq.s32.totalorder %s25, 0
    %p255 = por %p253, %p254
    %p256 = scmp.ne.s32.totalorder %s248, %s250
    %p257 = scmp.eq.s32.totalorder %s30, 1
    %p258 = por %p256, %p257
    %p259 = scmp.ne.s32.totalorder %s250, %s251
    %p260 = scmp.eq.s32.totalorder %s30, 0
    %p261 = por %p259, %p260
    %p262 = scmp.ne.s32.totalorder %s250, %s251
    %p263 = scmp.eq.s32.totalorder %s31, 1
    %p264 = por %p262, %p263
    %p266 = scmp.ne.s32.totalorder %s251, %s265
    %p267 = scmp.eq.s32.totalorder %s31, 0
    %p268 = por %p266, %p267
    %s270 = sadd.s32 %s269, 1
    %p273 = scmp.eq.s32.totalorder %s25, 1
    %p274 = scmp.ne.s32.totalorder %s269, %s271
    %p275 = scmp.eq.s32.totalorder %s25, 0
    %p276 = por %p274, %p275
    %p277 = scmp.ne.s32.totalorder %s269, %s271
    %p278 = scmp.eq.s32.totalorder %s30, 1
    %p279 = por %p277, %p278
    %p280 = scmp.ne.s32.totalorder %s271, %s272
    %p281 = scmp.eq.s32.totalorder %s30, 0
    %p282 = por %p280, %p281
    %p283 = scmp.ne.s32.totalorder %s271, %s272
    %p284 = scmp.eq.s32.totalorder %s31, 1
    %p285 = por %p283, %p284
    %p287 = scmp.ne.s32.totalorder %s272, %s286
    %p288 = scmp.eq.s32.totalorder %s31, 0
    %p289 = por %p287, %p288
    %s291 = sadd.s32 %s290, 1
    %p294 = scmp.eq.s32.totalorder %s25, 1
    %p295 = scmp.ne.s32.totalorder %s290, %s292
    %p296 = scmp.eq.s32.totalorder %s25, 0
    %p297 = por %p295, %p296
    %p298 = scmp.ne.s32.totalorder %s290, %s292
    %p299 = scmp.eq.s32.totalorder %s30, 1
    %p300 = por %p298, %p299
    %p301 = scmp.ne.s32.totalorder %s292, %s293
    %p302 = scmp.eq.s32.totalorder %s30, 0
    %p303 = por %p301, %p302
    %p304 = scmp.ne.s32.totalorder %s292, %s293
    %p305 = scmp.eq.s32.totalorder %s31, 1
    %p306 = por %p304, %p305
    %p308 = scmp.ne.s32.totalorder %s293, %s307
    %p309 = scmp.eq.s32.totalorder %s31, 0
    %p310 = por %p308, %p309
    %s312 = sadd.s32 %s311, 1
    %p315 = scmp.eq.s32.totalorder %s25, 1
    %p316 = scmp.ne.s32.totalorder %s311, %s313
    %p317 = scmp.eq.s32.totalorder %s25, 0
    %p318 = por %p316, %p317
    %p319 = scmp.ne.s32.totalorder %s311, %s313
    %p320 = scmp.eq.s32.totalorder %s30, 1
    %p321 = por %p319, %p320
    %p322 = scmp.ne.s32.totalorder %s313, %s314
    %p323 = scmp.eq.s32.totalorder %s30, 0
    %p324 = por %p322, %p323
    %p325 = scmp.ne.s32.totalorder %s313, %s314
    %p326 = scmp.eq.s32.totalorder %s31, 1
    %p327 = por %p325, %p326
    %p329 = scmp.ne.s32.totalorder %s314, %s328
    %p330 = scmp.eq.s32.totalorder %s31, 0
    %p331 = por %p329, %p330
    %s333 = sadd.s32 %s332, 1
    %p336 = scmp.eq.s32.totalorder %s25, 1
    %p337 = scmp.ne.s32.totalorder %s332, %s334
    %p338 = scmp.eq.s32.totalorder %s25, 0
    %p339 = por %p337, %p338
    %p340 = scmp.ne.s32.totalorder %s332, %s334
    %p341 = scmp.eq.s32.totalorder %s30, 1
    %p342 = por %p340, %p341
    %p343 = scmp.ne.s32.totalorder %s334, %s335
    %p344 = scmp.eq.s32.totalorder %s30, 0
    %p345 = por %p343, %p344
    %p346 = scmp.ne.s32.totalorder %s334, %s335
    %p347 = scmp.eq.s32.totalorder %s31, 1
    %p348 = por %p346, %p347
    %p350 = scmp.ne.s32.totalorder %s335, %s349
    %p351 = scmp.eq.s32.totalorder %s31, 0
    %p352 = por %p350, %p351
    %s354 = sadd.s32 %s353, 1
    %p357 = scmp.eq.s32.totalorder %s25, 1
    %p358 = scmp.ne.s32.totalorder %s353, %s355
    %p359 = scmp.eq.s32.totalorder %s25, 0
    %p360 = por %p358, %p359
    %p361 = scmp.ne.s32.totalorder %s353, %s355
    %p362 = scmp.eq.s32.totalorder %s30, 1
    %p363 = por %p361, %p362
    %p364 = scmp.ne.s32.totalorder %s355, %s356
    %p365 = scmp.eq.s32.totalorder %s30, 0
    %p366 = por %p364, %p365
    %p367 = scmp.ne.s32.totalorder %s355, %s356
    %p368 = scmp.eq.s32.totalorder %s31, 1
    %p369 = por %p367, %p368
    %p371 = scmp.ne.s32.totalorder %s356, %s370
    %p372 = scmp.eq.s32.totalorder %s31, 0
    %p373 = por %p371, %p372
    %s375 = sadd.s32 %s374, 1
    %p378 = scmp.eq.s32.totalorder %s25, 1
    %p379 = scmp.ne.s32.totalorder %s374, %s376
    %p380 = scmp.eq.s32.totalorder %s25, 0
    %p381 = por %p379, %p380
    %p382 = scmp.ne.s32.totalorder %s374, %s376
    %p383 = scmp.eq.s32.totalorder %s30, 1
    %p384 = por %p382, %p383
    %p385 = scmp.ne.s32.totalorder %s376, %s377
    %p386 = scmp.eq.s32.totalorder %s30, 0
    %p387 = por %p385, %p386
    %p388 = scmp.ne.s32.totalorder %s376, %s377
    %p389 = scmp.eq.s32.totalorder %s31, 1
    %p390 = por %p388, %p389
    %p392 = scmp.ne.s32.totalorder %s377, %s391
    %p393 = scmp.eq.s32.totalorder %s31, 0
    %p394 = por %p392, %p393
    %s396 = sadd.s32 %s395, 1
    %p399 = scmp.eq.s32.totalorder %s25, 1
    %p400 = scmp.ne.s32.totalorder %s395, %s397
    %p401 = scmp.eq.s32.totalorder %s25, 0
    %p402 = por %p400, %p401
    %p403 = scmp.ne.s32.totalorder %s395, %s397
    %p404 = scmp.eq.s32.totalorder %s30, 1
    %p405 = por %p403, %p404
    %p406 = scmp.ne.s32.totalorder %s397, %s398
    %p407 = scmp.eq.s32.totalorder %s30, 0
    %p408 = por %p406, %p407
    %p409 = scmp.ne.s32.totalorder %s397, %s398
    %p410 = scmp.eq.s32.totalorder %s31, 1
    %p411 = por %p409, %p410
    %p413 = scmp.ne.s32.totalorder %s398, %s412
    %p414 = scmp.eq.s32.totalorder %s31, 0
    %p415 = por %p413, %p414
    %s417 = sadd.s32 %s416, 1
    %p420 = scmp.eq.s32.totalorder %s25, 1
    %p421 = scmp.ne.s32.totalorder %s416, %s418
    %p422 = scmp.eq.s32.totalorder %s25, 0
    %p423 = por %p421, %p422
    %p424 = scmp.ne.s32.totalorder %s416, %s418
    %p425 = scmp.eq.s32.totalorder %s30, 1
    %p426 = por %p424, %p425
    %p427 = scmp.ne.s32.totalorder %s418, %s419
    %p428 = scmp.eq.s32.totalorder %s30, 0
    %p429 = por %p427, %p428
    %p430 = scmp.ne.s32.totalorder %s418, %s419
    %p431 = scmp.eq.s32.totalorder %s31, 1
    %p432 = por %p430, %p431
    %p434 = scmp.ne.s32.totalorder %s419, %s433
    %p435 = scmp.eq.s32.totalorder %s31, 0
    %p436 = por %p434, %p435
    %s437 = ssub.s32 %s25, %s32
    %p438 = scmp.eq.s32.totalorder %s437, 0
    %s440 = sadd.s32 %s439, 1
    %s441 = scalar_select %p438, %s439, %s440
    %p444 = pneg %p438
    %p445 = scmp.eq.s32.totalorder %s25, 1
    %p446 = por %p444, %p445
    %p447 = scmp.ne.s32.totalorder %s439, %s442
    %p448 = scmp.eq.s32.totalorder %s25, 0
    %p449 = por %p447, %p448
    %p450 = scmp.ne.s32.totalorder %s439, %s442
    %p451 = scmp.eq.s32.totalorder %s30, 1
    %p452 = por %p450, %p451
    %p453 = scmp.ne.s32.totalorder %s442, %s443
    %p454 = scmp.eq.s32.totalorder %s30, 0
    %p455 = por %p453, %p454
    %p456 = scmp.ne.s32.totalorder %s442, %s443
    %p457 = scmp.eq.s32.totalorder %s31, 1
    %p458 = por %p456, %p457
    %p460 = scmp.ne.s32.totalorder %s443, %s459
    %p461 = scmp.eq.s32.totalorder %s31, 0
    %p462 = por %p460, %p461
    %p463 = scmp.le.s32.totalorder 1, %s25
    %p464 = scmp.lt.s32.totalorder %s25, 3
    %p465 = pnand %p463, %p464
    %p466 = pneg %p465
    // Predicated region
    $region9: #{hrl_encoder_forward.5} parent=5 // pred_check
      _
    $region10: #{hrl_encoder_forward.5} parent=5 // pred_check_branch
      %468 = sbr.rel (%p465) target = $region12
    $region11: #{hrl_encoder_forward.5} parent=5 // pred_region
      %s469 = ssub.s32 %s25, 1
      // Predicated region
      $region13: #{hrl_encoder_forward.5} parent=11 // pred_check
        %p470 = pneg %p72
      $region14: #{hrl_encoder_forward.5} parent=11 // pred_check_branch
        %472 = sbr.rel (%p470) target = $region16
      $region15: #{hrl_encoder_forward.5} parent=11 // pred_region
        _
      $region16: #{hrl_encoder_forward.5} parent=11 // pred_fallthru
        _
      // Predicated region
      $region17: #{hrl_encoder_forward.5} parent=11 // pred_check
        %p473 = pneg %p93
      $region18: #{hrl_encoder_forward.5} parent=11 // pred_check_branch
        %475 = sbr.rel (%p473) target = $region20
      $region19: #{hrl_encoder_forward.5} parent=11 // pred_region
        _
      $region20: #{hrl_encoder_forward.5} parent=11 // pred_fallthru
        _
      // Predicated region
      $region21: #{hrl_encoder_forward.5} parent=11 // pred_check
        %p476 = pneg %p114
      $region22: #{hrl_encoder_forward.5} parent=11 // pred_check_branch
        %478 = sbr.rel (%p476) target = $region24
      $region23: #{hrl_encoder_forward.5} parent=11 // pred_region
        _
      $region24: #{hrl_encoder_forward.5} parent=11 // pred_fallthru
        _
      // Predicated region
      $region25: #{hrl_encoder_forward.5} parent=11 // pred_check
        %p479 = pneg %p135
      $region26: #{hrl_encoder_forward.5} parent=11 // pred_check_branch
        %481 = sbr.rel (%p479) target = $region28
      $region27: #{hrl_encoder_forward.5} parent=11 // pred_region
        _
      $region28: #{hrl_encoder_forward.5} parent=11 // pred_fallthru
        _
      // Predicated region
      $region29: #{hrl_encoder_forward.5} parent=11 // pred_check
        %p482 = pneg %p156
      $region30: #{hrl_encoder_forward.5} parent=11 // pred_check_branch
        %484 = sbr.rel (%p482) target = $region32
      $region31: #{hrl_encoder_forward.5} parent=11 // pred_region
        _
      $region32: #{hrl_encoder_forward.5} parent=11 // pred_fallthru
        _
      // Predicated region
      $region33: #{hrl_encoder_forward.5} parent=11 // pred_check
        %p485 = pneg %p177
      $region34: #{hrl_encoder_forward.5} parent=11 // pred_check_branch
        %487 = sbr.rel (%p485) target = $region36
      $region35: #{hrl_encoder_forward.5} parent=11 // pred_region
        _
      $region36: #{hrl_encoder_forward.5} parent=11 // pred_fallthru
        _
      // Predicated region
      $region37: #{hrl_encoder_forward.5} parent=11 // pred_check
        %p488 = pneg %p198
      $region38: #{hrl_encoder_forward.5} parent=11 // pred_check_branch
        %490 = sbr.rel (%p488) target = $region40
      $region39: #{hrl_encoder_forward.5} parent=11 // pred_region
        _
      $region40: #{hrl_encoder_forward.5} parent=11 // pred_fallthru
        _
      // Predicated region
      $region41: #{hrl_encoder_forward.5} parent=11 // pred_check
        %p491 = pneg %p219
      $region42: #{hrl_encoder_forward.5} parent=11 // pred_check_branch
        %493 = sbr.rel (%p491) target = $region44
      $region43: #{hrl_encoder_forward.5} parent=11 // pred_region
        _
      $region44: #{hrl_encoder_forward.5} parent=11 // pred_fallthru
        _
      // Predicated region
      $region45: #{hrl_encoder_forward.5} parent=11 // pred_check
        %p494 = pneg %p240
      $region46: #{hrl_encoder_forward.5} parent=11 // pred_check_branch
        %496 = sbr.rel (%p494) target = $region48
      $region47: #{hrl_encoder_forward.5} parent=11 // pred_region
        _
      $region48: #{hrl_encoder_forward.5} parent=11 // pred_fallthru
        _
      // Predicated region
      $region49: #{hrl_encoder_forward.5} parent=11 // pred_check
        %p497 = pneg %p261
      $region50: #{hrl_encoder_forward.5} parent=11 // pred_check_branch
        %499 = sbr.rel (%p497) target = $region52
      $region51: #{hrl_encoder_forward.5} parent=11 // pred_region
        _
      $region52: #{hrl_encoder_forward.5} parent=11 // pred_fallthru
        _
      // Predicated region
      $region53: #{hrl_encoder_forward.5} parent=11 // pred_check
        %p500 = pneg %p282
      $region54: #{hrl_encoder_forward.5} parent=11 // pred_check_branch
        %502 = sbr.rel (%p500) target = $region56
      $region55: #{hrl_encoder_forward.5} parent=11 // pred_region
        _
      $region56: #{hrl_encoder_forward.5} parent=11 // pred_fallthru
        _
      // Predicated region
      $region57: #{hrl_encoder_forward.5} parent=11 // pred_check
        %p503 = pneg %p303
      $region58: #{hrl_encoder_forward.5} parent=11 // pred_check_branch
        %505 = sbr.rel (%p503) target = $region60
      $region59: #{hrl_encoder_forward.5} parent=11 // pred_region
        _
      $region60: #{hrl_encoder_forward.5} parent=11 // pred_fallthru
        _
      // Predicated region
      $region61: #{hrl_encoder_forward.5} parent=11 // pred_check
        %p506 = pneg %p324
      $region62: #{hrl_encoder_forward.5} parent=11 // pred_check_branch
        %508 = sbr.rel (%p506) target = $region64
      $region63: #{hrl_encoder_forward.5} parent=11 // pred_region
        _
      $region64: #{hrl_encoder_forward.5} parent=11 // pred_fallthru
        _
      // Predicated region
      $region65: #{hrl_encoder_forward.5} parent=11 // pred_check
        %p509 = pneg %p345
      $region66: #{hrl_encoder_forward.5} parent=11 // pred_check_branch
        %511 = sbr.rel (%p509) target = $region68
      $region67: #{hrl_encoder_forward.5} parent=11 // pred_region
        _
      $region68: #{hrl_encoder_forward.5} parent=11 // pred_fallthru
        _
      // Predicated region
      $region69: #{hrl_encoder_forward.5} parent=11 // pred_check
        %p512 = pneg %p366
      $region70: #{hrl_encoder_forward.5} parent=11 // pred_check_branch
        %514 = sbr.rel (%p512) target = $region72
      $region71: #{hrl_encoder_forward.5} parent=11 // pred_region
        _
      $region72: #{hrl_encoder_forward.5} parent=11 // pred_fallthru
        _
      // Predicated region
      $region73: #{hrl_encoder_forward.5} parent=11 // pred_check
        %p515 = pneg %p387
      $region74: #{hrl_encoder_forward.5} parent=11 // pred_check_branch
        %517 = sbr.rel (%p515) target = $region76
      $region75: #{hrl_encoder_forward.5} parent=11 // pred_region
        _
      $region76: #{hrl_encoder_forward.5} parent=11 // pred_fallthru
        _
      // Predicated region
      $region77: #{hrl_encoder_forward.5} parent=11 // pred_check
        %p518 = pneg %p408
      $region78: #{hrl_encoder_forward.5} parent=11 // pred_check_branch
        %520 = sbr.rel (%p518) target = $region80
      $region79: #{hrl_encoder_forward.5} parent=11 // pred_region
        _
      $region80: #{hrl_encoder_forward.5} parent=11 // pred_fallthru
        _
      // Predicated region
      $region81: #{hrl_encoder_forward.5} parent=11 // pred_check
        %p521 = pneg %p429
      $region82: #{hrl_encoder_forward.5} parent=11 // pred_check_branch
        %523 = sbr.rel (%p521) target = $region84
      $region83: #{hrl_encoder_forward.5} parent=11 // pred_region
        _
      $region84: #{hrl_encoder_forward.5} parent=11 // pred_fallthru
        _
    $region12: #{hrl_encoder_forward.5} parent=5 // pred_fallthru
      _
    %p524 = scmp.lt.s32.totalorder %s25, 2
    // Predicated region
    $region85: #{hrl_encoder_forward.5} parent=5 // pred_check
      %p525 = pneg %p524
    $region86: #{hrl_encoder_forward.5} parent=5 // pred_check_branch
      %527 = sbr.rel (%p525) target = $region88
    $region87: #{hrl_encoder_forward.5} parent=5 // pred_region
      // Predicated region
      $region89: #{hrl_encoder_forward.5} parent=87 // pred_check
        %p528 = pneg %p45
      $region90: #{hrl_encoder_forward.5} parent=87 // pred_check_branch
        %530 = sbr.rel (%p528) target = $region92
      $region91: #{hrl_encoder_forward.5} parent=87 // pred_region
        %s531 = smul.u32 6, %s25
        %p532 = scmp.lt.s32.totalorder %s531, 11
        %s533 = scalar_select %p532, %s531, 11
        %s534 = smul.addr %s533, 2
        %s535 = smul.addr %s534, 8
        %s536 = scalar_lea.vmem %s0, %s535
        %s537 = smul.u32 6, %s25
      $region92: #{hrl_encoder_forward.5} parent=87 // pred_fallthru
        _
    $region88: #{hrl_encoder_forward.5} parent=5 // pred_fallthru
      _
    %p538 = scmp.le.s32.totalorder 1, %s25
    %p539 = scmp.lt.s32.totalorder %s25, 3
    %p540 = pnand %p538, %p539
    %p541 = pneg %p540
    // Predicated region
    $region93: #{hrl_encoder_forward.5} parent=5 // pred_check
      _
    $region94: #{hrl_encoder_forward.5} parent=5 // pred_check_branch
      %543 = sbr.rel (%p540) target = $region96
    $region95: #{hrl_encoder_forward.5} parent=5 // pred_region
      %s544 = ssub.s32 %s25, 1
      %s545 = smul.u32 6, %s30
      %p546 = scmp.lt.s32.totalorder %s545, 11
      %s547 = scalar_select %p546, %s545, 11
      %s548 = smul.addr %s547, 2
      %s549 = smul.addr %s548, 8
      %s550 = scalar_lea.vmem %s0, %s549
      %p551 = pneg %p51
      %p552 = pneg %p48
      %p553 = pneg %p72
      %p554 = pneg %p69
      %p555 = pneg %p93
      %p556 = pneg %p90
      %p557 = pneg %p114
      %p558 = pneg %p111
      %p559 = pneg %p135
      %p560 = pneg %p132
      %p561 = pneg %p156
      %p562 = pneg %p153
      %p563 = pneg %p177
      %p564 = pneg %p174
      %p565 = pneg %p198
      %p566 = pneg %p195
      %p567 = pneg %p219
      %p568 = pneg %p216
      %p569 = pneg %p240
      %p570 = pneg %p237
      %p571 = pneg %p261
      %p572 = pneg %p258
      %p573 = pneg %p282
      %p574 = pneg %p279
      %p575 = pneg %p303
      %p576 = pneg %p300
      %p577 = pneg %p324
      %p578 = pneg %p321
      %p579 = pneg %p345
      %p580 = pneg %p342
      %p581 = pneg %p366
      %p582 = pneg %p363
      %p583 = pneg %p387
      %p584 = pneg %p384
      %p585 = pneg %p408
      %p586 = pneg %p405
      %p587 = pneg %p429
      %p588 = pneg %p426
      %p589 = pneg %p455
      %p590 = pneg %p452
      %s591 = smul.u32 6, %s30
      %p592 = scmp.lt.s32.totalorder %s591, 11
      %s593 = scalar_select %p592, %s591, 11
      %s594 = scalar_lea.vmem %s19, %s593
      %s595 = smul.u32 6, %s30
      %p596 = scmp.lt.s32.totalorder %s595, 11
      %s597 = scalar_select %p596, %s595, 11
      %s598 = smul.addr %s597, 2
      %s599 = smul.addr %s598, 8
      %s600 = scalar_lea.vmem %s0, %s599
      %s601 = smul.u32 6, %s30
      %s602 = smul.u32 6, %s30
      %p603 = scmp.lt.s32.totalorder %s602, 11
      %s604 = scalar_select %p603, %s602, 11
      %s605 = scalar_lea.vmem %s19, %s604
      %s606 = smul.u32 6, %s30
      %v607 = vld [vmem:[%s600] sm:$0xff]
      %v608 = vld [vmem:[%s600 + $0x8] sm:$0xf]
      %v609 = vld [vmem:[%s600 + $0x10] sm:$0xff]
      %v610 = vld [vmem:[%s600 + $0x18] sm:$0xf]
      %v611 = vld [vmem:[%s600 + $0x20] sm:$0xff]
      %v612 = vld [vmem:[%s600 + $0x28] sm:$0xf]
      %v613 = vld [vmem:[%s600 + $0x30] sm:$0xff]
      %v614 = vld [vmem:[%s600 + $0x38] sm:$0xf]
      %v615 = vld [vmem:[%s600 + $0x40] sm:$0xff]
      %v616 = vld [vmem:[%s600 + $0x48] sm:$0xf]
      %v617 = vld [vmem:[%s600 + $0x50] sm:$0xff]
      %v618 = vld [vmem:[%s600 + $0x58] sm:$0xf]
      %v619 = vld [vmem:[%s1] sm:$0xff]
      %v620 = vld [vmem:[%s1 + $0x8] sm:$0xff]
      %v621 = vld [vmem:[%s1 + $0x10] sm:$0xff]
      %v622 = vld [vmem:[%s1 + $0x18] sm:$0xff]
      %v623 = vld [vmem:[%s2] sm:$0x1]
      %v625 = vperm.slane %v623, 0
      %v633 = vrot.slane %v608, 3
      %v634 = vrot.slane %v610, 2
      %vm635 = vcmask 1041409
      %v636 = vsel %vm635, %v634, %v633
      %v637 = vrot.slane %v612, 1
      %vm638 = vcmask 1042434
      %v639 = vsel %vm638, %v637, %v636
      %vm640 = vcmask 1043459
      %v641 = vsel %vm640, %v614, %v639
      %v642 = vrot.slane %v616, 7
      %vm643 = vcmask 1044484
      %v644 = vsel %vm643, %v642, %v641
      %v645 = vrot.slane %v618, 6
      %vm646 = vcmask 1045509
      %v647 = vsel %vm646, %v645, %v644
      %vm648 = vcmask 261120
      %v649 = vsel %vm648, %v647, 0
      %651 = vmatpush.msra.mxu0 0.0
      %652 = vmatpush.msra.mxu0 0.0
      %653 = vmatpush.msra.mxu0 0.0
      %654 = vmatpush.msra.mxu0 0.0
      %655 = vmatpush.msra.mxu0 0.0
      %656 = vmatpush.msra.mxu0 0.0
      %657 = vmatpush.msra.mxu0 0.0
      %658 = vmatpush.msra.mxu0 0.0
      %659 = vmatpush.msra.mxu0 0.0
      %660 = vmatpush.msra.mxu0 0.0
      %661 = vmatpush.msra.mxu0 0.0
      %662 = vmatpush.msra.mxu0 0.0
      %663 = vmatpush.msra.mxu0 %v622
      %664 = vmatpush.msra.mxu0 %v621
      %665 = vmatpush.msra.mxu0 %v620
      %666 = vmatpush.msra.mxu0 %v619
      %667 = vmatmul.f32.gmra.mxu0 %v649
      %v668 = vpop.f32.mrf.mxu0
      %v669 = vadd.f32 %v625, %v668
      %670 = vdwg.mxu0
      %v672 = vrot.slane %v669, 5
      %v673 = vrot.slane %v669, 6
      %v674 = vrot.slane %v669, 7
      %v675 = vrot.slane %v669, 1
      %v676 = vrot.slane %v669, 2
      %v683 = vadd.f32 %v608, %v672
      %v684 = vadd.f32 %v610, %v673
      %v685 = vadd.f32 %v612, %v674
      %v686 = vadd.f32 %v614, %v669
      %v687 = vadd.f32 %v616, %v675
      %v688 = vadd.f32 %v618, %v676
      %v689 = vld [vmem:[%s3] sm:$0x1]
      %v690 = vld [vmem:[%s4] sm:$0x1]
      %v697 = vrot.slane %v684, 7
      %v698 = vsel %vm643, %v697, %v683
      %v699 = vrot.slane %v685, 6
      %v700 = vsel %vm646, %v699, %v698
      %v701 = vrot.slane %v686, 5
      %vm702 = vcmask 1046534
      %v703 = vsel %vm702, %v701, %v700
      %v704 = vrot.slane %v687, 4
      %vm705 = vcmask 1047559
      %v706 = vsel %vm705, %v704, %v703
      %v707 = vrot.slane %v688, 3
      %vm710 = vcmask 261123
      %v711 = vsel %vm710, %v706, 0.0
      %712 = vadd.xlane.f32.xlu0 %v711
      %v713 = vpop.xlane.xlu0 %712
      %vm714 = vcmask 253952
      %v715 = vsel %vm714, %v707, 0.0
      %716 = vadd.xlane.f32.xlu0 %v715
      %v717 = vpop.xlane.xlu0 %716
      %v718 = vrcp.pop 32.0
      %v719 = vmul.f32 32.0, %v718
      %v720 = vsub.f32 1.0, %v719
      %v721 = vmul.f32 %v718, %v720
      %v722 = vadd.f32 %v718, %v721
      %vm723 = vweird.f32 %v718
      %v724 = vsel %vm723, %v718, %v722
      %v725 = vmul.f32 %v713, %v724
      %v726 = vmul.f32 %v717, %v724
      %v729 = vrot.slane %v725, 1
      %v730 = vrot.slane %v725, 2
      %v731 = vrot.slane %v725, 3
      %v732 = vrot.slane %v725, 4
      %v733 = vrot.slane %v726, 5
      %v740 = vsub.f32 %v683, %v725
      %v741 = vsub.f32 %v684, %v729
      %v742 = vsub.f32 %v685, %v730
      %v743 = vsub.f32 %v686, %v731
      %v744 = vsub.f32 %v687, %v732
      %v745 = vsub.f32 %v688, %v733
      %v746 = vmul.f32 %v740, %v740
      %v747 = vmul.f32 %v741, %v741
      %v748 = vmul.f32 %v742, %v742
      %v749 = vmul.f32 %v743, %v743
      %v750 = vmul.f32 %v744, %v744
      %v751 = vmul.f32 %v745, %v745
      %v758 = vrot.slane %v747, 7
      %v759 = vsel %vm643, %v758, %v746
      %v760 = vrot.slane %v748, 6
      %v761 = vsel %vm646, %v760, %v759
      %v762 = vrot.slane %v749, 5
      %v763 = vsel %vm702, %v762, %v761
      %v764 = vrot.slane %v750, 4
      %v765 = vsel %vm705, %v764, %v763
      %v766 = vrot.slane %v751, 3
      %v769 = vsel %vm710, %v765, 0.0
      %770 = vadd.xlane.f32.xlu0 %v769
      %v771 = vpop.xlane.xlu0 %770
      %v772 = vsel %vm714, %v766, 0.0
      %773 = vadd.xlane.f32.xlu0 %v772
      %v774 = vpop.xlane.xlu0 %773
      %v775 = vmul.f32 %v771, %v724
      %v776 = vmul.f32 %v774, %v724
      %v777 = vadd.f32 %v775, 1e-05
      %v778 = vadd.f32 %v776, 1e-05
      %v779 = vrsqrt.pop %v777
      %v780 = vmul.f32 %v779, %v777
      %v781 = vmul.f32 %v780, %v779
      %v782 = vmul.f32 0.5, %v781
      %v783 = vsub.f32 1.5, %v782
      %v784 = vmul.f32 %v779, %v783
      %vm785 = vweird.f32 %v777
      %vm786 = vweird.f32 %v779
      %vm787 = vmor %vm785, %vm786
      %v788 = vsel %vm787, %v779, %v784
      %v789 = vrsqrt.pop %v778
      %v790 = vmul.f32 %v789, %v778
      %v791 = vmul.f32 %v790, %v789
      %v792 = vmul.f32 0.5, %v791
      %v793 = vsub.f32 1.5, %v792
      %v794 = vmul.f32 %v789, %v793
      %vm795 = vweird.f32 %v778
      %vm796 = vweird.f32 %v789
      %vm797 = vmor %vm795, %vm796
      %v798 = vsel %vm797, %v789, %v794
      %v801 = vrot.slane %v788, 1
      %v802 = vrot.slane %v788, 2
      %v803 = vrot.slane %v788, 3
      %v804 = vrot.slane %v788, 4
      %v805 = vrot.slane %v798, 5
      %v812 = vmul.f32 %v740, %v788
      %v813 = vmul.f32 %v741, %v801
      %v814 = vmul.f32 %v742, %v802
      %v815 = vmul.f32 %v743, %v803
      %v816 = vmul.f32 %v744, %v804
      %v817 = vmul.f32 %v745, %v805
      %v819 = vperm.slane %v689, 0
      %v821 = vmul.f32 %v812, %v819
      %v822 = vmul.f32 %v813, %v819
      %v823 = vmul.f32 %v814, %v819
      %v824 = vmul.f32 %v815, %v819
      %v825 = vmul.f32 %v816, %v819
      %v826 = vmul.f32 %v817, %v819
      %v828 = vperm.slane %v690, 0
      %v830 = vadd.f32 %v821, %v828
      %v831 = vadd.f32 %v822, %v828
      %v832 = vadd.f32 %v823, %v828
      %v833 = vadd.f32 %v824, %v828
      %v834 = vadd.f32 %v825, %v828
      %v835 = vadd.f32 %v826, %v828
      %v836 = vld [vmem:[%s5] sm:$0xff]
      %v837 = vld [vmem:[%s5 + $0x8] sm:$0xff]
      %v838 = vld [vmem:[%s5 + $0x10] sm:$0xff]
      %v839 = vld [vmem:[%s5 + $0x18] sm:$0xff]
      %v840 = vld [vmem:[%s6] sm:$0x1]
      %v842 = vperm.slane %v840, 0
      %v850 = vrot.slane %v830, 3
      %v851 = vrot.slane %v831, 2
      %v852 = vsel %vm635, %v851, %v850
      %v853 = vrot.slane %v832, 1
      %v854 = vsel %vm638, %v853, %v852
      %v855 = vsel %vm640, %v833, %v854
      %v856 = vrot.slane %v834, 7
      %v857 = vsel %vm643, %v856, %v855
      %v858 = vrot.slane %v835, 6
      %v859 = vsel %vm646, %v858, %v857
      %v860 = vsel %vm648, %v859, 0
      %862 = vmatpush.msra.mxu0 0.0
      %863 = vmatpush.msra.mxu0 0.0
      %864 = vmatpush.msra.mxu0 0.0
      %865 = vmatpush.msra.mxu0 0.0
      %866 = vmatpush.msra.mxu0 0.0
      %867 = vmatpush.msra.mxu0 0.0
      %868 = vmatpush.msra.mxu0 0.0
      %869 = vmatpush.msra.mxu0 0.0
      %870 = vmatpush.msra.mxu0 0.0
      %871 = vmatpush.msra.mxu0 0.0
      %872 = vmatpush.msra.mxu0 0.0
      %873 = vmatpush.msra.mxu0 0.0
      %874 = vmatpush.msra.mxu0 %v839
      %875 = vmatpush.msra.mxu0 %v838
      %876 = vmatpush.msra.mxu0 %v837
      %877 = vmatpush.msra.mxu0 %v836
      %878 = vmatmul.f32.gmra.mxu0 %v860
      %v879 = vpop.f32.mrf.mxu0
      %v880 = vadd.f32 %v842, %v879
      %881 = vdwg.mxu0
      %v882 = vld [vmem:[%s7] sm:$0xff]
      %v883 = vld [vmem:[%s7 + $0x8] sm:$0xff]
      %v884 = vld [vmem:[%s7 + $0x10] sm:$0xff]
      %v885 = vld [vmem:[%s7 + $0x18] sm:$0xff]
      %v886 = vld [vmem:[%s8] sm:$0x1]
      %v888 = vperm.slane %v886, 0
      %v895 = vrot.slane %v607, 4
      %v896 = vrot.slane %v609, 4
      %v897 = vrot.slane %v611, 4
      %v898 = vrot.slane %v613, 4
      %v899 = vrot.slane %v615, 4
      %v900 = vrot.slane %v617, 4
      %v901 = vrot.slane %v888, 4
      %902 = vst [vmem:[#allocation1] ss:$2 sm:$0xff] %v607
      %s903 = scalar_lea.vmem [#allocation1], 1
      %904 = vst [vmem:[%s903] ss:$2 sm:$0xff] %v895
      %s905 = scalar_lea.vmem [#allocation1], 16
      %906 = vst [vmem:[%s905] ss:$2 sm:$0xff] %v608
      %s907 = scalar_lea.vmem [#allocation1], 17
      %908 = vst [vmem:[%s907] ss:$2 sm:$0xff] %v609
      %s909 = scalar_lea.vmem [#allocation1], 32
      %910 = vst [vmem:[%s909] ss:$2 sm:$0xff] %v896
      %s911 = scalar_lea.vmem [#allocation1], 33
      %912 = vst [vmem:[%s911] ss:$2 sm:$0xff] %v610
      %s913 = scalar_lea.vmem [#allocation1], 48
      %914 = vst [vmem:[%s913] ss:$2 sm:$0xff] %v611
      %s915 = scalar_lea.vmem [#allocation1], 49
      %916 = vst [vmem:[%s915] ss:$2 sm:$0xff] %v897
      %v917 = vld.sshfl [vmem:[#allocation1] sm:$0xff pattern:$0x75316420]
      %v918 = vld.sshfl [vmem:[#allocation1 + $0x10] sm:$0xff pattern:$0x75316420]
      %v919 = vld.sshfl [vmem:[#allocation1 + $0x20] sm:$0xff pattern:$0x75316420]
      %v920 = vld.sshfl [vmem:[#allocation1 + $0x30] sm:$0xff pattern:$0x75316420]
      %921 = vst [vmem:[#allocation1] ss:$2 sm:$0xff] %v612
      %922 = vst [vmem:[%s903] ss:$2 sm:$0xff] %v613
      %923 = vst [vmem:[%s905] ss:$2 sm:$0xff] %v898
      %924 = vst [vmem:[%s907] ss:$2 sm:$0xff] %v614
      %925 = vst [vmem:[%s909] ss:$2 sm:$0xff] %v615
      %926 = vst [vmem:[%s911] ss:$2 sm:$0xff] %v899
      %927 = vst [vmem:[%s913] ss:$2 sm:$0xff] %v616
      %928 = vst [vmem:[%s915] ss:$2 sm:$0xff] %v617
      %v929 = vld.sshfl [vmem:[#allocation1] sm:$0xff pattern:$0x75316420]
      %v930 = vld.sshfl [vmem:[#allocation1 + $0x10] sm:$0xff pattern:$0x75316420]
      %v931 = vld.sshfl [vmem:[#allocation1 + $0x20] sm:$0xff pattern:$0x75316420]
      %v932 = vld.sshfl [vmem:[#allocation1 + $0x30] sm:$0xff pattern:$0x75316420]
      %933 = vst [vmem:[#allocation1] ss:$2 sm:$0xff] %v900
      %934 = vst [vmem:[%s903] ss:$2 sm:$0xff] %v618
      %v935 = vld.sshfl [vmem:[#allocation1] sm:$0xff pattern:$0x75316420]
      %936 = vst [vmem:[#allocation1] ss:$2 sm:$0xff] %v888
      %s937 = scalar_lea.vmem [#allocation1], 1
      %938 = vst [vmem:[%s937] ss:$2 sm:$0xff] %v901
      %s939 = scalar_lea.vmem [#allocation1], 16
      %940 = vst [vmem:[%s939] ss:$2 sm:$0xff] %v888
      %s941 = scalar_lea.vmem [#allocation1], 17
      %942 = vst [vmem:[%s941] ss:$2 sm:$0xff] %v888
      %s943 = scalar_lea.vmem [#allocation1], 32
      %944 = vst [vmem:[%s943] ss:$2 sm:$0xff] %v901
      %s945 = scalar_lea.vmem [#allocation1], 33
      %946 = vst [vmem:[%s945] ss:$2 sm:$0xff] %v888
      %s947 = scalar_lea.vmem [#allocation1], 48
      %948 = vst [vmem:[%s947] ss:$2 sm:$0xff] %v888
      %s949 = scalar_lea.vmem [#allocation1], 49
      %950 = vst [vmem:[%s949] ss:$2 sm:$0xff] %v901
      %v951 = vld.sshfl [vmem:[#allocation1] sm:$0xff pattern:$0x75316420]
      %v952 = vld.sshfl [vmem:[#allocation1 + $0x10] sm:$0xff pattern:$0x75316420]
      %v953 = vld.sshfl [vmem:[#allocation1 + $0x20] sm:$0xff pattern:$0x75316420]
      %v954 = vld.sshfl [vmem:[#allocation1 + $0x30] sm:$0xff pattern:$0x75316420]
      %955 = vst [vmem:[#allocation1] ss:$2 sm:$0xff] %v888
      %956 = vst [vmem:[%s937] ss:$2 sm:$0xff] %v888
      %957 = vst [vmem:[%s939] ss:$2 sm:$0xff] %v901
      %958 = vst [vmem:[%s941] ss:$2 sm:$0xff] %v888
      %959 = vst [vmem:[%s943] ss:$2 sm:$0xff] %v888
      %960 = vst [vmem:[%s945] ss:$2 sm:$0xff] %v901
      %961 = vst [vmem:[%s947] ss:$2 sm:$0xff] %v888
      %962 = vst [vmem:[%s949] ss:$2 sm:$0xff] %v888
      %v963 = vld.sshfl [vmem:[#allocation1] sm:$0xff pattern:$0x75316420]
      %v964 = vld.sshfl [vmem:[#allocation1 + $0x10] sm:$0xff pattern:$0x75316420]
      %v965 = vld.sshfl [vmem:[#allocation1 + $0x20] sm:$0xff pattern:$0x75316420]
      %v966 = vld.sshfl [vmem:[#allocation1 + $0x30] sm:$0xff pattern:$0x75316420]
      %967 = vst [vmem:[#allocation1] ss:$2 sm:$0xff] %v901
      %968 = vst [vmem:[%s937] ss:$2 sm:$0xff] %v888
      %v969 = vld.sshfl [vmem:[#allocation1] sm:$0xff pattern:$0x75316420]
      %v979 = vsel %vm648, %v917, 0
      %v981 = vsel %vm648, %v918, 0
      %v983 = vsel %vm648, %v919, 0
      %v985 = vsel %vm648, %v920, 0
      %v987 = vsel %vm648, %v929, 0
      %v989 = vsel %vm648, %v930, 0
      %v991 = vsel %vm648, %v931, 0
      %v993 = vsel %vm648, %v932, 0
      %v995 = vsel %vm648, %v935, 0
      %997 = vmatpush.msra.mxu0 0.0
      %998 = vmatpush.msra.mxu0 0.0
      %999 = vmatpush.msra.mxu0 0.0
      %1000 = vmatpush.msra.mxu0 0.0
      %1001 = vmatpush.msra.mxu0 0.0
      %1002 = vmatpush.msra.mxu0 0.0
      %1003 = vmatpush.msra.mxu0 0.0
      %1004 = vmatpush.msra.mxu0 0.0
      %1005 = vmatpush.msra.mxu0 0.0
      %1006 = vmatpush.msra.mxu0 0.0
      %1007 = vmatpush.msra.mxu0 0.0
      %1008 = vmatpush.msra.mxu0 0.0
      %1009 = vmatpush.msra.mxu0 %v885
      %1010 = vmatpush.msra.mxu0 %v884
      %1011 = vmatpush.msra.mxu0 %v883
      %1012 = vmatpush.msra.mxu0 %v882
      %1013 = vmatmul.f32.gmra.mxu0 %v979
      %v1014 = vpop.f32.mrf.mxu0
      %v1015 = vadd.f32 %v951, %v1014
      %1016 = vmatmul.f32.gmra.mxu0 %v981
      %v1017 = vpop.f32.mrf.mxu0
      %v1018 = vadd.f32 %v952, %v1017
      %1019 = vmatmul.f32.gmra.mxu0 %v983
      %v1020 = vpop.f32.mrf.mxu0
      %v1021 = vadd.f32 %v953, %v1020
      %1022 = vmatmul.f32.gmra.mxu0 %v985
      %v1023 = vpop.f32.mrf.mxu0
      %v1024 = vadd.f32 %v954, %v1023
      %1025 = vmatmul.f32.gmra.mxu0 %v987
      %v1026 = vpop.f32.mrf.mxu0
      %v1027 = vadd.f32 %v963, %v1026
      %1028 = vmatmul.f32.gmra.mxu0 %v989
      %v1029 = vpop.f32.mrf.mxu0
      %v1030 = vadd.f32 %v964, %v1029
      %1031 = vmatmul.f32.gmra.mxu0 %v991
      %v1032 = vpop.f32.mrf.mxu0
      %v1033 = vadd.f32 %v965, %v1032
      %1034 = vmatmul.f32.gmra.mxu0 %v993
      %v1035 = vpop.f32.mrf.mxu0
      %v1036 = vadd.f32 %v966, %v1035
      %1037 = vmatmul.f32.gmra.mxu0 %v995
      %v1038 = vpop.f32.mrf.mxu0
      %v1039 = vadd.f32 %v969, %v1038
      %1040 = vdwg.mxu0
      %v1050 = vrot.slane %v1015, 4
      %v1051 = vrot.slane %v1018, 4
      %v1052 = vrot.slane %v1021, 4
      %v1053 = vrot.slane %v1024, 4
      %v1054 = vrot.slane %v1027, 4
      %v1055 = vrot.slane %v1030, 4
      %v1056 = vrot.slane %v1033, 4
      %v1057 = vrot.slane %v1036, 4
      %v1058 = vrot.slane %v1039, 4
      %v1060 = vrot.slane %v880, 1
      %v1061 = vrot.slane %v880, 2
      %v1062 = vrot.slane %v880, 3
      %v1063 = vrot.slane %v880, 4
      %v1064 = vrot.slane %v880, 5
      %1065 = vst [vmem:[#allocation1] ss:$2 sm:$0xff] %v1015
      %s1066 = scalar_lea.vmem [#allocation1], 1
      %1067 = vst [vmem:[%s1066] ss:$2 sm:$0xff] %v1050
      %s1068 = scalar_lea.vmem [#allocation1], 16
      %1069 = vst [vmem:[%s1068] ss:$2 sm:$0xff] %v1018
      %v1070 = vld.sshfl [vmem:[#allocation1] sm:$0xff pattern:$0x75316420]
      %v1071 = vld.sshfl [vmem:[#allocation1 + $0x10] sm:$0xff pattern:$0x75316420]
      %v1072 = vsel %vm648, %v880, 0
      %v1074 = vsel %vm648, %v1070, 0
      %v1076 = vsel %vm648, %v1071, 0
      %1078 = vmatpush.xpose.msra.mxu0 0.0
      %1079 = vmatpush.xpose.msra.mxu0 0.0
      %1080 = vmatpush.xpose.msra.mxu0 0.0
      %1081 = vmatpush.xpose.msra.mxu0 0.0
      %1082 = vmatpush.xpose.msra.mxu0 0.0
      %1083 = vmatpush.xpose.msra.mxu0 0.0
      %1084 = vmatpush.xpose.msra.mxu0 0.0
      %1085 = vmatpush.xpose.msra.mxu0 0.0
      %1086 = vmatpush.xpose.msra.mxu0 0.0
      %1087 = vmatpush.xpose.msra.mxu0 0.0
      %1088 = vmatpush.xpose.msra.mxu0 0.0
      %1089 = vmatpush.xpose.msra.mxu0 0.0
      %1090 = vmatpush.xpose.msra.mxu0 0.0
      %1091 = vmatpush.xpose.msra.mxu0 0.0
      %1092 = vmatpush.xpose.msra.mxu0 %v1076
      %1093 = vmatpush.xpose.msra.mxu0 %v1074
      %1094 = vmatmul.f32.gmra.mxu0 %v1072
      %v1095 = vpop.f32.mrf.mxu0
      %v1096 = vadd.f32 0.0, %v1095
      %1097 = vdwg.mxu0
      %1098 = vst [vmem:[#allocation1] ss:$2 sm:$0xff] %v1051
      %s1099 = scalar_lea.vmem [#allocation1], 1
      %1100 = vst [vmem:[%s1099] ss:$2 sm:$0xff] %v1021
      %s1101 = scalar_lea.vmem [#allocation1], 16
      %1102 = vst [vmem:[%s1101] ss:$2 sm:$0xff] %v1052
      %v1103 = vld.sshfl [vmem:[#allocation1] sm:$0xff pattern:$0x75316420]
      %v1104 = vld.sshfl [vmem:[#allocation1 + $0x10] sm:$0xff pattern:$0x75316420]
      %v1105 = vsel %vm648, %v1060, 0
      %v1107 = vsel %vm648, %v1103, 0
      %v1109 = vsel %vm648, %v1104, 0
      %1111 = vmatpush.xpose.msra.mxu0 0.0
      %1112 = vmatpush.xpose.msra.mxu0 0.0
      %1113 = vmatpush.xpose.msra.mxu0 0.0
      %1114 = vmatpush.xpose.msra.mxu0 0.0
      %1115 = vmatpush.xpose.msra.mxu0 0.0
      %1116 = vmatpush.xpose.msra.mxu0 0.0
      %1117 = vmatpush.xpose.msra.mxu0 0.0
      %1118 = vmatpush.xpose.msra.mxu0 0.0
      %1119 = vmatpush.xpose.msra.mxu0 0.0
      %1120 = vmatpush.xpose.msra.mxu0 0.0
      %1121 = vmatpush.xpose.msra.mxu0 0.0
      %1122 = vmatpush.xpose.msra.mxu0 0.0
      %1123 = vmatpush.xpose.msra.mxu0 0.0
      %1124 = vmatpush.xpose.msra.mxu0 0.0
      %1125 = vmatpush.xpose.msra.mxu0 %v1109
      %1126 = vmatpush.xpose.msra.mxu0 %v1107
      %1127 = vmatmul.f32.gmra.mxu0 %v1105
      %v1128 = vpop.f32.mrf.mxu0
      %v1129 = vadd.f32 0.0, %v1128
      %1130 = vdwg.mxu0
      %1131 = vst [vmem:[#allocation1] ss:$2 sm:$0xff] %v1024
      %s1132 = scalar_lea.vmem [#allocation1], 1
      %1133 = vst [vmem:[%s1132] ss:$2 sm:$0xff] %v1053
      %s1134 = scalar_lea.vmem [#allocation1], 16
      %1135 = vst [vmem:[%s1134] ss:$2 sm:$0xff] %v1027
      %v1136 = vld.sshfl [vmem:[#allocation1] sm:$0xff pattern:$0x75316420]
      %v1137 = vld.sshfl [vmem:[#allocation1 + $0x10] sm:$0xff pattern:$0x75316420]
      %v1138 = vsel %vm648, %v1061, 0
      %v1140 = vsel %vm648, %v1136, 0
      %v1142 = vsel %vm648, %v1137, 0
      %1144 = vmatpush.xpose.msra.mxu0 0.0
      %1145 = vmatpush.xpose.msra.mxu0 0.0
      %1146 = vmatpush.xpose.msra.mxu0 0.0
      %1147 = vmatpush.xpose.msra.mxu0 0.0
      %1148 = vmatpush.xpose.msra.mxu0 0.0
      %1149 = vmatpush.xpose.msra.mxu0 0.0
      %1150 = vmatpush.xpose.msra.mxu0 0.0
      %1151 = vmatpush.xpose.msra.mxu0 0.0
      %1152 = vmatpush.xpose.msra.mxu0 0.0
      %1153 = vmatpush.xpose.msra.mxu0 0.0
      %1154 = vmatpush.xpose.msra.mxu0 0.0
      %1155 = vmatpush.xpose.msra.mxu0 0.0
      %1156 = vmatpush.xpose.msra.mxu0 0.0
      %1157 = vmatpush.xpose.msra.mxu0 0.0
      %1158 = vmatpush.xpose.msra.mxu0 %v1142
      %1159 = vmatpush.xpose.msra.mxu0 %v1140
      %1160 = vmatmul.f32.gmra.mxu0 %v1138
      %v1161 = vpop.f32.mrf.mxu0
      %v1162 = vadd.f32 0.0, %v1161
      %1163 = vdwg.mxu0
      %1164 = vst [vmem:[#allocation1] ss:$2 sm:$0xff] %v1054
      %s1165 = scalar_lea.vmem [#allocation1], 1
      %1166 = vst [vmem:[%s1165] ss:$2 sm:$0xff] %v1030
      %s1167 = scalar_lea.vmem [#allocation1], 16
      %1168 = vst [vmem:[%s1167] ss:$2 sm:$0xff] %v1055
      %v1169 = vld.sshfl [vmem:[#allocation1] sm:$0xff pattern:$0x75316420]
      %v1170 = vld.sshfl [vmem:[#allocation1 + $0x10] sm:$0xff pattern:$0x75316420]
      %v1171 = vsel %vm648, %v1062, 0
      %v1173 = vsel %vm648, %v1169, 0
      %v1175 = vsel %vm648, %v1170, 0
      %1177 = vmatpush.xpose.msra.mxu0 0.0
      %1178 = vmatpush.xpose.msra.mxu0 0.0
      %1179 = vmatpush.xpose.msra.mxu0 0.0
      %1180 = vmatpush.xpose.msra.mxu0 0.0
      %1181 = vmatpush.xpose.msra.mxu0 0.0
      %1182 = vmatpush.xpose.msra.mxu0 0.0
      %1183 = vmatpush.xpose.msra.mxu0 0.0
      %1184 = vmatpush.xpose.msra.mxu0 0.0
      %1185 = vmatpush.xpose.msra.mxu0 0.0
      %1186 = vmatpush.xpose.msra.mxu0 0.0
      %1187 = vmatpush.xpose.msra.mxu0 0.0
      %1188 = vmatpush.xpose.msra.mxu0 0.0
      %1189 = vmatpush.xpose.msra.mxu0 0.0
      %1190 = vmatpush.xpose.msra.mxu0 0.0
      %1191 = vmatpush.xpose.msra.mxu0 %v1175
      %1192 = vmatpush.xpose.msra.mxu0 %v1173
      %1193 = vmatmul.f32.gmra.mxu0 %v1171
      %v1194 = vpop.f32.mrf.mxu0
      %v1195 = vadd.f32 0.0, %v1194
      %1196 = vdwg.mxu0
      %1197 = vst [vmem:[#allocation1] ss:$2 sm:$0xff] %v1033
      %s1198 = scalar_lea.vmem [#allocation1], 1
      %1199 = vst [vmem:[%s1198] ss:$2 sm:$0xff] %v1056
      %s1200 = scalar_lea.vmem [#allocation1], 16
      %1201 = vst [vmem:[%s1200] ss:$2 sm:$0xff] %v1036
      %v1202 = vld.sshfl [vmem:[#allocation1] sm:$0xff pattern:$0x75316420]
      %v1203 = vld.sshfl [vmem:[#allocation1 + $0x10] sm:$0xff pattern:$0x75316420]
      %v1204 = vsel %vm648, %v1063, 0
      %v1206 = vsel %vm648, %v1202, 0
      %v1208 = vsel %vm648, %v1203, 0
      %1210 = vmatpush.xpose.msra.mxu0 0.0
      %1211 = vmatpush.xpose.msra.mxu0 0.0
      %1212 = vmatpush.xpose.msra.mxu0 0.0
      %1213 = vmatpush.xpose.msra.mxu0 0.0
      %1214 = vmatpush.xpose.msra.mxu0 0.0
      %1215 = vmatpush.xpose.msra.mxu0 0.0
      %1216 = vmatpush.xpose.msra.mxu0 0.0
      %1217 = vmatpush.xpose.msra.mxu0 0.0
      %1218 = vmatpush.xpose.msra.mxu0 0.0
      %1219 = vmatpush.xpose.msra.mxu0 0.0
      %1220 = vmatpush.xpose.msra.mxu0 0.0
      %1221 = vmatpush.xpose.msra.mxu0 0.0
      %1222 = vmatpush.xpose.msra.mxu0 0.0
      %1223 = vmatpush.xpose.msra.mxu0 0.0
      %1224 = vmatpush.xpose.msra.mxu0 %v1208
      %1225 = vmatpush.xpose.msra.mxu0 %v1206
      %1226 = vmatmul.f32.gmra.mxu0 %v1204
      %v1227 = vpop.f32.mrf.mxu0
      %v1228 = vadd.f32 0.0, %v1227
      %1229 = vdwg.mxu0
      %1230 = vst [vmem:[#allocation1] ss:$2 sm:$0xff] %v1057
      %s1231 = scalar_lea.vmem [#allocation1], 1
      %1232 = vst [vmem:[%s1231] ss:$2 sm:$0xff] %v1039
      %s1233 = scalar_lea.vmem [#allocation1], 16
      %1234 = vst [vmem:[%s1233] ss:$2 sm:$0xff] %v1058
      %v1235 = vld.sshfl [vmem:[#allocation1] sm:$0xff pattern:$0x75316420]
      %v1236 = vld.sshfl [vmem:[#allocation1 + $0x10] sm:$0xff pattern:$0x75316420]
      %v1237 = vsel %vm648, %v1064, 0
      %v1239 = vsel %vm648, %v1235, 0
      %v1241 = vsel %vm648, %v1236, 0
      %1243 = vmatpush.xpose.msra.mxu0 0.0
      %1244 = vmatpush.xpose.msra.mxu0 0.0
      %1245 = vmatpush.xpose.msra.mxu0 0.0
      %1246 = vmatpush.xpose.msra.mxu0 0.0
      %1247 = vmatpush.xpose.msra.mxu0 0.0
      %1248 = vmatpush.xpose.msra.mxu0 0.0
      %1249 = vmatpush.xpose.msra.mxu0 0.0
      %1250 = vmatpush.xpose.msra.mxu0 0.0
      %1251 = vmatpush.xpose.msra.mxu0 0.0
      %1252 = vmatpush.xpose.msra.mxu0 0.0
      %1253 = vmatpush.xpose.msra.mxu0 0.0
      %1254 = vmatpush.xpose.msra.mxu0 0.0
      %1255 = vmatpush.xpose.msra.mxu0 0.0
      %1256 = vmatpush.xpose.msra.mxu0 0.0
      %1257 = vmatpush.xpose.msra.mxu0 %v1241
      %1258 = vmatpush.xpose.msra.mxu0 %v1239
      %1259 = vmatmul.f32.gmra.mxu0 %v1237
      %v1260 = vpop.f32.mrf.mxu0
      %v1261 = vadd.f32 0.0, %v1260
      %1262 = vdwg.mxu0
      %v1263 = vmul.f32 %v1096, 0.17677669
      %v1264 = vmul.f32 %v1129, 0.17677669
      %v1265 = vmul.f32 %v1162, 0.17677669
      %v1266 = vmul.f32 %v1195, 0.17677669
      %v1267 = vmul.f32 %v1228, 0.17677669
      %v1268 = vmul.f32 %v1261, 0.17677669
      %vm1269 = vcmask 90112
      %v1270 = vsel %vm1269, %v1263, -inf
      %1271 = vmax.xlane.f32.xlu0 %v1270
      %v1272 = vpop.xlane.xlu0 %1271
      %v1273 = vsel %vm1269, %v1264, -inf
      %1274 = vmax.xlane.f32.xlu0 %v1273
      %v1275 = vpop.xlane.xlu0 %1274
      %v1276 = vsel %vm1269, %v1265, -inf
      %1277 = vmax.xlane.f32.xlu0 %v1276
      %v1278 = vpop.xlane.xlu0 %1277
      %v1279 = vsel %vm1269, %v1266, -inf
      %1280 = vmax.xlane.f32.xlu0 %v1279
      %v1281 = vpop.xlane.xlu0 %1280
      %v1282 = vsel %vm1269, %v1267, -inf
      %1283 = vmax.xlane.f32.xlu0 %v1282
      %v1284 = vpop.xlane.xlu0 %1283
      %v1285 = vsel %vm1269, %v1268, -inf
      %1286 = vmax.xlane.f32.xlu0 %v1285
      %v1287 = vpop.xlane.xlu0 %1286
      %v1288 = vsub.f32 %v1263, %v1272
      %v1289 = vsub.f32 %v1264, %v1275
      %v1290 = vsub.f32 %v1265, %v1278
      %v1291 = vsub.f32 %v1266, %v1281
      %v1292 = vsub.f32 %v1267, %v1284
      %v1293 = vsub.f32 %v1268, %v1287
      %v1294 = vmul.f32 %v1288, 1.442695
      %v1295 = vpow.pop %v1294
      %v1296 = vmul.f32 %v1289, 1.442695
      %v1297 = vpow.pop %v1296
      %v1298 = vmul.f32 %v1290, 1.442695
      %v1299 = vpow.pop %v1298
      %v1300 = vmul.f32 %v1291, 1.442695
      %v1301 = vpow.pop %v1300
      %v1302 = vmul.f32 %v1292, 1.442695
      %v1303 = vpow.pop %v1302
      %v1304 = vmul.f32 %v1293, 1.442695
      %v1305 = vpow.pop %v1304
      %v1306 = vsel %vm1269, %v1295, 0.0
      %1307 = vadd.xlane.f32.xlu0 %v1306
      %v1308 = vpop.xlane.xlu0 %1307
      %v1309 = vsel %vm1269, %v1297, 0.0
      %1310 = vadd.xlane.f32.xlu0 %v1309
      %v1311 = vpop.xlane.xlu0 %1310
      %v1312 = vsel %vm1269, %v1299, 0.0
      %1313 = vadd.xlane.f32.xlu0 %v1312
      %v1314 = vpop.xlane.xlu0 %1313
      %v1315 = vsel %vm1269, %v1301, 0.0
      %1316 = vadd.xlane.f32.xlu0 %v1315
      %v1317 = vpop.xlane.xlu0 %1316
      %v1318 = vsel %vm1269, %v1303, 0.0
      %1319 = vadd.xlane.f32.xlu0 %v1318
      %v1320 = vpop.xlane.xlu0 %1319
      %v1321 = vsel %vm1269, %v1305, 0.0
      %1322 = vadd.xlane.f32.xlu0 %v1321
      %v1323 = vpop.xlane.xlu0 %1322
      %v1324 = vrcp.pop %v1308
      %v1325 = vmul.f32 %v1308, %v1324
      %v1326 = vsub.f32 1.0, %v1325
      %v1327 = vmul.f32 %v1324, %v1326
      %v1328 = vadd.f32 %v1324, %v1327
      %vm1329 = vweird.f32 %v1308
      %vm1330 = vweird.f32 %v1324
      %vm1331 = vmor %vm1329, %vm1330
      %v1332 = vsel %vm1331, %v1324, %v1328
      %v1333 = vand.u32 2147483647, %v1308
      %vm1334 = vcmp.eq.f32.partialorder %v1333, 8.507059e+37
      %v1335 = vand.u32 %v1308, 2147483648
      %v1336 = vor.u32 1.1754944e-38, %v1335
      %v1337 = vsel %vm1334, %v1336, %v1332
      %v1338 = vmul.f32 %v1295, %v1337
      %v1339 = vrcp.pop %v1311
      %v1340 = vmul.f32 %v1311, %v1339
      %v1341 = vsub.f32 1.0, %v1340
      %v1342 = vmul.f32 %v1339, %v1341
      %v1343 = vadd.f32 %v1339, %v1342
      %vm1344 = vweird.f32 %v1311
      %vm1345 = vweird.f32 %v1339
      %vm1346 = vmor %vm1344, %vm1345
      %v1347 = vsel %vm1346, %v1339, %v1343
      %v1348 = vand.u32 2147483647, %v1311
      %vm1349 = vcmp.eq.f32.partialorder %v1348, 8.507059e+37
      %v1350 = vand.u32 %v1311, 2147483648
      %v1351 = vor.u32 1.1754944e-38, %v1350
      %v1352 = vsel %vm1349, %v1351, %v1347
      %v1353 = vmul.f32 %v1297, %v1352
      %v1354 = vrcp.pop %v1314
      %v1355 = vmul.f32 %v1314, %v1354
      %v1356 = vsub.f32 1.0, %v1355
      %v1357 = vmul.f32 %v1354, %v1356
      %v1358 = vadd.f32 %v1354, %v1357
      %vm1359 = vweird.f32 %v1314
      %vm1360 = vweird.f32 %v1354
      %vm1361 = vmor %vm1359, %vm1360
      %v1362 = vsel %vm1361, %v1354, %v1358
      %v1363 = vand.u32 2147483647, %v1314
      %vm1364 = vcmp.eq.f32.partialorder %v1363, 8.507059e+37
      %v1365 = vand.u32 %v1314, 2147483648
      %v1366 = vor.u32 1.1754944e-38, %v1365
      %v1367 = vsel %vm1364, %v1366, %v1362
      %v1368 = vmul.f32 %v1299, %v1367
      %v1369 = vrcp.pop %v1317
      %v1370 = vmul.f32 %v1317, %v1369
      %v1371 = vsub.f32 1.0, %v1370
      %v1372 = vmul.f32 %v1369, %v1371
      %v1373 = vadd.f32 %v1369, %v1372
      %vm1374 = vweird.f32 %v1317
      %vm1375 = vweird.f32 %v1369
      %vm1376 = vmor %vm1374, %vm1375
      %v1377 = vsel %vm1376, %v1369, %v1373
      %v1378 = vand.u32 2147483647, %v1317
      %vm1379 = vcmp.eq.f32.partialorder %v1378, 8.507059e+37
      %v1380 = vand.u32 %v1317, 2147483648
      %v1381 = vor.u32 1.1754944e-38, %v1380
      %v1382 = vsel %vm1379, %v1381, %v1377
      %v1383 = vmul.f32 %v1301, %v1382
      %v1384 = vrcp.pop %v1320
      %v1385 = vmul.f32 %v1320, %v1384
      %v1386 = vsub.f32 1.0, %v1385
      %v1387 = vmul.f32 %v1384, %v1386
      %v1388 = vadd.f32 %v1384, %v1387
      %vm1389 = vweird.f32 %v1320
      %vm1390 = vweird.f32 %v1384
      %vm1391 = vmor %vm1389, %vm1390
      %v1392 = vsel %vm1391, %v1384, %v1388
      %v1393 = vand.u32 2147483647, %v1320
      %vm1394 = vcmp.eq.f32.partialorder %v1393, 8.507059e+37
      %v1395 = vand.u32 %v1320, 2147483648
      %v1396 = vor.u32 1.1754944e-38, %v1395
      %v1397 = vsel %vm1394, %v1396, %v1392
      %v1398 = vmul.f32 %v1303, %v1397
      %v1399 = vrcp.pop %v1323
      %v1400 = vmul.f32 %v1323, %v1399
      %v1401 = vsub.f32 1.0, %v1400
      %v1402 = vmul.f32 %v1399, %v1401
      %v1403 = vadd.f32 %v1399, %v1402
      %vm1404 = vweird.f32 %v1323
      %vm1405 = vweird.f32 %v1399
      %vm1406 = vmor %vm1404, %vm1405
      %v1407 = vsel %vm1406, %v1399, %v1403
      %v1408 = vand.u32 2147483647, %v1323
      %vm1409 = vcmp.eq.f32.partialorder %v1408, 8.507059e+37
      %v1410 = vand.u32 %v1323, 2147483648
      %v1411 = vor.u32 1.1754944e-38, %v1410
      %v1412 = vsel %vm1409, %v1411, %v1407
      %v1413 = vmul.f32 %v1305, %v1412
      %1414 = vst [vmem:[#allocation1] ss:$2 sm:$0xff] %v1015
      %s1415 = scalar_lea.vmem [#allocation1], 1
      %1416 = vst [vmem:[%s1415] ss:$2 sm:$0xff] %v1050
      %s1417 = scalar_lea.vmem [#allocation1], 16
      %1418 = vst [vmem:[%s1417] ss:$2 sm:$0xff] %v1018
      %v1419 = vld.sshfl [vmem:[#allocation1] sm:$0xff pattern:$0x75316420]
      %v1420 = vld.sshfl [vmem:[#allocation1 + $0x10] sm:$0xff pattern:$0x75316420]
      %1421 = vrot.lane.b32.xlu0 %v1419, 96
      %v1422 = vpop.permute.xlu0 %1421
      %1423 = vrot.lane.b32.xlu0 %v1420, 96
      %v1424 = vpop.permute.xlu0 %1423
      %vm1426 = vcmask 97280
      %v1428 = vsel %vm1426, %v1338, 0
      %vm1430 = vcmask 1043456
      %v1431 = vsel %vm1430, %v1424, 0
      %1433 = vmatpush.msra.mxu0 0.0
      %1434 = vmatpush.msra.mxu0 0.0
      %1435 = vmatpush.msra.mxu0 0.0
      %1436 = vmatpush.msra.mxu0 0.0
      %1437 = vmatpush.msra.mxu0 0.0
      %1438 = vmatpush.msra.mxu0 0.0
      %1439 = vmatpush.msra.mxu0 0.0
      %1440 = vmatpush.msra.mxu0 0.0
      %1441 = vmatpush.msra.mxu0 0.0
      %1442 = vmatpush.msra.mxu0 0.0
      %1443 = vmatpush.msra.mxu0 0.0
      %1444 = vmatpush.msra.mxu0 0.0
      %1445 = vmatpush.msra.mxu0 0.0
      %1446 = vmatpush.msra.mxu0 0.0
      %1447 = vmatpush.msra.mxu0 %v1431
      %1448 = vmatpush.msra.mxu0 %v1422
      %1449 = vmatmul.f32.gmra.mxu0 %v1428
      %v1450 = vpop.f32.mrf.mxu0
      %v1451 = vadd.f32 0.0, %v1450
      %1452 = vdwg.mxu0
      %1453 = vst [vmem:[#allocation1] ss:$2 sm:$0xff] %v1051
      %s1454 = scalar_lea.vmem [#allocation1], 1
      %1455 = vst [vmem:[%s1454] ss:$2 sm:$0xff] %v1021
      %s1456 = scalar_lea.vmem [#allocation1], 16
      %1457 = vst [vmem:[%s1456] ss:$2 sm:$0xff] %v1052
      %v1458 = vld.sshfl [vmem:[#allocation1] sm:$0xff pattern:$0x75316420]
      %v1459 = vld.sshfl [vmem:[#allocation1 + $0x10] sm:$0xff pattern:$0x75316420]
      %1460 = vrot.lane.b32.xlu0 %v1458, 96
      %v1461 = vpop.permute.xlu0 %1460
      %1462 = vrot.lane.b32.xlu0 %v1459, 96
      %v1463 = vpop.permute.xlu0 %1462
      %v1466 = vsel %vm1426, %v1353, 0
      %v1468 = vsel %vm1430, %v1463, 0
      %1470 = vmatpush.msra.mxu0 0.0
      %1471 = vmatpush.msra.mxu0 0.0
      %1472 = vmatpush.msra.mxu0 0.0
      %1473 = vmatpush.msra.mxu0 0.0
      %1474 = vmatpush.msra.mxu0 0.0
      %1475 = vmatpush.msra.mxu0 0.0
      %1476 = vmatpush.msra.mxu0 0.0
      %1477 = vmatpush.msra.mxu0 0.0
      %1478 = vmatpush.msra.mxu0 0.0
      %1479 = vmatpush.msra.mxu0 0.0
      %1480 = vmatpush.msra.mxu0 0.0
      %1481 = vmatpush.msra.mxu0 0.0
      %1482 = vmatpush.msra.mxu0 0.0
      %1483 = vmatpush.msra.mxu0 0.0
      %1484 = vmatpush.msra.mxu0 %v1468
      %1485 = vmatpush.msra.mxu0 %v1461
      %1486 = vmatmul.f32.gmra.mxu0 %v1466
      %v1487 = vpop.f32.mrf.mxu0
      %v1488 = vadd.f32 0.0, %v1487
      %1489 = vdwg.mxu0
      %1490 = vst [vmem:[#allocation1] ss:$2 sm:$0xff] %v1024
      %s1491 = scalar_lea.vmem [#allocation1], 1
      %1492 = vst [vmem:[%s1491] ss:$2 sm:$0xff] %v1053
      %s1493 = scalar_lea.vmem [#allocation1], 16
      %1494 = vst [vmem:[%s1493] ss:$2 sm:$0xff] %v1027
      %v1495 = vld.sshfl [vmem:[#allocation1] sm:$0xff pattern:$0x75316420]
      %v1496 = vld.sshfl [vmem:[#allocation1 + $0x10] sm:$0xff pattern:$0x75316420]
      %1497 = vrot.lane.b32.xlu0 %v1495, 96
      %v1498 = vpop.permute.xlu0 %1497
      %1499 = vrot.lane.b32.xlu0 %v1496, 96
      %v1500 = vpop.permute.xlu0 %1499
      %v1503 = vsel %vm1426, %v1368, 0
      %v1505 = vsel %vm1430, %v1500, 0
      %1507 = vmatpush.msra.mxu0 0.0
      %1508 = vmatpush.msra.mxu0 0.0
      %1509 = vmatpush.msra.mxu0 0.0
      %1510 = vmatpush.msra.mxu0 0.0
      %1511 = vmatpush.msra.mxu0 0.0
      %1512 = vmatpush.msra.mxu0 0.0
      %1513 = vmatpush.msra.mxu0 0.0
      %1514 = vmatpush.msra.mxu0 0.0
      %1515 = vmatpush.msra.mxu0 0.0
      %1516 = vmatpush.msra.mxu0 0.0
      %1517 = vmatpush.msra.mxu0 0.0
      %1518 = vmatpush.msra.mxu0 0.0
      %1519 = vmatpush.msra.mxu0 0.0
      %1520 = vmatpush.msra.mxu0 0.0
      %1521 = vmatpush.msra.mxu0 %v1505
      %1522 = vmatpush.msra.mxu0 %v1498
      %1523 = vmatmul.f32.gmra.mxu0 %v1503
      %v1524 = vpop.f32.mrf.mxu0
      %v1525 = vadd.f32 0.0, %v1524
      %1526 = vdwg.mxu0
      %1527 = vst [vmem:[#allocation1] ss:$2 sm:$0xff] %v1054
      %s1528 = scalar_lea.vmem [#allocation1], 1
      %1529 = vst [vmem:[%s1528] ss:$2 sm:$0xff] %v1030
      %s1530 = scalar_lea.vmem [#allocation1], 16
      %1531 = vst [vmem:[%s1530] ss:$2 sm:$0xff] %v1055
      %v1532 = vld.sshfl [vmem:[#allocation1] sm:$0xff pattern:$0x75316420]
      %v1533 = vld.sshfl [vmem:[#allocation1 + $0x10] sm:$0xff pattern:$0x75316420]
      %1534 = vrot.lane.b32.xlu0 %v1532, 96
      %v1535 = vpop.permute.xlu0 %1534
      %1536 = vrot.lane.b32.xlu0 %v1533, 96
      %v1537 = vpop.permute.xlu0 %1536
      %v1540 = vsel %vm1426, %v1383, 0
      %v1542 = vsel %vm1430, %v1537, 0
      %1544 = vmatpush.msra.mxu0 0.0
      %1545 = vmatpush.msra.mxu0 0.0
      %1546 = vmatpush.msra.mxu0 0.0
      %1547 = vmatpush.msra.mxu0 0.0
      %1548 = vmatpush.msra.mxu0 0.0
      %1549 = vmatpush.msra.mxu0 0.0
      %1550 = vmatpush.msra.mxu0 0.0
      %1551 = vmatpush.msra.mxu0 0.0
      %1552 = vmatpush.msra.mxu0 0.0
      %1553 = vmatpush.msra.mxu0 0.0
      %1554 = vmatpush.msra.mxu0 0.0
      %1555 = vmatpush.msra.mxu0 0.0
      %1556 = vmatpush.msra.mxu0 0.0
      %1557 = vmatpush.msra.mxu0 0.0
      %1558 = vmatpush.msra.mxu0 %v1542
      %1559 = vmatpush.msra.mxu0 %v1535
      %1560 = vmatmul.f32.gmra.mxu0 %v1540
      %v1561 = vpop.f32.mrf.mxu0
      %v1562 = vadd.f32 0.0, %v1561
      %1563 = vdwg.mxu0
      %1564 = vst [vmem:[#allocation1] ss:$2 sm:$0xff] %v1033
      %s1565 = scalar_lea.vmem [#allocation1], 1
      %1566 = vst [vmem:[%s1565] ss:$2 sm:$0xff] %v1056
      %s1567 = scalar_lea.vmem [#allocation1], 16
      %1568 = vst [vmem:[%s1567] ss:$2 sm:$0xff] %v1036
      %v1569 = vld.sshfl [vmem:[#allocation1] sm:$0xff pattern:$0x75316420]
      %v1570 = vld.sshfl [vmem:[#allocation1 + $0x10] sm:$0xff pattern:$0x75316420]
      %1571 = vrot.lane.b32.xlu0 %v1569, 96
      %v1572 = vpop.permute.xlu0 %1571
      %1573 = vrot.lane.b32.xlu0 %v1570, 96
      %v1574 = vpop.permute.xlu0 %1573
      %v1577 = vsel %vm1426, %v1398, 0
      %v1579 = vsel %vm1430, %v1574, 0
      %1581 = vmatpush.msra.mxu0 0.0
      %1582 = vmatpush.msra.mxu0 0.0
      %1583 = vmatpush.msra.mxu0 0.0
      %1584 = vmatpush.msra.mxu0 0.0
      %1585 = vmatpush.msra.mxu0 0.0
      %1586 = vmatpush.msra.mxu0 0.0
      %1587 = vmatpush.msra.mxu0 0.0
      %1588 = vmatpush.msra.mxu0 0.0
      %1589 = vmatpush.msra.mxu0 0.0
      %1590 = vmatpush.msra.mxu0 0.0
      %1591 = vmatpush.msra.mxu0 0.0
      %1592 = vmatpush.msra.mxu0 0.0
      %1593 = vmatpush.msra.mxu0 0.0
      %1594 = vmatpush.msra.mxu0 0.0
      %1595 = vmatpush.msra.mxu0 %v1579
      %1596 = vmatpush.msra.mxu0 %v1572
      %1597 = vmatmul.f32.gmra.mxu0 %v1577
      %v1598 = vpop.f32.mrf.mxu0
      %v1599 = vadd.f32 0.0, %v1598
      %1600 = vdwg.mxu0
      %1601 = vst [vmem:[#allocation1] ss:$2 sm:$0xff] %v1057
      %s1602 = scalar_lea.vmem [#allocation1], 1
      %1603 = vst [vmem:[%s1602] ss:$2 sm:$0xff] %v1039
      %s1604 = scalar_lea.vmem [#allocation1], 16
      %1605 = vst [vmem:[%s1604] ss:$2 sm:$0xff] %v1058
      %v1606 = vld.sshfl [vmem:[#allocation1] sm:$0xff pattern:$0x75316420]
      %v1607 = vld.sshfl [vmem:[#allocation1 + $0x10] sm:$0xff pattern:$0x75316420]
      %1608 = vrot.lane.b32.xlu0 %v1606, 96
      %v1609 = vpop.permute.xlu0 %1608
      %1610 = vrot.lane.b32.xlu0 %v1607, 96
      %v1611 = vpop.permute.xlu0 %1610
      %v1614 = vsel %vm1426, %v1413, 0
      %v1616 = vsel %vm1430, %v1611, 0
      %1618 = vmatpush.msra.mxu0 0.0
      %1619 = vmatpush.msra.mxu0 0.0
      %1620 = vmatpush.msra.mxu0 0.0
      %1621 = vmatpush.msra.mxu0 0.0
      %1622 = vmatpush.msra.mxu0 0.0
      %1623 = vmatpush.msra.mxu0 0.0
      %1624 = vmatpush.msra.mxu0 0.0
      %1625 = vmatpush.msra.mxu0 0.0
      %1626 = vmatpush.msra.mxu0 0.0
      %1627 = vmatpush.msra.mxu0 0.0
      %1628 = vmatpush.msra.mxu0 0.0
      %1629 = vmatpush.msra.mxu0 0.0
      %1630 = vmatpush.msra.mxu0 0.0
      %1631 = vmatpush.msra.mxu0 0.0
      %1632 = vmatpush.msra.mxu0 %v1616
      %1633 = vmatpush.msra.mxu0 %v1609
      %1634 = vmatmul.f32.gmra.mxu0 %v1614
      %v1635 = vpop.f32.mrf.mxu0
      %v1636 = vadd.f32 0.0, %v1635
      %1637 = vdwg.mxu0
      %v1638 = vld [vmem:[%s9] sm:$0xff]
      %v1639 = vld [vmem:[%s9 + $0x8] sm:$0xff]
      %v1640 = vld [vmem:[%s9 + $0x10] sm:$0xff]
      %v1641 = vld [vmem:[%s9 + $0x18] sm:$0xff]
      %v1642 = vld [vmem:[%s10] sm:$0x1]
      %v1644 = vperm.slane %v1642, 0
      %v1652 = vrot.slane %v1488, 7
      %v1653 = vsel %vm635, %v1652, %v1451
      %v1654 = vrot.slane %v1525, 6
      %v1655 = vsel %vm638, %v1654, %v1653
      %v1656 = vrot.slane %v1562, 5
      %v1657 = vsel %vm640, %v1656, %v1655
      %v1658 = vrot.slane %v1599, 4
      %v1659 = vsel %vm643, %v1658, %v1657
      %v1660 = vrot.slane %v1636, 3
      %v1661 = vsel %vm646, %v1660, %v1659
      %v1662 = vsel %vm648, %v1661, 0
      %1664 = vmatpush.msra.mxu0 0.0
      %1665 = vmatpush.msra.mxu0 0.0
      %1666 = vmatpush.msra.mxu0 0.0
      %1667 = vmatpush.msra.mxu0 0.0
      %1668 = vmatpush.msra.mxu0 0.0
      %1669 = vmatpush.msra.mxu0 0.0
      %1670 = vmatpush.msra.mxu0 0.0
      %1671 = vmatpush.msra.mxu0 0.0
      %1672 = vmatpush.msra.mxu0 0.0
      %1673 = vmatpush.msra.mxu0 0.0
      %1674 = vmatpush.msra.mxu0 0.0
      %1675 = vmatpush.msra.mxu0 0.0
      %1676 = vmatpush.msra.mxu0 %v1641
      %1677 = vmatpush.msra.mxu0 %v1640
      %1678 = vmatpush.msra.mxu0 %v1639
      %1679 = vmatpush.msra.mxu0 %v1638
      %1680 = vmatmul.f32.gmra.mxu0 %v1662
      %v1681 = vpop.f32.mrf.mxu0
      %v1682 = vadd.f32 %v1644, %v1681
      %1683 = vdwg.mxu0
      %v1685 = vrot.slane %v1682, 5
      %v1686 = vrot.slane %v1682, 6
      %v1687 = vrot.slane %v1682, 7
      %v1688 = vrot.slane %v1682, 1
      %v1689 = vrot.slane %v1682, 2
      %v1696 = vadd.f32 %v830, %v1685
      %v1697 = vadd.f32 %v831, %v1686
      %v1698 = vadd.f32 %v832, %v1687
      %v1699 = vadd.f32 %v833, %v1682
      %v1700 = vadd.f32 %v834, %v1688
      %v1701 = vadd.f32 %v835, %v1689
      %v1702 = vld [vmem:[%s11] sm:$0x1]
      %v1703 = vld [vmem:[%s12] sm:$0x1]
      %v1710 = vrot.slane %v1697, 7
      %v1711 = vsel %vm643, %v1710, %v1696
      %v1712 = vrot.slane %v1698, 6
      %v1713 = vsel %vm646, %v1712, %v1711
      %v1714 = vrot.slane %v1699, 5
      %v1715 = vsel %vm702, %v1714, %v1713
      %v1716 = vrot.slane %v1700, 4
      %v1717 = vsel %vm705, %v1716, %v1715
      %v1718 = vrot.slane %v1701, 3
      %v1721 = vsel %vm710, %v1717, 0.0
      %1722 = vadd.xlane.f32.xlu0 %v1721
      %v1723 = vpop.xlane.xlu0 %1722
      %v1724 = vsel %vm714, %v1718, 0.0
      %1725 = vadd.xlane.f32.xlu0 %v1724
      %v1726 = vpop.xlane.xlu0 %1725
      %v1727 = vmul.f32 %v1723, %v724
      %v1728 = vmul.f32 %v1726, %v724
      %v1731 = vrot.slane %v1727, 1
      %v1732 = vrot.slane %v1727, 2
      %v1733 = vrot.slane %v1727, 3
      %v1734 = vrot.slane %v1727, 4
      %v1735 = vrot.slane %v1728, 5
      %v1742 = vsub.f32 %v1696, %v1727
      %v1743 = vsub.f32 %v1697, %v1731
      %v1744 = vsub.f32 %v1698, %v1732
      %v1745 = vsub.f32 %v1699, %v1733
      %v1746 = vsub.f32 %v1700, %v1734
      %v1747 = vsub.f32 %v1701, %v1735
      %v1748 = vmul.f32 %v1742, %v1742
      %v1749 = vmul.f32 %v1743, %v1743
      %v1750 = vmul.f32 %v1744, %v1744
      %v1751 = vmul.f32 %v1745, %v1745
      %v1752 = vmul.f32 %v1746, %v1746
      %v1753 = vmul.f32 %v1747, %v1747
      %v1760 = vrot.slane %v1749, 7
      %v1761 = vsel %vm643, %v1760, %v1748
      %v1762 = vrot.slane %v1750, 6
      %v1763 = vsel %vm646, %v1762, %v1761
      %v1764 = vrot.slane %v1751, 5
      %v1765 = vsel %vm702, %v1764, %v1763
      %v1766 = vrot.slane %v1752, 4
      %v1767 = vsel %vm705, %v1766, %v1765
      %v1768 = vrot.slane %v1753, 3
      %v1771 = vsel %vm710, %v1767, 0.0
      %1772 = vadd.xlane.f32.xlu0 %v1771
      %v1773 = vpop.xlane.xlu0 %1772
      %v1774 = vsel %vm714, %v1768, 0.0
      %1775 = vadd.xlane.f32.xlu0 %v1774
      %v1776 = vpop.xlane.xlu0 %1775
      %v1777 = vmul.f32 %v1773, %v724
      %v1778 = vmul.f32 %v1776, %v724
      %v1779 = vadd.f32 %v1777, 1e-05
      %v1780 = vadd.f32 %v1778, 1e-05
      %v1781 = vrsqrt.pop %v1779
      %v1782 = vmul.f32 %v1781, %v1779
      %v1783 = vmul.f32 %v1782, %v1781
      %v1784 = vmul.f32 0.5, %v1783
      %v1785 = vsub.f32 1.5, %v1784
      %v1786 = vmul.f32 %v1781, %v1785
      %vm1787 = vweird.f32 %v1779
      %vm1788 = vweird.f32 %v1781
      %vm1789 = vmor %vm1787, %vm1788
      %v1790 = vsel %vm1789, %v1781, %v1786
      %v1791 = vrsqrt.pop %v1780
      %v1792 = vmul.f32 %v1791, %v1780
      %v1793 = vmul.f32 %v1792, %v1791
      %v1794 = vmul.f32 0.5, %v1793
      %v1795 = vsub.f32 1.5, %v1794
      %v1796 = vmul.f32 %v1791, %v1795
      %vm1797 = vweird.f32 %v1780
      %vm1798 = vweird.f32 %v1791
      %vm1799 = vmor %vm1797, %vm1798
      %v1800 = vsel %vm1799, %v1791, %v1796
      %v1803 = vrot.slane %v1790, 1
      %v1804 = vrot.slane %v1790, 2
      %v1805 = vrot.slane %v1790, 3
      %v1806 = vrot.slane %v1790, 4
      %v1807 = vrot.slane %v1800, 5
      %v1814 = vmul.f32 %v1742, %v1790
      %v1815 = vmul.f32 %v1743, %v1803
      %v1816 = vmul.f32 %v1744, %v1804
      %v1817 = vmul.f32 %v1745, %v1805
      %v1818 = vmul.f32 %v1746, %v1806
      %v1819 = vmul.f32 %v1747, %v1807
      %v1821 = vperm.slane %v1702, 0
      %v1823 = vmul.f32 %v1814, %v1821
      %v1824 = vmul.f32 %v1815, %v1821
      %v1825 = vmul.f32 %v1816, %v1821
      %v1826 = vmul.f32 %v1817, %v1821
      %v1827 = vmul.f32 %v1818, %v1821
      %v1828 = vmul.f32 %v1819, %v1821
      %v1830 = vperm.slane %v1703, 0
      %v1832 = vadd.f32 %v1823, %v1830
      %v1833 = vadd.f32 %v1824, %v1830
      %v1834 = vadd.f32 %v1825, %v1830
      %v1835 = vadd.f32 %v1826, %v1830
      %v1836 = vadd.f32 %v1827, %v1830
      %v1837 = vadd.f32 %v1828, %v1830
      %v1838 = vld [vmem:[%s13] sm:$0xff]
      %v1839 = vld [vmem:[%s13 + $0x8] sm:$0xff]
      %v1840 = vld [vmem:[%s13 + $0x10] sm:$0xff]
      %v1841 = vld [vmem:[%s13 + $0x18] sm:$0xff]
      %v1842 = vld [vmem:[%s14] sm:$0x1]
      %v1844 = vperm.slane %v1842, 0
      %v1852 = vrot.slane %v1832, 3
      %v1853 = vrot.slane %v1833, 2
      %v1854 = vsel %vm635, %v1853, %v1852
      %v1855 = vrot.slane %v1834, 1
      %v1856 = vsel %vm638, %v1855, %v1854
      %v1857 = vsel %vm640, %v1835, %v1856
      %v1858 = vrot.slane %v1836, 7
      %v1859 = vsel %vm643, %v1858, %v1857
      %v1860 = vrot.slane %v1837, 6
      %v1861 = vsel %vm646, %v1860, %v1859
      %v1862 = vsel %vm648, %v1861, 0
      %1864 = vmatpush.msra.mxu0 0.0
      %1865 = vmatpush.msra.mxu0 0.0
      %1866 = vmatpush.msra.mxu0 0.0
      %1867 = vmatpush.msra.mxu0 0.0
      %1868 = vmatpush.msra.mxu0 0.0
      %1869 = vmatpush.msra.mxu0 0.0
      %1870 = vmatpush.msra.mxu0 0.0
      %1871 = vmatpush.msra.mxu0 0.0
      %1872 = vmatpush.msra.mxu0 0.0
      %1873 = vmatpush.msra.mxu0 0.0
      %1874 = vmatpush.msra.mxu0 0.0
      %1875 = vmatpush.msra.mxu0 0.0
      %1876 = vmatpush.msra.mxu0 %v1841
      %1877 = vmatpush.msra.mxu0 %v1840
      %1878 = vmatpush.msra.mxu0 %v1839
      %1879 = vmatpush.msra.mxu0 %v1838
      %1880 = vmatmul.f32.gmra.mxu0 %v1862
      %v1881 = vpop.f32.mrf.mxu0
      %v1882 = vadd.f32 %v1844, %v1881
      %1883 = vdwg.mxu0
      %v1884 = vmax.f32 %v1882, 0.0
      %v1885 = vld [vmem:[%s15] sm:$0xff]
      %v1886 = vld [vmem:[%s15 + $0x8] sm:$0xff]
      %v1887 = vld [vmem:[%s15 + $0x10] sm:$0xff]
      %v1888 = vld [vmem:[%s15 + $0x18] sm:$0xff]
      %v1889 = vld [vmem:[%s15 + $0x20] sm:$0xff]
      %v1890 = vld [vmem:[%s15 + $0x28] sm:$0xff]
      %v1891 = vld [vmem:[%s15 + $0x30] sm:$0xff]
      %v1892 = vld [vmem:[%s15 + $0x38] sm:$0xff]
      %v1893 = vld [vmem:[%s16] sm:$0x1]
      %v1895 = vperm.slane %v1893, 0
      %vm1897 = vcmask 523264
      %v1899 = vsel %vm1897, %v1884, 0
      %1901 = vmatpush.msra.mxu0 0.0
      %1902 = vmatpush.msra.mxu0 0.0
      %1903 = vmatpush.msra.mxu0 0.0
      %1904 = vmatpush.msra.mxu0 0.0
      %1905 = vmatpush.msra.mxu0 0.0
      %1906 = vmatpush.msra.mxu0 0.0
      %1907 = vmatpush.msra.mxu0 0.0
      %1908 = vmatpush.msra.mxu0 0.0
      %1909 = vmatpush.msra.mxu0 %v1892
      %1910 = vmatpush.msra.mxu0 %v1891
      %1911 = vmatpush.msra.mxu0 %v1890
      %1912 = vmatpush.msra.mxu0 %v1889
      %1913 = vmatpush.msra.mxu0 %v1888
      %1914 = vmatpush.msra.mxu0 %v1887
      %1915 = vmatpush.msra.mxu0 %v1886
      %1916 = vmatpush.msra.mxu0 %v1885
      %1917 = vmatmul.f32.gmra.mxu0 %v1899
      %v1918 = vpop.f32.mrf.mxu0
      %v1919 = vadd.f32 %v1895, %v1918
      %1920 = vdwg.mxu0
      %v1922 = vrot.slane %v1919, 5
      %v1923 = vrot.slane %v1919, 6
      %v1924 = vrot.slane %v1919, 7
      %v1925 = vrot.slane %v1919, 1
      %v1926 = vrot.slane %v1919, 2
      %v1933 = vadd.f32 %v1832, %v1922
      %v1934 = vadd.f32 %v1833, %v1923
      %v1935 = vadd.f32 %v1834, %v1924
      %v1936 = vadd.f32 %v1835, %v1919
      %v1937 = vadd.f32 %v1836, %v1925
      %v1938 = vadd.f32 %v1837, %v1926
      %v1939 = vld [vmem:[%s17] sm:$0x1]
      %v1940 = vld [vmem:[%s18] sm:$0x1]
      %v1947 = vrot.slane %v1934, 7
      %v1948 = vsel %vm643, %v1947, %v1933
      %v1949 = vrot.slane %v1935, 6
      %v1950 = vsel %vm646, %v1949, %v1948
      %v1951 = vrot.slane %v1936, 5
      %v1952 = vsel %vm702, %v1951, %v1950
      %v1953 = vrot.slane %v1937, 4
      %v1954 = vsel %vm705, %v1953, %v1952
      %v1955 = vrot.slane %v1938, 3
      %v1958 = vsel %vm710, %v1954, 0.0
      %1959 = vadd.xlane.f32.xlu0 %v1958
      %v1960 = vpop.xlane.xlu0 %1959
      %v1961 = vsel %vm714, %v1955, 0.0
      %1962 = vadd.xlane.f32.xlu0 %v1961
      %v1963 = vpop.xlane.xlu0 %1962
      %v1964 = vmul.f32 %v1960, %v724
      %v1965 = vmul.f32 %v1963, %v724
      %v1968 = vrot.slane %v1964, 1
      %v1969 = vrot.slane %v1964, 2
      %v1970 = vrot.slane %v1964, 3
      %v1971 = vrot.slane %v1964, 4
      %v1972 = vrot.slane %v1965, 5
      %v1979 = vsub.f32 %v1933, %v1964
      %v1980 = vsub.f32 %v1934, %v1968
      %v1981 = vsub.f32 %v1935, %v1969
      %v1982 = vsub.f32 %v1936, %v1970
      %v1983 = vsub.f32 %v1937, %v1971
      %v1984 = vsub.f32 %v1938, %v1972
      %v1985 = vmul.f32 %v1979, %v1979
      %v1986 = vmul.f32 %v1980, %v1980
      %v1987 = vmul.f32 %v1981, %v1981
      %v1988 = vmul.f32 %v1982, %v1982
      %v1989 = vmul.f32 %v1983, %v1983
      %v1990 = vmul.f32 %v1984, %v1984
      %v1997 = vrot.slane %v1986, 7
      %v1998 = vsel %vm643, %v1997, %v1985
      %v1999 = vrot.slane %v1987, 6
      %v2000 = vsel %vm646, %v1999, %v1998
      %v2001 = vrot.slane %v1988, 5
      %v2002 = vsel %vm702, %v2001, %v2000
      %v2003 = vrot.slane %v1989, 4
      %v2004 = vsel %vm705, %v2003, %v2002
      %v2005 = vrot.slane %v1990, 3
      %v2008 = vsel %vm710, %v2004, 0.0
      %2009 = vadd.xlane.f32.xlu0 %v2008
      %v2010 = vpop.xlane.xlu0 %2009
      %v2011 = vsel %vm714, %v2005, 0.0
      %2012 = vadd.xlane.f32.xlu0 %v2011
      %v2013 = vpop.xlane.xlu0 %2012
      %v2014 = vmul.f32 %v2010, %v724
      %v2015 = vmul.f32 %v2013, %v724
      %v2016 = vadd.f32 %v2014, 1e-05
      %v2017 = vadd.f32 %v2015, 1e-05
      %v2018 = vrsqrt.pop %v2016
      %v2019 = vmul.f32 %v2018, %v2016
      %v2020 = vmul.f32 %v2019, %v2018
      %v2021 = vmul.f32 0.5, %v2020
      %v2022 = vsub.f32 1.5, %v2021
      %v2023 = vmul.f32 %v2018, %v2022
      %vm2024 = vweird.f32 %v2016
      %vm2025 = vweird.f32 %v2018
      %vm2026 = vmor %vm2024, %vm2025
      %v2027 = vsel %vm2026, %v2018, %v2023
      %v2028 = vrsqrt.pop %v2017
      %v2029 = vmul.f32 %v2028, %v2017
      %v2030 = vmul.f32 %v2029, %v2028
      %v2031 = vmul.f32 0.5, %v2030
      %v2032 = vsub.f32 1.5, %v2031
      %v2033 = vmul.f32 %v2028, %v2032
      %vm2034 = vweird.f32 %v2017
      %vm2035 = vweird.f32 %v2028
      %vm2036 = vmor %vm2034, %vm2035
      %v2037 = vsel %vm2036, %v2028, %v2033
      %v2040 = vrot.slane %v2027, 1
      %v2041 = vrot.slane %v2027, 2
      %v2042 = vrot.slane %v2027, 3
      %v2043 = vrot.slane %v2027, 4
      %v2044 = vrot.slane %v2037, 5
      %v2051 = vmul.f32 %v1979, %v2027
      %v2052 = vmul.f32 %v1980, %v2040
      %v2053 = vmul.f32 %v1981, %v2041
      %v2054 = vmul.f32 %v1982, %v2042
      %v2055 = vmul.f32 %v1983, %v2043
      %v2056 = vmul.f32 %v1984, %v2044
      %v2058 = vperm.slane %v1939, 0
      %v2060 = vmul.f32 %v2051, %v2058
      %v2061 = vmul.f32 %v2052, %v2058
      %v2062 = vmul.f32 %v2053, %v2058
      %v2063 = vmul.f32 %v2054, %v2058
      %v2064 = vmul.f32 %v2055, %v2058
      %v2065 = vmul.f32 %v2056, %v2058
      %v2067 = vperm.slane %v1940, 0
      %v2069 = vadd.f32 %v2060, %v2067
      %v2070 = vadd.f32 %v2061, %v2067
      %v2071 = vadd.f32 %v2062, %v2067
      %v2072 = vadd.f32 %v2063, %v2067
      %v2073 = vadd.f32 %v2064, %v2067
      %v2074 = vadd.f32 %v2065, %v2067
      %vm2075 = vcmask 257027
      %2076 = vst.msk [vmem:[%s605 - $0x3] sm:$0x8] %vm2075, %v2069
      %2077 = vst.msk [vmem:[%s605 - $0x2] sm:$0x8] %vm2075, %v2070
      %2078 = vst.msk [vmem:[%s605 - $0x1] sm:$0x8] %vm2075, %v2071
      %2079 = vst.msk [vmem:[%s605] sm:$0x8] %vm2075, %v2072
      %2080 = vst.msk [vmem:[%s605 + $0x1] sm:$0x8] %vm2075, %v2073
      %2081 = vst.msk [vmem:[%s605 + $0x2] sm:$0x8] %vm2075, %v2074
      %s2082 = smul.u32 6, %s30
      %p2083 = scmp.lt.s32.totalorder %s2082, 11
      %s2084 = scalar_select %p2083, %s2082, 11
      %s2085 = scalar_lea.vmem %s19, %s2084
      // Predicated region
      $region97: #{hrl_encoder_forward.5} parent=95 // pred_check
        %p2086 = pneg %p452
      $region98: #{hrl_encoder_forward.5} parent=95 // pred_check_branch
        %2088 = sbr.rel (%p2086) target = $region100
      $region99: #{hrl_encoder_forward.5} parent=95 // pred_region
        %s2089 = smul.u32 6, %s30
      $region100: #{hrl_encoder_forward.5} parent=95 // pred_fallthru
        _
    $region96: #{hrl_encoder_forward.5} parent=5 // pred_fallthru
      _
    %p2090 = scmp.le.s32.totalorder 2, %s25
    // Predicated region
    $region101: #{hrl_encoder_forward.5} parent=5 // pred_check
      %p2091 = pneg %p2090
    $region102: #{hrl_encoder_forward.5} parent=5 // pred_check_branch
      %2093 = sbr.rel (%p2091) target = $region104
    $region103: #{hrl_encoder_forward.5} parent=5 // pred_region
      %s2094 = ssub.s32 %s25, 2
      // Predicated region
      $region105: #{hrl_encoder_forward.5} parent=103 // pred_check
        %p2095 = pneg %p458
      $region106: #{hrl_encoder_forward.5} parent=103 // pred_check_branch
        %2097 = sbr.rel (%p2095) target = $region108
      $region107: #{hrl_encoder_forward.5} parent=103 // pred_region
        %s2098 = smul.u32 6, %s31
        %p2099 = scmp.lt.s32.totalorder %s2098, 11
        %s2100 = scalar_select %p2099, %s2098, 11
        %s2101 = scalar_lea.vmem %s19, %s2100
      $region108: #{hrl_encoder_forward.5} parent=103 // pred_fallthru
        _
    $region104: #{hrl_encoder_forward.5} parent=5 // pred_fallthru
      _
  $region6: #{hrl_encoder_forward.5} parent=0 // loop_footer
    %s29 = sadd.s32 1, %s25
  $region7: #{hrl_encoder_forward.5} parent=0 // loop_footer_branch
    %24 = sbr.rel target = $region3
  $region8: #{hrl_encoder_forward.5} parent=0 // loop_exit
    _

</llo_original>
